<compile_context>
chip_gen: v5e
topology: v5e:2x2
jax: 0.10.0
libtpu: 0.0.40
codegen_flags: <defaults>
</compile_context>

<pallas_src>
import functools

import jax
import jax.numpy as jnp
from jax.experimental import pallas as pl
from jax.experimental.pallas import tpu as pltpu


K1 = 75          # conv1 im2col K = 5*5*3
K1P = 128        # zero-padded to a lane-aligned 128


# ---------------------------------------------------------------------------
# Fused kernel: conv1 (im2col matmul) + ReLU + conv2 (in-VMEM shift&accumulate)
# + ReLU + conv3 (VPU dot) + sigmoid.  One batch tile (tb images) per grid step.
# ---------------------------------------------------------------------------
def _fused_kernel(p_ref, w1_ref, b1_ref, w2_ref, b2_ref, w3_ref, b3_ref,
                  o_ref, pad_ref, *, tb):
    # ---- conv1: (256*tb, 128) @ (128, 32) on the MXU (bf16 in, f32 acc) ------
    p = p_ref[...].reshape(256 * tb, K1P).astype(jnp.bfloat16)
    a1 = jnp.dot(p, w1_ref[...], preferred_element_type=jnp.float32)
    a1 = jnp.maximum(a1 + b1_ref[...], 0.0)               # (256*tb, 32) f32, ReLU
    # rows are ordered (h, w, b); split h -> (t_h, r_h) and w -> (t_w, r_w), r = h % 4
    a1 = a1.reshape(4, 4, 4, 4, tb, 32)

    # ---- scatter ReLU(conv1) into the zero-padded, stride-decomposed scratch -
    # scratch dims (a_h, b_h, a_w, b_w, batch, c); padded coord h_pad = 4*a_h + b_h
    # and h_pad = h + 2 (pad=2), so (r_h<2) -> (a_h=t_h, b_h=r_h+2) and
    # (r_h>=2) -> (a_h=t_h+1, b_h=r_h-2); same for w.
    pad_ref[...] = jnp.zeros_like(pad_ref)
    for rh, ah, bh in ((0, 0, 2), (2, 1, 0)):
        for rw, aw, bw in ((0, 0, 2), (2, 1, 0)):
            pad_ref[ah:ah + 4, bh:bh + 2, aw:aw + 4, bw:bw + 2, :, :] = (
                a1[:, rh:rh + 2, :, rw:rw + 2, :, :])

    # ---- conv2: 25-tap shift-and-accumulate; each tap is a (32 -> 64) MXU dot -
    # tap (i, j) needs padded rows 4*t_h + i  ==  (a_h=t_h, b_h=i)      for i < 4
    #                                        or  (a_h=t_h+1, b_h=0)     for i == 4
    acc2 = jnp.zeros((16 * tb, 64), jnp.float32)
    for i in range(5):
        ah, bh = (0, i) if i < 4 else (1, 0)
        for j in range(5):
            aw, bw = (0, j) if j < 4 else (1, 0)
            tap = pad_ref[ah:ah + 4, bh, aw:aw + 4, bw, :, :]    # (4, 4, tb, 32)
            tap = tap.reshape(16 * tb, 32).astype(jnp.bfloat16)
            acc2 = acc2 + jnp.dot(tap, w2_ref[i * 5 + j],
                                  preferred_element_type=jnp.float32)
    a2 = jnp.maximum(acc2 + b2_ref[...], 0.0)              # (16*tb, 64) f32, ReLU

    # ---- conv3 (4x4x64 -> 1 FC) as VPU multiply + reduce, fused sigmoid ------
    a2 = a2.reshape(16, tb, 64)                            # (pos, batch, c)
    z = jnp.sum(a2 * w3_ref[...], axis=2, keepdims=True)   # (16, tb, 1)
    z = jnp.sum(z, axis=0) + b3_ref[...]                   # (tb, 1)
    o_ref[...] = jax.nn.sigmoid(z).astype(o_ref.dtype)


def _fused_forward(patches, prep, *, n_pad, tb):
    grid = (n_pad // tb,)
    flops = int(n_pad * (2 * 256 * K1P * 32 + 2 * 16 * 25 * 32 * 64 + 2 * 16 * 64))
    bytes_accessed = int(
        patches.size * patches.dtype.itemsize
        + sum(int(v.size) * v.dtype.itemsize for v in prep.values())
        + n_pad * 4)
    kernel = functools.partial(_fused_kernel, tb=tb)
    return pl.pallas_call(
        kernel,
        out_shape=jax.ShapeDtypeStruct((n_pad, 1), jnp.float32),
        grid_spec=pltpu.PrefetchScalarGridSpec(
            num_scalar_prefetch=0,
            grid=grid,
            in_specs=[
                pl.BlockSpec((256, tb, K1P), lambda b: (0, b, 0)),  # conv1 patches
                pl.BlockSpec((K1P, 32), lambda b: (0, 0)),          # w1 (K padded)
                pl.BlockSpec((1, 32), lambda b: (0, 0)),            # b1
                pl.BlockSpec((25, 32, 64), lambda b: (0, 0, 0)),    # w2 per-tap
                pl.BlockSpec((1, 64), lambda b: (0, 0)),            # b2
                pl.BlockSpec((16, 1, 64), lambda b: (0, 0, 0)),     # w3 (pos, 1, c)
                pl.BlockSpec((1, 1), lambda b: (0, 0)),             # b3
            ],
            out_specs=pl.BlockSpec((tb, 1), lambda b: (b, 0)),
            scratch_shapes=[pltpu.VMEM((5, 4, 5, 4, tb, 32), jnp.float32)],
        ),
        compiler_params=pltpu.CompilerParams(
            dimension_semantics=("parallel",),
            vmem_limit_bytes=32 * 1024 * 1024),
        cost_estimate=pl.CostEstimate(flops=flops,
                                      transcendentals=int(n_pad),
                                      bytes_accessed=bytes_accessed),
    )(patches, prep["w1p"], prep["b1"], prep["w2t"], prep["b2"],
      prep["w3r"], prep["b3"])


# ---------------------------------------------------------------------------
# Plain-JAX glue: conv1 im2col (rows ordered (h, w, batch), K padded to 128)
# ---------------------------------------------------------------------------
def _im2col_conv1(x_nchw):
    n = x_nchw.shape[0]
    x = jnp.transpose(x_nchw, (0, 2, 3, 1))                   # NHWC (n, 64, 64, 3)
    xp = jnp.pad(x, ((0, 0), (2, 2), (2, 2), (0, 0)))         # (n, 68, 68, 3)
    taps = [xp[:, i:i + 61:4, j:j + 61:4, :]
            for i in range(5) for j in range(5)]              # 25 x (n, 16, 16, 3)
    p = jnp.concatenate(taps, axis=-1)                        # (n,16,16,75)  (kh,kw,cin)
    p = jnp.pad(p, ((0, 0), (0, 0), (0, 0), (0, K1P - K1)))   # K 75 -> 128 (zeros)
    return jnp.transpose(p, (1, 2, 0, 3)).reshape(16 * 16, n, K1P)


# ---------------------------------------------------------------------------
# Parameters (deterministic synthetic init, PyTorch-like fan-in scaling)
# ---------------------------------------------------------------------------
def init_params(key):
    def conv_init(k, cout, cin, kh, kw):
        kw_, kb_ = jax.random.split(k)
        fan_in = cin * kh * kw
        bound = 1.0 / jnp.sqrt(fan_in)
        w = jax.random.uniform(kw_, (cout, cin, kh, kw), jnp.float32, -bound, bound)
        b = jax.random.uniform(kb_, (cout,), jnp.float32, -bound, bound)
        return w, b

    k1, k2, k3 = jax.random.split(key, 3)
    return {
        "conv1": conv_init(k1, 32, 3, 5, 5),
        "conv2": conv_init(k2, 64, 32, 5, 5),
        "conv3": conv_init(k3, 1, 64, 4, 4),
    }


def prepare_params(params):
    """One-time re-layout of the PyTorch-style weights for the fused kernel."""
    w1, b1 = params["conv1"]
    w2, b2 = params["conv2"]
    w3, b3 = params["conv3"]
    w1_2d = jnp.transpose(w1, (2, 3, 1, 0)).reshape(K1, 32)        # (kh,kw,cin) x cout
    w1p = jnp.pad(w1_2d, ((0, K1P - K1), (0, 0))).astype(jnp.bfloat16)
    w2t = jnp.transpose(w2, (2, 3, 1, 0)).reshape(25, 32, 64).astype(jnp.bfloat16)
    w3r = jnp.transpose(w3, (2, 3, 0, 1)).reshape(16, 1, 64).astype(jnp.float32)
    return {
        "w1p": w1p, "b1": b1.reshape(1, 32).astype(jnp.float32),
        "w2t": w2t, "b2": b2.reshape(1, 64).astype(jnp.float32),
        "w3r": w3r, "b3": b3.reshape(1, 1).astype(jnp.float32),
    }


# ---------------------------------------------------------------------------
# Forward pass (matches ClassifierWithoutBatchNorm.forward)
# ---------------------------------------------------------------------------
def classifier_forward(prep, x_nchw):
    n = x_nchw.shape[0]
    assert x_nchw.shape[1:] == (3, 64, 64), x_nchw.shape
    tb = n if n <= 8 else 8                     # batch tile (>=8 rows of 8 when big)
    n_pad = ((n + tb - 1) // tb) * tb
    patches = _im2col_conv1(x_nchw)             # (256, n, 128) f32
    if n_pad != n:
        patches = jnp.pad(patches, ((0, 0), (0, n_pad - n), (0, 0)))
    out = _fused_forward(patches, prep, n_pad=n_pad, tb=tb)
    return out[:n]                              # (N, 1) == preds.view(N, -1)


# Pure-JAX reference (lax.conv, f32) for a numerical sanity check.
def _reference_forward(params, x_nchw):
    def conv(x, w, b, stride, pad):
        y = jax.lax.conv_general_dilated(
            x, w, window_strides=(stride, stride),
            padding=((pad, pad), (pad, pad)),
            dimension_numbers=("NCHW", "OIHW", "NCHW"))
        return y + b.reshape(1, -1, 1, 1)

    w1, b1 = params["conv1"]
    w2, b2 = params["conv2"]
    w3, b3 = params["conv3"]
    x = jnp.maximum(conv(x_nchw, w1, b1, 4, 2), 0.0)
    x = jnp.maximum(conv(x, w2, b2, 4, 2), 0.0)
    x = jax.nn.sigmoid(conv(x, w3, b3, 1, 0))
    return x.reshape(x_nchw.shape[0], -1)


if __name__ == "__main__":
    key = jax.random.PRNGKey(0)
    pkey, xkey = jax.random.split(key)
    params = init_params(pkey)
    prep = prepare_params(params)

    # Input spatial size 64 -> 16 -> 4 -> final 4x4 valid conv gives 1x1 output.
    x = jax.random.normal(xkey, (2, 3, 64, 64), dtype=jnp.float32)

    fwd = jax.jit(classifier_forward)
    out = jax.block_until_ready(fwd(prep, x))
    assert out.shape == (2, 1), out.shape

    ref = jax.block_until_ready(_reference_forward(params, x))
    # bf16 MXU inputs (f32 accumulate) per the perf review -> relaxed tolerance.
    assert jnp.allclose(out, ref, atol=3e-2, rtol=3e-2), (out, ref)

    print("KERNEL_OK")
</pallas_src>

<mosaic_0001>
module attributes {stable_mosaic.version = 11 : i64} {
  func.func @_fused_kernel(%arg0: i32, %arg1: memref<256x2x128xf32, #tpu.memory_space<vmem>>, %arg2: memref<128x32xbf16, #tpu.memory_space<vmem>>, %arg3: memref<1x32xf32, #tpu.memory_space<vmem>>, %arg4: memref<25x32x64xbf16, #tpu.memory_space<vmem>>, %arg5: memref<1x64xf32, #tpu.memory_space<vmem>>, %arg6: memref<16x1x64xf32, #tpu.memory_space<vmem>>, %arg7: memref<1x1xf32, #tpu.memory_space<vmem>>, %arg8: memref<2x1xf32, #tpu.memory_space<vmem>>, %arg9: memref<5x4x5x4x2x32xf32, #tpu.memory_space<vmem>>) attributes {dimension_semantics = [#tpu.dimension_semantics<parallel>], iteration_bounds = array<i64: 1>, scalar_prefetch = 0 : i64, scratch_operands = 1 : i64, tpu.core_type = #tpu.core_type<tc>, window_params = [{transform_indices = @transform_0, window_bounds = array<i64: 256, 2, 128>}, {pipeline_mode = #tpu.pipeline_mode<synchronous>, transform_indices = @transform_1, window_bounds = array<i64: 128, 32>}, {pipeline_mode = #tpu.pipeline_mode<synchronous>, transform_indices = @transform_2, window_bounds = array<i64: 1, 32>}, {pipeline_mode = #tpu.pipeline_mode<synchronous>, transform_indices = @transform_3, window_bounds = array<i64: 25, 32, 64>}, {pipeline_mode = #tpu.pipeline_mode<synchronous>, transform_indices = @transform_4, window_bounds = array<i64: 1, 64>}, {pipeline_mode = #tpu.pipeline_mode<synchronous>, transform_indices = @transform_5, window_bounds = array<i64: 16, 1, 64>}, {pipeline_mode = #tpu.pipeline_mode<synchronous>, transform_indices = @transform_6, window_bounds = array<i64: 1, 1>}, {transform_indices = @transform_7, window_bounds = array<i64: 2, 1>}]} {
    %c0 = arith.constant 0 : index
    %c0_0 = arith.constant 0 : index
    %c0_1 = arith.constant 0 : index
    %0 = vector.load %arg1[%c0, %c0_0, %c0_1] : memref<256x2x128xf32, #tpu.memory_space<vmem>>, vector<256x2x128xf32>
    %1 = vector.shape_cast %0 : vector<256x2x128xf32> to vector<512x128xf32>
    %2 = arith.truncf %1 : vector<512x128xf32> to vector<512x128xbf16>
    %c0_2 = arith.constant 0 : index
    %c0_3 = arith.constant 0 : index
    %3 = vector.load %arg2[%c0_2, %c0_3] : memref<128x32xbf16, #tpu.memory_space<vmem>>, vector<128x32xbf16>
    %cst = arith.constant dense<0.000000e+00> : vector<512x32xf32>
    %4 = tpu.matmul %2, %3, %cst {dimension_numbers = #tpu.dot_dimension_numbers<[1], [0], [0], [1], [0, 0, 1, 1], [], []>} : vector<512x128xbf16>, vector<128x32xbf16>, vector<512x32xf32> -> vector<512x32xf32>
    %c0_4 = arith.constant 0 : index
    %c0_5 = arith.constant 0 : index
    %5 = vector.load %arg3[%c0_4, %c0_5] : memref<1x32xf32, #tpu.memory_space<vmem>>, vector<1x32xf32>
    %6 = vector.broadcast %5 : vector<1x32xf32> to vector<512x32xf32>
    %7 = arith.addf %4, %6 : vector<512x32xf32>
    %cst_6 = arith.constant 0.000000e+00 : f32
    %8 = vector.broadcast %cst_6 : f32 to vector<512x32xf32>
    %9 = arith.maximumf %7, %8 : vector<512x32xf32>
    %10 = vector.shape_cast %9 : vector<512x32xf32> to vector<4x4x4x4x2x32xf32>
    %cst_7 = arith.constant 0.000000e+00 : f32
    %11 = vector.broadcast %cst_7 : f32 to vector<5x4x5x4x2x32xf32>
    %c0_8 = arith.constant 0 : index
    %c0_9 = arith.constant 0 : index
    %c0_10 = arith.constant 0 : index
    %c0_11 = arith.constant 0 : index
    %c0_12 = arith.constant 0 : index
    %c0_13 = arith.constant 0 : index
    %12 = vector.load %arg9[%c0_8, %c0_9, %c0_10, %c0_11, %c0_12, %c0_13] : memref<5x4x5x4x2x32xf32, #tpu.memory_space<vmem>>, vector<5x4x5x4x2x32xf32>
    tpu.vector_store %arg9[%c0_8, %c0_9, %c0_10, %c0_11, %c0_12, %c0_13], %11 {strides = array<i32>} : memref<5x4x5x4x2x32xf32, #tpu.memory_space<vmem>>, vector<5x4x5x4x2x32xf32>,
    %13 = vector.extract_strided_slice %10 {offsets = [0, 0, 0, 0, 0, 0], sizes = [4, 2, 4, 2, 2, 32], strides = [1, 1, 1, 1, 1, 1]} : vector<4x4x4x4x2x32xf32> to vector<4x2x4x2x2x32xf32>
    %c0_14 = arith.constant 0 : index
    %c2 = arith.constant 2 : index
    %c0_15 = arith.constant 0 : index
    %c2_16 = arith.constant 2 : index
    %c0_17 = arith.constant 0 : index
    %c0_18 = arith.constant 0 : index
    %14 = vector.load %arg9[%c0_14, %c2, %c0_15, %c2_16, %c0_17, %c0_18] : memref<5x4x5x4x2x32xf32, #tpu.memory_space<vmem>>, vector<4x2x4x2x2x32xf32>
    tpu.vector_store %arg9[%c0_14, %c2, %c0_15, %c2_16, %c0_17, %c0_18], %13 {strides = array<i32>} : memref<5x4x5x4x2x32xf32, #tpu.memory_space<vmem>>, vector<4x2x4x2x2x32xf32>,
    %15 = vector.extract_strided_slice %10 {offsets = [0, 0, 0, 2, 0, 0], sizes = [4, 2, 4, 2, 2, 32], strides = [1, 1, 1, 1, 1, 1]} : vector<4x4x4x4x2x32xf32> to vector<4x2x4x2x2x32xf32>
    %c0_19 = arith.constant 0 : index
    %c2_20 = arith.constant 2 : index
    %c1 = arith.constant 1 : index
    %c0_21 = arith.constant 0 : index
    %c0_22 = arith.constant 0 : index
    %c0_23 = arith.constant 0 : index
    %16 = vector.load %arg9[%c0_19, %c2_20, %c1, %c0_21, %c0_22, %c0_23] : memref<5x4x5x4x2x32xf32, #tpu.memory_space<vmem>>, vector<4x2x4x2x2x32xf32>
    tpu.vector_store %arg9[%c0_19, %c2_20, %c1, %c0_21, %c0_22, %c0_23], %15 {strides = array<i32>} : memref<5x4x5x4x2x32xf32, #tpu.memory_space<vmem>>, vector<4x2x4x2x2x32xf32>,
    %17 = vector.extract_strided_slice %10 {offsets = [0, 2, 0, 0, 0, 0], sizes = [4, 2, 4, 2, 2, 32], strides = [1, 1, 1, 1, 1, 1]} : vector<4x4x4x4x2x32xf32> to vector<4x2x4x2x2x32xf32>
    %c1_24 = arith.constant 1 : index
    %c0_25 = arith.constant 0 : index
    %c0_26 = arith.constant 0 : index
    %c2_27 = arith.constant 2 : index
    %c0_28 = arith.constant 0 : index
    %c0_29 = arith.constant 0 : index
    %18 = vector.load %arg9[%c1_24, %c0_25, %c0_26, %c2_27, %c0_28, %c0_29] : memref<5x4x5x4x2x32xf32, #tpu.memory_space<vmem>>, vector<4x2x4x2x2x32xf32>
    tpu.vector_store %arg9[%c1_24, %c0_25, %c0_26, %c2_27, %c0_28, %c0_29], %17 {strides = array<i32>} : memref<5x4x5x4x2x32xf32, #tpu.memory_space<vmem>>, vector<4x2x4x2x2x32xf32>,
    %19 = vector.extract_strided_slice %10 {offsets = [0, 2, 0, 2, 0, 0], sizes = [4, 2, 4, 2, 2, 32], strides = [1, 1, 1, 1, 1, 1]} : vector<4x4x4x4x2x32xf32> to vector<4x2x4x2x2x32xf32>
    %c1_30 = arith.constant 1 : index
    %c0_31 = arith.constant 0 : index
    %c1_32 = arith.constant 1 : index
    %c0_33 = arith.constant 0 : index
    %c0_34 = arith.constant 0 : index
    %c0_35 = arith.constant 0 : index
    %20 = vector.load %arg9[%c1_30, %c0_31, %c1_32, %c0_33, %c0_34, %c0_35] : memref<5x4x5x4x2x32xf32, #tpu.memory_space<vmem>>, vector<4x2x4x2x2x32xf32>
    tpu.vector_store %arg9[%c1_30, %c0_31, %c1_32, %c0_33, %c0_34, %c0_35], %19 {strides = array<i32>} : memref<5x4x5x4x2x32xf32, #tpu.memory_space<vmem>>, vector<4x2x4x2x2x32xf32>,
    %cst_36 = arith.constant 0.000000e+00 : f32
    %21 = vector.broadcast %cst_36 : f32 to vector<32x64xf32>
    %c0_37 = arith.constant 0 : index
    %c0_38 = arith.constant 0 : index
    %c0_39 = arith.constant 0 : index
    %c0_40 = arith.constant 0 : index
    %c0_41 = arith.constant 0 : index
    %c0_42 = arith.constant 0 : index
    %22 = vector.load %arg9[%c0_37, %c0_38, %c0_39, %c0_40, %c0_41, %c0_42] : memref<5x4x5x4x2x32xf32, #tpu.memory_space<vmem>>, vector<4x1x4x1x2x32xf32>
    %23 = vector.shape_cast %22 : vector<4x1x4x1x2x32xf32> to vector<4x4x2x32xf32>
    %24 = vector.shape_cast %23 : vector<4x4x2x32xf32> to vector<32x32xf32>
    %25 = arith.truncf %24 : vector<32x32xf32> to vector<32x32xbf16>
    %c0_43 = arith.constant 0 : index
    %c0_44 = arith.constant 0 : index
    %c0_45 = arith.constant 0 : index
    %26 = vector.load %arg4[%c0_43, %c0_44, %c0_45] : memref<25x32x64xbf16, #tpu.memory_space<vmem>>, vector<1x32x64xbf16>
    %27 = vector.shape_cast %26 : vector<1x32x64xbf16> to vector<32x64xbf16>
    %cst_46 = arith.constant dense<0.000000e+00> : vector<32x64xf32>
    %28 = tpu.matmul %25, %27, %cst_46 {dimension_numbers = #tpu.dot_dimension_numbers<[1], [0], [0], [1], [0, 0, 1, 1], [], []>} : vector<32x32xbf16>, vector<32x64xbf16>, vector<32x64xf32> -> vector<32x64xf32>
    %29 = arith.addf %21, %28 : vector<32x64xf32>
    %c0_47 = arith.constant 0 : index
    %c0_48 = arith.constant 0 : index
    %c0_49 = arith.constant 0 : index
    %c1_50 = arith.constant 1 : index
    %c0_51 = arith.constant 0 : index
    %c0_52 = arith.constant 0 : index
    %30 = vector.load %arg9[%c0_47, %c0_48, %c0_49, %c1_50, %c0_51, %c0_52] : memref<5x4x5x4x2x32xf32, #tpu.memory_space<vmem>>, vector<4x1x4x1x2x32xf32>
    %31 = vector.shape_cast %30 : vector<4x1x4x1x2x32xf32> to vector<4x4x2x32xf32>
    %32 = vector.shape_cast %31 : vector<4x4x2x32xf32> to vector<32x32xf32>
    %33 = arith.truncf %32 : vector<32x32xf32> to vector<32x32xbf16>
    %c1_53 = arith.constant 1 : index
    %c0_54 = arith.constant 0 : index
    %c0_55 = arith.constant 0 : index
    %34 = vector.load %arg4[%c1_53, %c0_54, %c0_55] : memref<25x32x64xbf16, #tpu.memory_space<vmem>>, vector<1x32x64xbf16>
    %35 = vector.shape_cast %34 : vector<1x32x64xbf16> to vector<32x64xbf16>
    %cst_56 = arith.constant dense<0.000000e+00> : vector<32x64xf32>
    %36 = tpu.matmul %33, %35, %cst_56 {dimension_numbers = #tpu.dot_dimension_numbers<[1], [0], [0], [1], [0, 0, 1, 1], [], []>} : vector<32x32xbf16>, vector<32x64xbf16>, vector<32x64xf32> -> vector<32x64xf32>
    %37 = arith.addf %29, %36 : vector<32x64xf32>
    %c0_57 = arith.constant 0 : index
    %c0_58 = arith.constant 0 : index
    %c0_59 = arith.constant 0 : index
    %c2_60 = arith.constant 2 : index
    %c0_61 = arith.constant 0 : index
    %c0_62 = arith.constant 0 : index
    %38 = vector.load %arg9[%c0_57, %c0_58, %c0_59, %c2_60, %c0_61, %c0_62] : memref<5x4x5x4x2x32xf32, #tpu.memory_space<vmem>>, vector<4x1x4x1x2x32xf32>
    %39 = vector.shape_cast %38 : vector<4x1x4x1x2x32xf32> to vector<4x4x2x32xf32>
    %40 = vector.shape_cast %39 : vector<4x4x2x32xf32> to vector<32x32xf32>
    %41 = arith.truncf %40 : vector<32x32xf32> to vector<32x32xbf16>
    %c2_63 = arith.constant 2 : index
    %c0_64 = arith.constant 0 : index
    %c0_65 = arith.constant 0 : index
    %42 = vector.load %arg4[%c2_63, %c0_64, %c0_65] : memref<25x32x64xbf16, #tpu.memory_space<vmem>>, vector<1x32x64xbf16>
    %43 = vector.shape_cast %42 : vector<1x32x64xbf16> to vector<32x64xbf16>
    %cst_66 = arith.constant dense<0.000000e+00> : vector<32x64xf32>
    %44 = tpu.matmul %41, %43, %cst_66 {dimension_numbers = #tpu.dot_dimension_numbers<[1], [0], [0], [1], [0, 0, 1, 1], [], []>} : vector<32x32xbf16>, vector<32x64xbf16>, vector<32x64xf32> -> vector<32x64xf32>
    %45 = arith.addf %37, %44 : vector<32x64xf32>
    %c0_67 = arith.constant 0 : index
    %c0_68 = arith.constant 0 : index
    %c0_69 = arith.constant 0 : index
    %c3 = arith.constant 3 : index
    %c0_70 = arith.constant 0 : index
    %c0_71 = arith.constant 0 : index
    %46 = vector.load %arg9[%c0_67, %c0_68, %c0_69, %c3, %c0_70, %c0_71] : memref<5x4x5x4x2x32xf32, #tpu.memory_space<vmem>>, vector<4x1x4x1x2x32xf32>
    %47 = vector.shape_cast %46 : vector<4x1x4x1x2x32xf32> to vector<4x4x2x32xf32>
    %48 = vector.shape_cast %47 : vector<4x4x2x32xf32> to vector<32x32xf32>
    %49 = arith.truncf %48 : vector<32x32xf32> to vector<32x32xbf16>
    %c3_72 = arith.constant 3 : index
    %c0_73 = arith.constant 0 : index
    %c0_74 = arith.constant 0 : index
    %50 = vector.load %arg4[%c3_72, %c0_73, %c0_74] : memref<25x32x64xbf16, #tpu.memory_space<vmem>>, vector<1x32x64xbf16>
    %51 = vector.shape_cast %50 : vector<1x32x64xbf16> to vector<32x64xbf16>
    %cst_75 = arith.constant dense<0.000000e+00> : vector<32x64xf32>
    %52 = tpu.matmul %49, %51, %cst_75 {dimension_numbers = #tpu.dot_dimension_numbers<[1], [0], [0], [1], [0, 0, 1, 1], [], []>} : vector<32x32xbf16>, vector<32x64xbf16>, vector<32x64xf32> -> vector<32x64xf32>
    %53 = arith.addf %45, %52 : vector<32x64xf32>
    %c0_76 = arith.constant 0 : index
    %c0_77 = arith.constant 0 : index
    %c1_78 = arith.constant 1 : index
    %c0_79 = arith.constant 0 : index
    %c0_80 = arith.constant 0 : index
    %c0_81 = arith.constant 0 : index
    %54 = vector.load %arg9[%c0_76, %c0_77, %c1_78, %c0_79, %c0_80, %c0_81] : memref<5x4x5x4x2x32xf32, #tpu.memory_space<vmem>>, vector<4x1x4x1x2x32xf32>
    %55 = vector.shape_cast %54 : vector<4x1x4x1x2x32xf32> to vector<4x4x2x32xf32>
    %56 = vector.shape_cast %55 : vector<4x4x2x32xf32> to vector<32x32xf32>
    %57 = arith.truncf %56 : vector<32x32xf32> to vector<32x32xbf16>
    %c4 = arith.constant 4 : index
    %c0_82 = arith.constant 0 : index
    %c0_83 = arith.constant 0 : index
    %58 = vector.load %arg4[%c4, %c0_82, %c0_83] : memref<25x32x64xbf16, #tpu.memory_space<vmem>>, vector<1x32x64xbf16>
    %59 = vector.shape_cast %58 : vector<1x32x64xbf16> to vector<32x64xbf16>
    %cst_84 = arith.constant dense<0.000000e+00> : vector<32x64xf32>
    %60 = tpu.matmul %57, %59, %cst_84 {dimension_numbers = #tpu.dot_dimension_numbers<[1], [0], [0], [1], [0, 0, 1, 1], [], []>} : vector<32x32xbf16>, vector<32x64xbf16>, vector<32x64xf32> -> vector<32x64xf32>
    %61 = arith.addf %53, %60 : vector<32x64xf32>
    %c0_85 = arith.constant 0 : index
    %c1_86 = arith.constant 1 : index
    %c0_87 = arith.constant 0 : index
    %c0_88 = arith.constant 0 : index
    %c0_89 = arith.constant 0 : index
    %c0_90 = arith.constant 0 : index
    %62 = vector.load %arg9[%c0_85, %c1_86, %c0_87, %c0_88, %c0_89, %c0_90] : memref<5x4x5x4x2x32xf32, #tpu.memory_space<vmem>>, vector<4x1x4x1x2x32xf32>
    %63 = vector.shape_cast %62 : vector<4x1x4x1x2x32xf32> to vector<4x4x2x32xf32>
    %64 = vector.shape_cast %63 : vector<4x4x2x32xf32> to vector<32x32xf32>
    %65 = arith.truncf %64 : vector<32x32xf32> to vector<32x32xbf16>
    %c5 = arith.constant 5 : index
    %c0_91 = arith.constant 0 : index
    %c0_92 = arith.constant 0 : index
    %66 = vector.load %arg4[%c5, %c0_91, %c0_92] : memref<25x32x64xbf16, #tpu.memory_space<vmem>>, vector<1x32x64xbf16>
    %67 = vector.shape_cast %66 : vector<1x32x64xbf16> to vector<32x64xbf16>
    %cst_93 = arith.constant dense<0.000000e+00> : vector<32x64xf32>
    %68 = tpu.matmul %65, %67, %cst_93 {dimension_numbers = #tpu.dot_dimension_numbers<[1], [0], [0], [1], [0, 0, 1, 1], [], []>} : vector<32x32xbf16>, vector<32x64xbf16>, vector<32x64xf32> -> vector<32x64xf32>
    %69 = arith.addf %61, %68 : vector<32x64xf32>
    %c0_94 = arith.constant 0 : index
    %c1_95 = arith.constant 1 : index
    %c0_96 = arith.constant 0 : index
    %c1_97 = arith.constant 1 : index
    %c0_98 = arith.constant 0 : index
    %c0_99 = arith.constant 0 : index
    %70 = vector.load %arg9[%c0_94, %c1_95, %c0_96, %c1_97, %c0_98, %c0_99] : memref<5x4x5x4x2x32xf32, #tpu.memory_space<vmem>>, vector<4x1x4x1x2x32xf32>
    %71 = vector.shape_cast %70 : vector<4x1x4x1x2x32xf32> to vector<4x4x2x32xf32>
    %72 = vector.shape_cast %71 : vector<4x4x2x32xf32> to vector<32x32xf32>
    %73 = arith.truncf %72 : vector<32x32xf32> to vector<32x32xbf16>
    %c6 = arith.constant 6 : index
    %c0_100 = arith.constant 0 : index
    %c0_101 = arith.constant 0 : index
    %74 = vector.load %arg4[%c6, %c0_100, %c0_101] : memref<25x32x64xbf16, #tpu.memory_space<vmem>>, vector<1x32x64xbf16>
    %75 = vector.shape_cast %74 : vector<1x32x64xbf16> to vector<32x64xbf16>
    %cst_102 = arith.constant dense<0.000000e+00> : vector<32x64xf32>
    %76 = tpu.matmul %73, %75, %cst_102 {dimension_numbers = #tpu.dot_dimension_numbers<[1], [0], [0], [1], [0, 0, 1, 1], [], []>} : vector<32x32xbf16>, vector<32x64xbf16>, vector<32x64xf32> -> vector<32x64xf32>
    %77 = arith.addf %69, %76 : vector<32x64xf32>
    %c0_103 = arith.constant 0 : index
    %c1_104 = arith.constant 1 : index
    %c0_105 = arith.constant 0 : index
    %c2_106 = arith.constant 2 : index
    %c0_107 = arith.constant 0 : index
    %c0_108 = arith.constant 0 : index
    %78 = vector.load %arg9[%c0_103, %c1_104, %c0_105, %c2_106, %c0_107, %c0_108] : memref<5x4x5x4x2x32xf32, #tpu.memory_space<vmem>>, vector<4x1x4x1x2x32xf32>
    %79 = vector.shape_cast %78 : vector<4x1x4x1x2x32xf32> to vector<4x4x2x32xf32>
    %80 = vector.shape_cast %79 : vector<4x4x2x32xf32> to vector<32x32xf32>
    %81 = arith.truncf %80 : vector<32x32xf32> to vector<32x32xbf16>
    %c7 = arith.constant 7 : index
    %c0_109 = arith.constant 0 : index
    %c0_110 = arith.constant 0 : index
    %82 = vector.load %arg4[%c7, %c0_109, %c0_110] : memref<25x32x64xbf16, #tpu.memory_space<vmem>>, vector<1x32x64xbf16>
    %83 = vector.shape_cast %82 : vector<1x32x64xbf16> to vector<32x64xbf16>
    %cst_111 = arith.constant dense<0.000000e+00> : vector<32x64xf32>
    %84 = tpu.matmul %81, %83, %cst_111 {dimension_numbers = #tpu.dot_dimension_numbers<[1], [0], [0], [1], [0, 0, 1, 1], [], []>} : vector<32x32xbf16>, vector<32x64xbf16>, vector<32x64xf32> -> vector<32x64xf32>
    %85 = arith.addf %77, %84 : vector<32x64xf32>
    %c0_112 = arith.constant 0 : index
    %c1_113 = arith.constant 1 : index
    %c0_114 = arith.constant 0 : index
    %c3_115 = arith.constant 3 : index
    %c0_116 = arith.constant 0 : index
    %c0_117 = arith.constant 0 : index
    %86 = vector.load %arg9[%c0_112, %c1_113, %c0_114, %c3_115, %c0_116, %c0_117] : memref<5x4x5x4x2x32xf32, #tpu.memory_space<vmem>>, vector<4x1x4x1x2x32xf32>
    %87 = vector.shape_cast %86 : vector<4x1x4x1x2x32xf32> to vector<4x4x2x32xf32>
    %88 = vector.shape_cast %87 : vector<4x4x2x32xf32> to vector<32x32xf32>
    %89 = arith.truncf %88 : vector<32x32xf32> to vector<32x32xbf16>
    %c8 = arith.constant 8 : index
    %c0_118 = arith.constant 0 : index
    %c0_119 = arith.constant 0 : index
    %90 = vector.load %arg4[%c8, %c0_118, %c0_119] : memref<25x32x64xbf16, #tpu.memory_space<vmem>>, vector<1x32x64xbf16>
    %91 = vector.shape_cast %90 : vector<1x32x64xbf16> to vector<32x64xbf16>
    %cst_120 = arith.constant dense<0.000000e+00> : vector<32x64xf32>
    %92 = tpu.matmul %89, %91, %cst_120 {dimension_numbers = #tpu.dot_dimension_numbers<[1], [0], [0], [1], [0, 0, 1, 1], [], []>} : vector<32x32xbf16>, vector<32x64xbf16>, vector<32x64xf32> -> vector<32x64xf32>
    %93 = arith.addf %85, %92 : vector<32x64xf32>
    %c0_121 = arith.constant 0 : index
    %c1_122 = arith.constant 1 : index
    %c1_123 = arith.constant 1 : index
    %c0_124 = arith.constant 0 : index
    %c0_125 = arith.constant 0 : index
    %c0_126 = arith.constant 0 : index
    %94 = vector.load %arg9[%c0_121, %c1_122, %c1_123, %c0_124, %c0_125, %c0_126] : memref<5x4x5x4x2x32xf32, #tpu.memory_space<vmem>>, vector<4x1x4x1x2x32xf32>
    %95 = vector.shape_cast %94 : vector<4x1x4x1x2x32xf32> to vector<4x4x2x32xf32>
    %96 = vector.shape_cast %95 : vector<4x4x2x32xf32> to vector<32x32xf32>
    %97 = arith.truncf %96 : vector<32x32xf32> to vector<32x32xbf16>
    %c9 = arith.constant 9 : index
    %c0_127 = arith.constant 0 : index
    %c0_128 = arith.constant 0 : index
    %98 = vector.load %arg4[%c9, %c0_127, %c0_128] : memref<25x32x64xbf16, #tpu.memory_space<vmem>>, vector<1x32x64xbf16>
    %99 = vector.shape_cast %98 : vector<1x32x64xbf16> to vector<32x64xbf16>
    %cst_129 = arith.constant dense<0.000000e+00> : vector<32x64xf32>
    %100 = tpu.matmul %97, %99, %cst_129 {dimension_numbers = #tpu.dot_dimension_numbers<[1], [0], [0], [1], [0, 0, 1, 1], [], []>} : vector<32x32xbf16>, vector<32x64xbf16>, vector<32x64xf32> -> vector<32x64xf32>
    %101 = arith.addf %93, %100 : vector<32x64xf32>
    %c0_130 = arith.constant 0 : index
    %c2_131 = arith.constant 2 : index
    %c0_132 = arith.constant 0 : index
    %c0_133 = arith.constant 0 : index
    %c0_134 = arith.constant 0 : index
    %c0_135 = arith.constant 0 : index
    %102 = vector.load %arg9[%c0_130, %c2_131, %c0_132, %c0_133, %c0_134, %c0_135] : memref<5x4x5x4x2x32xf32, #tpu.memory_space<vmem>>, vector<4x1x4x1x2x32xf32>
    %103 = vector.shape_cast %102 : vector<4x1x4x1x2x32xf32> to vector<4x4x2x32xf32>
    %104 = vector.shape_cast %103 : vector<4x4x2x32xf32> to vector<32x32xf32>
    %105 = arith.truncf %104 : vector<32x32xf32> to vector<32x32xbf16>
    %c10 = arith.constant 10 : index
    %c0_136 = arith.constant 0 : index
    %c0_137 = arith.constant 0 : index
    %106 = vector.load %arg4[%c10, %c0_136, %c0_137] : memref<25x32x64xbf16, #tpu.memory_space<vmem>>, vector<1x32x64xbf16>
    %107 = vector.shape_cast %106 : vector<1x32x64xbf16> to vector<32x64xbf16>
    %cst_138 = arith.constant dense<0.000000e+00> : vector<32x64xf32>
    %108 = tpu.matmul %105, %107, %cst_138 {dimension_numbers = #tpu.dot_dimension_numbers<[1], [0], [0], [1], [0, 0, 1, 1], [], []>} : vector<32x32xbf16>, vector<32x64xbf16>, vector<32x64xf32> -> vector<32x64xf32>
    %109 = arith.addf %101, %108 : vector<32x64xf32>
    %c0_139 = arith.constant 0 : index
    %c2_140 = arith.constant 2 : index
    %c0_141 = arith.constant 0 : index
    %c1_142 = arith.constant 1 : index
    %c0_143 = arith.constant 0 : index
    %c0_144 = arith.constant 0 : index
    %110 = vector.load %arg9[%c0_139, %c2_140, %c0_141, %c1_142, %c0_143, %c0_144] : memref<5x4x5x4x2x32xf32, #tpu.memory_space<vmem>>, vector<4x1x4x1x2x32xf32>
    %111 = vector.shape_cast %110 : vector<4x1x4x1x2x32xf32> to vector<4x4x2x32xf32>
    %112 = vector.shape_cast %111 : vector<4x4x2x32xf32> to vector<32x32xf32>
    %113 = arith.truncf %112 : vector<32x32xf32> to vector<32x32xbf16>
    %c11 = arith.constant 11 : index
    %c0_145 = arith.constant 0 : index
    %c0_146 = arith.constant 0 : index
    %114 = vector.load %arg4[%c11, %c0_145, %c0_146] : memref<25x32x64xbf16, #tpu.memory_space<vmem>>, vector<1x32x64xbf16>
    %115 = vector.shape_cast %114 : vector<1x32x64xbf16> to vector<32x64xbf16>
    %cst_147 = arith.constant dense<0.000000e+00> : vector<32x64xf32>
    %116 = tpu.matmul %113, %115, %cst_147 {dimension_numbers = #tpu.dot_dimension_numbers<[1], [0], [0], [1], [0, 0, 1, 1], [], []>} : vector<32x32xbf16>, vector<32x64xbf16>, vector<32x64xf32> -> vector<32x64xf32>
    %117 = arith.addf %109, %116 : vector<32x64xf32>
    %c0_148 = arith.constant 0 : index
    %c2_149 = arith.constant 2 : index
    %c0_150 = arith.constant 0 : index
    %c2_151 = arith.constant 2 : index
    %c0_152 = arith.constant 0 : index
    %c0_153 = arith.constant 0 : index
    %118 = vector.load %arg9[%c0_148, %c2_149, %c0_150, %c2_151, %c0_152, %c0_153] : memref<5x4x5x4x2x32xf32, #tpu.memory_space<vmem>>, vector<4x1x4x1x2x32xf32>
    %119 = vector.shape_cast %118 : vector<4x1x4x1x2x32xf32> to vector<4x4x2x32xf32>
    %120 = vector.shape_cast %119 : vector<4x4x2x32xf32> to vector<32x32xf32>
    %121 = arith.truncf %120 : vector<32x32xf32> to vector<32x32xbf16>
    %c12 = arith.constant 12 : index
    %c0_154 = arith.constant 0 : index
    %c0_155 = arith.constant 0 : index
    %122 = vector.load %arg4[%c12, %c0_154, %c0_155] : memref<25x32x64xbf16, #tpu.memory_space<vmem>>, vector<1x32x64xbf16>
    %123 = vector.shape_cast %122 : vector<1x32x64xbf16> to vector<32x64xbf16>
    %cst_156 = arith.constant dense<0.000000e+00> : vector<32x64xf32>
    %124 = tpu.matmul %121, %123, %cst_156 {dimension_numbers = #tpu.dot_dimension_numbers<[1], [0], [0], [1], [0, 0, 1, 1], [], []>} : vector<32x32xbf16>, vector<32x64xbf16>, vector<32x64xf32> -> vector<32x64xf32>
    %125 = arith.addf %117, %124 : vector<32x64xf32>
    %c0_157 = arith.constant 0 : index
    %c2_158 = arith.constant 2 : index
    %c0_159 = arith.constant 0 : index
    %c3_160 = arith.constant 3 : index
    %c0_161 = arith.constant 0 : index
    %c0_162 = arith.constant 0 : index
    %126 = vector.load %arg9[%c0_157, %c2_158, %c0_159, %c3_160, %c0_161, %c0_162] : memref<5x4x5x4x2x32xf32, #tpu.memory_space<vmem>>, vector<4x1x4x1x2x32xf32>
    %127 = vector.shape_cast %126 : vector<4x1x4x1x2x32xf32> to vector<4x4x2x32xf32>
    %128 = vector.shape_cast %127 : vector<4x4x2x32xf32> to vector<32x32xf32>
    %129 = arith.truncf %128 : vector<32x32xf32> to vector<32x32xbf16>
    %c13 = arith.constant 13 : index
    %c0_163 = arith.constant 0 : index
    %c0_164 = arith.constant 0 : index
    %130 = vector.load %arg4[%c13, %c0_163, %c0_164] : memref<25x32x64xbf16, #tpu.memory_space<vmem>>, vector<1x32x64xbf16>
    %131 = vector.shape_cast %130 : vector<1x32x64xbf16> to vector<32x64xbf16>
    %cst_165 = arith.constant dense<0.000000e+00> : vector<32x64xf32>
    %132 = tpu.matmul %129, %131, %cst_165 {dimension_numbers = #tpu.dot_dimension_numbers<[1], [0], [0], [1], [0, 0, 1, 1], [], []>} : vector<32x32xbf16>, vector<32x64xbf16>, vector<32x64xf32> -> vector<32x64xf32>
    %133 = arith.addf %125, %132 : vector<32x64xf32>
    %c0_166 = arith.constant 0 : index
    %c2_167 = arith.constant 2 : index
    %c1_168 = arith.constant 1 : index
    %c0_169 = arith.constant 0 : index
    %c0_170 = arith.constant 0 : index
    %c0_171 = arith.constant 0 : index
    %134 = vector.load %arg9[%c0_166, %c2_167, %c1_168, %c0_169, %c0_170, %c0_171] : memref<5x4x5x4x2x32xf32, #tpu.memory_space<vmem>>, vector<4x1x4x1x2x32xf32>
    %135 = vector.shape_cast %134 : vector<4x1x4x1x2x32xf32> to vector<4x4x2x32xf32>
    %136 = vector.shape_cast %135 : vector<4x4x2x32xf32> to vector<32x32xf32>
    %137 = arith.truncf %136 : vector<32x32xf32> to vector<32x32xbf16>
    %c14 = arith.constant 14 : index
    %c0_172 = arith.constant 0 : index
    %c0_173 = arith.constant 0 : index
    %138 = vector.load %arg4[%c14, %c0_172, %c0_173] : memref<25x32x64xbf16, #tpu.memory_space<vmem>>, vector<1x32x64xbf16>
    %139 = vector.shape_cast %138 : vector<1x32x64xbf16> to vector<32x64xbf16>
    %cst_174 = arith.constant dense<0.000000e+00> : vector<32x64xf32>
    %140 = tpu.matmul %137, %139, %cst_174 {dimension_numbers = #tpu.dot_dimension_numbers<[1], [0], [0], [1], [0, 0, 1, 1], [], []>} : vector<32x32xbf16>, vector<32x64xbf16>, vector<32x64xf32> -> vector<32x64xf32>
    %141 = arith.addf %133, %140 : vector<32x64xf32>
    %c0_175 = arith.constant 0 : index
    %c3_176 = arith.constant 3 : index
    %c0_177 = arith.constant 0 : index
    %c0_178 = arith.constant 0 : index
    %c0_179 = arith.constant 0 : index
    %c0_180 = arith.constant 0 : index
    %142 = vector.load %arg9[%c0_175, %c3_176, %c0_177, %c0_178, %c0_179, %c0_180] : memref<5x4x5x4x2x32xf32, #tpu.memory_space<vmem>>, vector<4x1x4x1x2x32xf32>
    %143 = vector.shape_cast %142 : vector<4x1x4x1x2x32xf32> to vector<4x4x2x32xf32>
    %144 = vector.shape_cast %143 : vector<4x4x2x32xf32> to vector<32x32xf32>
    %145 = arith.truncf %144 : vector<32x32xf32> to vector<32x32xbf16>
    %c15 = arith.constant 15 : index
    %c0_181 = arith.constant 0 : index
    %c0_182 = arith.constant 0 : index
    %146 = vector.load %arg4[%c15, %c0_181, %c0_182] : memref<25x32x64xbf16, #tpu.memory_space<vmem>>, vector<1x32x64xbf16>
    %147 = vector.shape_cast %146 : vector<1x32x64xbf16> to vector<32x64xbf16>
    %cst_183 = arith.constant dense<0.000000e+00> : vector<32x64xf32>
    %148 = tpu.matmul %145, %147, %cst_183 {dimension_numbers = #tpu.dot_dimension_numbers<[1], [0], [0], [1], [0, 0, 1, 1], [], []>} : vector<32x32xbf16>, vector<32x64xbf16>, vector<32x64xf32> -> vector<32x64xf32>
    %149 = arith.addf %141, %148 : vector<32x64xf32>
    %c0_184 = arith.constant 0 : index
    %c3_185 = arith.constant 3 : index
    %c0_186 = arith.constant 0 : index
    %c1_187 = arith.constant 1 : index
    %c0_188 = arith.constant 0 : index
    %c0_189 = arith.constant 0 : index
    %150 = vector.load %arg9[%c0_184, %c3_185, %c0_186, %c1_187, %c0_188, %c0_189] : memref<5x4x5x4x2x32xf32, #tpu.memory_space<vmem>>, vector<4x1x4x1x2x32xf32>
    %151 = vector.shape_cast %150 : vector<4x1x4x1x2x32xf32> to vector<4x4x2x32xf32>
    %152 = vector.shape_cast %151 : vector<4x4x2x32xf32> to vector<32x32xf32>
    %153 = arith.truncf %152 : vector<32x32xf32> to vector<32x32xbf16>
    %c16 = arith.constant 16 : index
    %c0_190 = arith.constant 0 : index
    %c0_191 = arith.constant 0 : index
    %154 = vector.load %arg4[%c16, %c0_190, %c0_191] : memref<25x32x64xbf16, #tpu.memory_space<vmem>>, vector<1x32x64xbf16>
    %155 = vector.shape_cast %154 : vector<1x32x64xbf16> to vector<32x64xbf16>
    %cst_192 = arith.constant dense<0.000000e+00> : vector<32x64xf32>
    %156 = tpu.matmul %153, %155, %cst_192 {dimension_numbers = #tpu.dot_dimension_numbers<[1], [0], [0], [1], [0, 0, 1, 1], [], []>} : vector<32x32xbf16>, vector<32x64xbf16>, vector<32x64xf32> -> vector<32x64xf32>
    %157 = arith.addf %149, %156 : vector<32x64xf32>
    %c0_193 = arith.constant 0 : index
    %c3_194 = arith.constant 3 : index
    %c0_195 = arith.constant 0 : index
    %c2_196 = arith.constant 2 : index
    %c0_197 = arith.constant 0 : index
    %c0_198 = arith.constant 0 : index
    %158 = vector.load %arg9[%c0_193, %c3_194, %c0_195, %c2_196, %c0_197, %c0_198] : memref<5x4x5x4x2x32xf32, #tpu.memory_space<vmem>>, vector<4x1x4x1x2x32xf32>
    %159 = vector.shape_cast %158 : vector<4x1x4x1x2x32xf32> to vector<4x4x2x32xf32>
    %160 = vector.shape_cast %159 : vector<4x4x2x32xf32> to vector<32x32xf32>
    %161 = arith.truncf %160 : vector<32x32xf32> to vector<32x32xbf16>
    %c17 = arith.constant 17 : index
    %c0_199 = arith.constant 0 : index
    %c0_200 = arith.constant 0 : index
    %162 = vector.load %arg4[%c17, %c0_199, %c0_200] : memref<25x32x64xbf16, #tpu.memory_space<vmem>>, vector<1x32x64xbf16>
    %163 = vector.shape_cast %162 : vector<1x32x64xbf16> to vector<32x64xbf16>
    %cst_201 = arith.constant dense<0.000000e+00> : vector<32x64xf32>
    %164 = tpu.matmul %161, %163, %cst_201 {dimension_numbers = #tpu.dot_dimension_numbers<[1], [0], [0], [1], [0, 0, 1, 1], [], []>} : vector<32x32xbf16>, vector<32x64xbf16>, vector<32x64xf32> -> vector<32x64xf32>
    %165 = arith.addf %157, %164 : vector<32x64xf32>
    %c0_202 = arith.constant 0 : index
    %c3_203 = arith.constant 3 : index
    %c0_204 = arith.constant 0 : index
    %c3_205 = arith.constant 3 : index
    %c0_206 = arith.constant 0 : index
    %c0_207 = arith.constant 0 : index
    %166 = vector.load %arg9[%c0_202, %c3_203, %c0_204, %c3_205, %c0_206, %c0_207] : memref<5x4x5x4x2x32xf32, #tpu.memory_space<vmem>>, vector<4x1x4x1x2x32xf32>
    %167 = vector.shape_cast %166 : vector<4x1x4x1x2x32xf32> to vector<4x4x2x32xf32>
    %168 = vector.shape_cast %167 : vector<4x4x2x32xf32> to vector<32x32xf32>
    %169 = arith.truncf %168 : vector<32x32xf32> to vector<32x32xbf16>
    %c18 = arith.constant 18 : index
    %c0_208 = arith.constant 0 : index
    %c0_209 = arith.constant 0 : index
    %170 = vector.load %arg4[%c18, %c0_208, %c0_209] : memref<25x32x64xbf16, #tpu.memory_space<vmem>>, vector<1x32x64xbf16>
    %171 = vector.shape_cast %170 : vector<1x32x64xbf16> to vector<32x64xbf16>
    %cst_210 = arith.constant dense<0.000000e+00> : vector<32x64xf32>
    %172 = tpu.matmul %169, %171, %cst_210 {dimension_numbers = #tpu.dot_dimension_numbers<[1], [0], [0], [1], [0, 0, 1, 1], [], []>} : vector<32x32xbf16>, vector<32x64xbf16>, vector<32x64xf32> -> vector<32x64xf32>
    %173 = arith.addf %165, %172 : vector<32x64xf32>
    %c0_211 = arith.constant 0 : index
    %c3_212 = arith.constant 3 : index
    %c1_213 = arith.constant 1 : index
    %c0_214 = arith.constant 0 : index
    %c0_215 = arith.constant 0 : index
    %c0_216 = arith.constant 0 : index
    %174 = vector.load %arg9[%c0_211, %c3_212, %c1_213, %c0_214, %c0_215, %c0_216] : memref<5x4x5x4x2x32xf32, #tpu.memory_space<vmem>>, vector<4x1x4x1x2x32xf32>
    %175 = vector.shape_cast %174 : vector<4x1x4x1x2x32xf32> to vector<4x4x2x32xf32>
    %176 = vector.shape_cast %175 : vector<4x4x2x32xf32> to vector<32x32xf32>
    %177 = arith.truncf %176 : vector<32x32xf32> to vector<32x32xbf16>
    %c19 = arith.constant 19 : index
    %c0_217 = arith.constant 0 : index
    %c0_218 = arith.constant 0 : index
    %178 = vector.load %arg4[%c19, %c0_217, %c0_218] : memref<25x32x64xbf16, #tpu.memory_space<vmem>>, vector<1x32x64xbf16>
    %179 = vector.shape_cast %178 : vector<1x32x64xbf16> to vector<32x64xbf16>
    %cst_219 = arith.constant dense<0.000000e+00> : vector<32x64xf32>
    %180 = tpu.matmul %177, %179, %cst_219 {dimension_numbers = #tpu.dot_dimension_numbers<[1], [0], [0], [1], [0, 0, 1, 1], [], []>} : vector<32x32xbf16>, vector<32x64xbf16>, vector<32x64xf32> -> vector<32x64xf32>
    %181 = arith.addf %173, %180 : vector<32x64xf32>
    %c1_220 = arith.constant 1 : index
    %c0_221 = arith.constant 0 : index
    %c0_222 = arith.constant 0 : index
    %c0_223 = arith.constant 0 : index
    %c0_224 = arith.constant 0 : index
    %c0_225 = arith.constant 0 : index
    %182 = vector.load %arg9[%c1_220, %c0_221, %c0_222, %c0_223, %c0_224, %c0_225] : memref<5x4x5x4x2x32xf32, #tpu.memory_space<vmem>>, vector<4x1x4x1x2x32xf32>
    %183 = vector.shape_cast %182 : vector<4x1x4x1x2x32xf32> to vector<4x4x2x32xf32>
    %184 = vector.shape_cast %183 : vector<4x4x2x32xf32> to vector<32x32xf32>
    %185 = arith.truncf %184 : vector<32x32xf32> to vector<32x32xbf16>
    %c20 = arith.constant 20 : index
    %c0_226 = arith.constant 0 : index
    %c0_227 = arith.constant 0 : index
    %186 = vector.load %arg4[%c20, %c0_226, %c0_227] : memref<25x32x64xbf16, #tpu.memory_space<vmem>>, vector<1x32x64xbf16>
    %187 = vector.shape_cast %186 : vector<1x32x64xbf16> to vector<32x64xbf16>
    %cst_228 = arith.constant dense<0.000000e+00> : vector<32x64xf32>
    %188 = tpu.matmul %185, %187, %cst_228 {dimension_numbers = #tpu.dot_dimension_numbers<[1], [0], [0], [1], [0, 0, 1, 1], [], []>} : vector<32x32xbf16>, vector<32x64xbf16>, vector<32x64xf32> -> vector<32x64xf32>
    %189 = arith.addf %181, %188 : vector<32x64xf32>
    %c1_229 = arith.constant 1 : index
    %c0_230 = arith.constant 0 : index
    %c0_231 = arith.constant 0 : index
    %c1_232 = arith.constant 1 : index
    %c0_233 = arith.constant 0 : index
    %c0_234 = arith.constant 0 : index
    %190 = vector.load %arg9[%c1_229, %c0_230, %c0_231, %c1_232, %c0_233, %c0_234] : memref<5x4x5x4x2x32xf32, #tpu.memory_space<vmem>>, vector<4x1x4x1x2x32xf32>
    %191 = vector.shape_cast %190 : vector<4x1x4x1x2x32xf32> to vector<4x4x2x32xf32>
    %192 = vector.shape_cast %191 : vector<4x4x2x32xf32> to vector<32x32xf32>
    %193 = arith.truncf %192 : vector<32x32xf32> to vector<32x32xbf16>
    %c21 = arith.constant 21 : index
    %c0_235 = arith.constant 0 : index
    %c0_236 = arith.constant 0 : index
    %194 = vector.load %arg4[%c21, %c0_235, %c0_236] : memref<25x32x64xbf16, #tpu.memory_space<vmem>>, vector<1x32x64xbf16>
    %195 = vector.shape_cast %194 : vector<1x32x64xbf16> to vector<32x64xbf16>
    %cst_237 = arith.constant dense<0.000000e+00> : vector<32x64xf32>
    %196 = tpu.matmul %193, %195, %cst_237 {dimension_numbers = #tpu.dot_dimension_numbers<[1], [0], [0], [1], [0, 0, 1, 1], [], []>} : vector<32x32xbf16>, vector<32x64xbf16>, vector<32x64xf32> -> vector<32x64xf32>
    %197 = arith.addf %189, %196 : vector<32x64xf32>
    %c1_238 = arith.constant 1 : index
    %c0_239 = arith.constant 0 : index
    %c0_240 = arith.constant 0 : index
    %c2_241 = arith.constant 2 : index
    %c0_242 = arith.constant 0 : index
    %c0_243 = arith.constant 0 : index
    %198 = vector.load %arg9[%c1_238, %c0_239, %c0_240, %c2_241, %c0_242, %c0_243] : memref<5x4x5x4x2x32xf32, #tpu.memory_space<vmem>>, vector<4x1x4x1x2x32xf32>
    %199 = vector.shape_cast %198 : vector<4x1x4x1x2x32xf32> to vector<4x4x2x32xf32>
    %200 = vector.shape_cast %199 : vector<4x4x2x32xf32> to vector<32x32xf32>
    %201 = arith.truncf %200 : vector<32x32xf32> to vector<32x32xbf16>
    %c22 = arith.constant 22 : index
    %c0_244 = arith.constant 0 : index
    %c0_245 = arith.constant 0 : index
    %202 = vector.load %arg4[%c22, %c0_244, %c0_245] : memref<25x32x64xbf16, #tpu.memory_space<vmem>>, vector<1x32x64xbf16>
    %203 = vector.shape_cast %202 : vector<1x32x64xbf16> to vector<32x64xbf16>
    %cst_246 = arith.constant dense<0.000000e+00> : vector<32x64xf32>
    %204 = tpu.matmul %201, %203, %cst_246 {dimension_numbers = #tpu.dot_dimension_numbers<[1], [0], [0], [1], [0, 0, 1, 1], [], []>} : vector<32x32xbf16>, vector<32x64xbf16>, vector<32x64xf32> -> vector<32x64xf32>
    %205 = arith.addf %197, %204 : vector<32x64xf32>
    %c1_247 = arith.constant 1 : index
    %c0_248 = arith.constant 0 : index
    %c0_249 = arith.constant 0 : index
    %c3_250 = arith.constant 3 : index
    %c0_251 = arith.constant 0 : index
    %c0_252 = arith.constant 0 : index
    %206 = vector.load %arg9[%c1_247, %c0_248, %c0_249, %c3_250, %c0_251, %c0_252] : memref<5x4x5x4x2x32xf32, #tpu.memory_space<vmem>>, vector<4x1x4x1x2x32xf32>
    %207 = vector.shape_cast %206 : vector<4x1x4x1x2x32xf32> to vector<4x4x2x32xf32>
    %208 = vector.shape_cast %207 : vector<4x4x2x32xf32> to vector<32x32xf32>
    %209 = arith.truncf %208 : vector<32x32xf32> to vector<32x32xbf16>
    %c23 = arith.constant 23 : index
    %c0_253 = arith.constant 0 : index
    %c0_254 = arith.constant 0 : index
    %210 = vector.load %arg4[%c23, %c0_253, %c0_254] : memref<25x32x64xbf16, #tpu.memory_space<vmem>>, vector<1x32x64xbf16>
    %211 = vector.shape_cast %210 : vector<1x32x64xbf16> to vector<32x64xbf16>
    %cst_255 = arith.constant dense<0.000000e+00> : vector<32x64xf32>
    %212 = tpu.matmul %209, %211, %cst_255 {dimension_numbers = #tpu.dot_dimension_numbers<[1], [0], [0], [1], [0, 0, 1, 1], [], []>} : vector<32x32xbf16>, vector<32x64xbf16>, vector<32x64xf32> -> vector<32x64xf32>
    %213 = arith.addf %205, %212 : vector<32x64xf32>
    %c1_256 = arith.constant 1 : index
    %c0_257 = arith.constant 0 : index
    %c1_258 = arith.constant 1 : index
    %c0_259 = arith.constant 0 : index
    %c0_260 = arith.constant 0 : index
    %c0_261 = arith.constant 0 : index
    %214 = vector.load %arg9[%c1_256, %c0_257, %c1_258, %c0_259, %c0_260, %c0_261] : memref<5x4x5x4x2x32xf32, #tpu.memory_space<vmem>>, vector<4x1x4x1x2x32xf32>
    %215 = vector.shape_cast %214 : vector<4x1x4x1x2x32xf32> to vector<4x4x2x32xf32>
    %216 = vector.shape_cast %215 : vector<4x4x2x32xf32> to vector<32x32xf32>
    %217 = arith.truncf %216 : vector<32x32xf32> to vector<32x32xbf16>
    %c24 = arith.constant 24 : index
    %c0_262 = arith.constant 0 : index
    %c0_263 = arith.constant 0 : index
    %218 = vector.load %arg4[%c24, %c0_262, %c0_263] : memref<25x32x64xbf16, #tpu.memory_space<vmem>>, vector<1x32x64xbf16>
    %219 = vector.shape_cast %218 : vector<1x32x64xbf16> to vector<32x64xbf16>
    %cst_264 = arith.constant dense<0.000000e+00> : vector<32x64xf32>
    %220 = tpu.matmul %217, %219, %cst_264 {dimension_numbers = #tpu.dot_dimension_numbers<[1], [0], [0], [1], [0, 0, 1, 1], [], []>} : vector<32x32xbf16>, vector<32x64xbf16>, vector<32x64xf32> -> vector<32x64xf32>
    %221 = arith.addf %213, %220 : vector<32x64xf32>
    %c0_265 = arith.constant 0 : index
    %c0_266 = arith.constant 0 : index
    %222 = vector.load %arg5[%c0_265, %c0_266] : memref<1x64xf32, #tpu.memory_space<vmem>>, vector<1x64xf32>
    %223 = vector.broadcast %222 : vector<1x64xf32> to vector<32x64xf32>
    %224 = arith.addf %221, %223 : vector<32x64xf32>
    %cst_267 = arith.constant 0.000000e+00 : f32
    %225 = vector.broadcast %cst_267 : f32 to vector<32x64xf32>
    %226 = arith.maximumf %224, %225 : vector<32x64xf32>
    %227 = vector.shape_cast %226 : vector<32x64xf32> to vector<16x2x64xf32>
    %c0_268 = arith.constant 0 : index
    %c0_269 = arith.constant 0 : index
    %c0_270 = arith.constant 0 : index
    %228 = vector.load %arg6[%c0_268, %c0_269, %c0_270] : memref<16x1x64xf32, #tpu.memory_space<vmem>>, vector<16x1x64xf32>
    %229 = vector.broadcast %228 : vector<16x1x64xf32> to vector<16x2x64xf32>
    %230 = arith.mulf %227, %229 : vector<16x2x64xf32>
    %cst_271 = arith.constant dense<0.000000e+00> : vector<16x2xf32>
    %231 = vector.multi_reduction <add>, %230, %cst_271 [2] : vector<16x2x64xf32> to vector<16x2xf32>
    %232 = vector.shape_cast %231 : vector<16x2xf32> to vector<16x2x1xf32>
    %cst_272 = arith.constant dense<0.000000e+00> : vector<2x1xf32>
    %233 = vector.multi_reduction <add>, %232, %cst_272 [0] : vector<16x2x1xf32> to vector<2x1xf32>
    %c0_273 = arith.constant 0 : index
    %c0_274 = arith.constant 0 : index
    %234 = vector.load %arg7[%c0_273, %c0_274] : memref<1x1xf32, #tpu.memory_space<vmem>>, vector<1x1xf32>
    %235 = vector.broadcast %234 : vector<1x1xf32> to vector<2x1xf32>
    %236 = arith.addf %233, %235 : vector<2x1xf32>
    %237 = arith.negf %236 : vector<2x1xf32>
    %238 = math.exp %237 : vector<2x1xf32>
    %cst_275 = arith.constant 1.000000e+00 : f32
    %239 = vector.broadcast %cst_275 : f32 to vector<2x1xf32>
    %240 = arith.addf %239, %238 : vector<2x1xf32>
    %241 = arith.divf %239, %240 : vector<2x1xf32>
    %c0_276 = arith.constant 0 : index
    %c0_277 = arith.constant 0 : index
    %242 = vector.load %arg8[%c0_276, %c0_277] : memref<2x1xf32, #tpu.memory_space<vmem>>, vector<2x1xf32>
    tpu.vector_store %arg8[%c0_276, %c0_277], %241 {strides = array<i32>} : memref<2x1xf32, #tpu.memory_space<vmem>>, vector<2x1xf32>,
    return
  }
  func.func @transform_0(%arg0: i32) -> (i32, i32, i32) {
    %c0_i32 = arith.constant 0 : i32
    %c0_i32_0 = arith.constant 0 : i32
    %c0_i32_1 = arith.constant 0 : i32
    return %c0_i32, %arg0, %c0_i32_0 : i32, i32, i32
  }
  func.func @transform_1(%arg0: i32) -> (i32, i32) {
    %c0_i32 = arith.constant 0 : i32
    %c0_i32_0 = arith.constant 0 : i32
    %c0_i32_1 = arith.constant 0 : i32
    return %c0_i32, %c0_i32_0 : i32, i32
  }
  func.func @transform_2(%arg0: i32) -> (i32, i32) {
    %c0_i32 = arith.constant 0 : i32
    %c0_i32_0 = arith.constant 0 : i32
    %c0_i32_1 = arith.constant 0 : i32
    return %c0_i32, %c0_i32_0 : i32, i32
  }
  func.func @transform_3(%arg0: i32) -> (i32, i32, i32) {
    %c0_i32 = arith.constant 0 : i32
    %c0_i32_0 = arith.constant 0 : i32
    %c0_i32_1 = arith.constant 0 : i32
    %c0_i32_2 = arith.constant 0 : i32
    return %c0_i32, %c0_i32_0, %c0_i32_1 : i32, i32, i32
  }
  func.func @transform_4(%arg0: i32) -> (i32, i32) {
    %c0_i32 = arith.constant 0 : i32
    %c0_i32_0 = arith.constant 0 : i32
    %c0_i32_1 = arith.constant 0 : i32
    return %c0_i32, %c0_i32_0 : i32, i32
  }
  func.func @transform_5(%arg0: i32) -> (i32, i32, i32) {
    %c0_i32 = arith.constant 0 : i32
    %c0_i32_0 = arith.constant 0 : i32
    %c0_i32_1 = arith.constant 0 : i32
    %c0_i32_2 = arith.constant 0 : i32
    return %c0_i32, %c0_i32_0, %c0_i32_1 : i32, i32, i32
  }
  func.func @transform_6(%arg0: i32) -> (i32, i32) {
    %c0_i32 = arith.constant 0 : i32
    %c0_i32_0 = arith.constant 0 : i32
    %c0_i32_1 = arith.constant 0 : i32
    return %c0_i32, %c0_i32_0 : i32, i32
  }
  func.func @transform_7(%arg0: i32) -> (i32, i32) {
    %c0_i32 = arith.constant 0 : i32
    %c0_i32_0 = arith.constant 0 : i32
    return %arg0, %c0_i32 : i32, i32
  }
}

</mosaic_0001>

<llo_original>
// kernel: classifier_forward.1
$region0: #{classifier_forward.1}
  #allocation0 [shape = 'u32[]', space=smem, size = 0x4, offset = 0x4, fixed_abs, tag = 'smem constant byte address 0x4 - core index']
  #allocation1 [shape = 'u32[72,128]{1,0:T(1,128)}', space=vmem, size = 0x9000, scoped, tag = 'internal scratch']
  #allocation2 [shape = 'f32[5,4,5,4,2,32]{5,4,3,2,1,0:T(2,128)}', space=vmem, size = 0x64000, scoped, tag = 'scratch operand']
  #allocation3 [shape = 'f32[1,1]{1,0:T(1,128)S(1)}', space=vmem, size = 0x200, scoped, tag = 'scoped memory for classifier_forward.1']
  %s0 = inlined_call_operand.vmem [shape: f32[256,2,128], index: 0, kind: input, shape index: {}]
  %s1 = inlined_call_operand.vmem [shape: bf16[128,32], index: 1, kind: input, shape index: {}]
  %s2 = inlined_call_operand.vmem [shape: f32[1,32], index: 2, kind: input, shape index: {}]
  %s3 = inlined_call_operand.vmem [shape: bf16[25,32,64], index: 3, kind: input, shape index: {}]
  %s4 = inlined_call_operand.vmem [shape: f32[1,64], index: 4, kind: input, shape index: {}]
  %s5 = inlined_call_operand.vmem [shape: f32[16,1,64], index: 5, kind: input, shape index: {}]
  %s6 = inlined_call_operand.<no memory space> [shape: f32[1,1], index: 6, kind: input, shape index: {}]
  %s7 = inlined_call_operand.vmem [shape: f32[2,1], index: 7, kind: output, shape index: {}]
  %s8 = sld [smem:[#allocation0]]
  $region38: #{classifier_forward.1} parent=0
    _
  %s10 = ssub.s32 1, %s8
  %s11 = scalar_select 0, %s10, %s8
  %v12 = vstv %s6
  %13 = vst [vmem:[#allocation3] sm:$0x1] %v12
  // Predicated region
  $region2: #{classifier_forward.1} parent=0 // pred_check
    _
  $region3: #{classifier_forward.1} parent=0 // pred_check_branch
    %15 = sbr.rel (0) target = $region5
  $region4: #{classifier_forward.1} parent=0 // pred_region
    _
  $region5: #{classifier_forward.1} parent=0 // pred_fallthru
    _
  // Predicated region
  $region6: #{classifier_forward.1} parent=0 // pred_check
    _
  $region7: #{classifier_forward.1} parent=0 // pred_check_branch
    %17 = sbr.rel (0) target = $region9
  $region8: #{classifier_forward.1} parent=0 // pred_region
    _
  $region9: #{classifier_forward.1} parent=0 // pred_fallthru
    _
  // Predicated region
  $region10: #{classifier_forward.1} parent=0 // pred_check
    _
  $region11: #{classifier_forward.1} parent=0 // pred_check_branch
    %19 = sbr.rel (0) target = $region13
  $region12: #{classifier_forward.1} parent=0 // pred_region
    _
  $region13: #{classifier_forward.1} parent=0 // pred_fallthru
    _
  // Predicated region
  $region14: #{classifier_forward.1} parent=0 // pred_check
    _
  $region15: #{classifier_forward.1} parent=0 // pred_check_branch
    %21 = sbr.rel (0) target = $region17
  $region16: #{classifier_forward.1} parent=0 // pred_region
    _
  $region17: #{classifier_forward.1} parent=0 // pred_fallthru
    _
  // Predicated region
  $region18: #{classifier_forward.1} parent=0 // pred_check
    _
  $region19: #{classifier_forward.1} parent=0 // pred_check_branch
    %23 = sbr.rel (0) target = $region21
  $region20: #{classifier_forward.1} parent=0 // pred_region
    _
  $region21: #{classifier_forward.1} parent=0 // pred_fallthru
    _
  // Predicated region
  $region22: #{classifier_forward.1} parent=0 // pred_check
    _
  $region23: #{classifier_forward.1} parent=0 // pred_check_branch
    %25 = sbr.rel (0) target = $region25
  $region24: #{classifier_forward.1} parent=0 // pred_region
    _
  $region25: #{classifier_forward.1} parent=0 // pred_fallthru
    _
  // Predicated region
  $region26: #{classifier_forward.1} parent=0 // pred_check
    _
  $region27: #{classifier_forward.1} parent=0 // pred_check_branch
    %27 = sbr.rel (0) target = $region29
  $region28: #{classifier_forward.1} parent=0 // pred_region
    _
  $region29: #{classifier_forward.1} parent=0 // pred_fallthru
    _
  %v29 = vld [vmem:[%s0] sm:$0x3]
  %v30 = vld [vmem:[%s0 + $0x2] sm:$0x3]
  %v31 = vld [vmem:[%s0 + $0x4] sm:$0x3]
  %v32 = vld [vmem:[%s0 + $0x6] sm:$0x3]
  %v33 = vld [vmem:[%s0 + $0x8] sm:$0x3]
  %v34 = vld [vmem:[%s0 + $0xa] sm:$0x3]
  %v35 = vld [vmem:[%s0 + $0xc] sm:$0x3]
  %v36 = vld [vmem:[%s0 + $0xe] sm:$0x3]
  %v37 = vld [vmem:[%s0 + $0x10] sm:$0x3]
  %v38 = vld [vmem:[%s0 + $0x12] sm:$0x3]
  %v39 = vld [vmem:[%s0 + $0x14] sm:$0x3]
  %v40 = vld [vmem:[%s0 + $0x16] sm:$0x3]
  %v41 = vld [vmem:[%s0 + $0x18] sm:$0x3]
  %v42 = vld [vmem:[%s0 + $0x1a] sm:$0x3]
  %v43 = vld [vmem:[%s0 + $0x1c] sm:$0x3]
  %v44 = vld [vmem:[%s0 + $0x1e] sm:$0x3]
  %v45 = vld [vmem:[%s0 + $0x20] sm:$0x3]
  %v46 = vld [vmem:[%s0 + $0x22] sm:$0x3]
  %v47 = vld [vmem:[%s0 + $0x24] sm:$0x3]
  %v48 = vld [vmem:[%s0 + $0x26] sm:$0x3]
  %v49 = vld [vmem:[%s0 + $0x28] sm:$0x3]
  %v50 = vld [vmem:[%s0 + $0x2a] sm:$0x3]
  %v51 = vld [vmem:[%s0 + $0x2c] sm:$0x3]
  %v52 = vld [vmem:[%s0 + $0x2e] sm:$0x3]
  %v53 = vld [vmem:[%s0 + $0x30] sm:$0x3]
  %v54 = vld [vmem:[%s0 + $0x32] sm:$0x3]
  %v55 = vld [vmem:[%s0 + $0x34] sm:$0x3]
  %v56 = vld [vmem:[%s0 + $0x36] sm:$0x3]
  %v57 = vld [vmem:[%s0 + $0x38] sm:$0x3]
  %v58 = vld [vmem:[%s0 + $0x3a] sm:$0x3]
  %v59 = vld [vmem:[%s0 + $0x3c] sm:$0x3]
  %v60 = vld [vmem:[%s0 + $0x3e] sm:$0x3]
  %v61 = vld [vmem:[%s0 + $0x40] sm:$0x3]
  %v62 = vld [vmem:[%s0 + $0x42] sm:$0x3]
  %v63 = vld [vmem:[%s0 + $0x44] sm:$0x3]
  %v64 = vld [vmem:[%s0 + $0x46] sm:$0x3]
  %v65 = vld [vmem:[%s0 + $0x48] sm:$0x3]
  %v66 = vld [vmem:[%s0 + $0x4a] sm:$0x3]
  %v67 = vld [vmem:[%s0 + $0x4c] sm:$0x3]
  %v68 = vld [vmem:[%s0 + $0x4e] sm:$0x3]
  %v69 = vld [vmem:[%s0 + $0x50] sm:$0x3]
  %v70 = vld [vmem:[%s0 + $0x52] sm:$0x3]
  %v71 = vld [vmem:[%s0 + $0x54] sm:$0x3]
  %v72 = vld [vmem:[%s0 + $0x56] sm:$0x3]
  %v73 = vld [vmem:[%s0 + $0x58] sm:$0x3]
  %v74 = vld [vmem:[%s0 + $0x5a] sm:$0x3]
  %v75 = vld [vmem:[%s0 + $0x5c] sm:$0x3]
  %v76 = vld [vmem:[%s0 + $0x5e] sm:$0x3]
  %v77 = vld [vmem:[%s0 + $0x60] sm:$0x3]
  %v78 = vld [vmem:[%s0 + $0x62] sm:$0x3]
  %v79 = vld [vmem:[%s0 + $0x64] sm:$0x3]
  %v80 = vld [vmem:[%s0 + $0x66] sm:$0x3]
  %v81 = vld [vmem:[%s0 + $0x68] sm:$0x3]
  %v82 = vld [vmem:[%s0 + $0x6a] sm:$0x3]
  %v83 = vld [vmem:[%s0 + $0x6c] sm:$0x3]
  %v84 = vld [vmem:[%s0 + $0x6e] sm:$0x3]
  %v85 = vld [vmem:[%s0 + $0x70] sm:$0x3]
  %v86 = vld [vmem:[%s0 + $0x72] sm:$0x3]
  %v87 = vld [vmem:[%s0 + $0x74] sm:$0x3]
  %v88 = vld [vmem:[%s0 + $0x76] sm:$0x3]
  %v89 = vld [vmem:[%s0 + $0x78] sm:$0x3]
  %v90 = vld [vmem:[%s0 + $0x7a] sm:$0x3]
  %v91 = vld [vmem:[%s0 + $0x7c] sm:$0x3]
  %v92 = vld [vmem:[%s0 + $0x7e] sm:$0x3]
  %v93 = vld [vmem:[%s0 + $0x80] sm:$0x3]
  %v94 = vld [vmem:[%s0 + $0x82] sm:$0x3]
  %v95 = vld [vmem:[%s0 + $0x84] sm:$0x3]
  %v96 = vld [vmem:[%s0 + $0x86] sm:$0x3]
  %v97 = vld [vmem:[%s0 + $0x88] sm:$0x3]
  %v98 = vld [vmem:[%s0 + $0x8a] sm:$0x3]
  %v99 = vld [vmem:[%s0 + $0x8c] sm:$0x3]
  %v100 = vld [vmem:[%s0 + $0x8e] sm:$0x3]
  %v101 = vld [vmem:[%s0 + $0x90] sm:$0x3]
  %v102 = vld [vmem:[%s0 + $0x92] sm:$0x3]
  %v103 = vld [vmem:[%s0 + $0x94] sm:$0x3]
  %v104 = vld [vmem:[%s0 + $0x96] sm:$0x3]
  %v105 = vld [vmem:[%s0 + $0x98] sm:$0x3]
  %v106 = vld [vmem:[%s0 + $0x9a] sm:$0x3]
  %v107 = vld [vmem:[%s0 + $0x9c] sm:$0x3]
  %v108 = vld [vmem:[%s0 + $0x9e] sm:$0x3]
  %v109 = vld [vmem:[%s0 + $0xa0] sm:$0x3]
  %v110 = vld [vmem:[%s0 + $0xa2] sm:$0x3]
  %v111 = vld [vmem:[%s0 + $0xa4] sm:$0x3]
  %v112 = vld [vmem:[%s0 + $0xa6] sm:$0x3]
  %v113 = vld [vmem:[%s0 + $0xa8] sm:$0x3]
  %v114 = vld [vmem:[%s0 + $0xaa] sm:$0x3]
  %v115 = vld [vmem:[%s0 + $0xac] sm:$0x3]
  %v116 = vld [vmem:[%s0 + $0xae] sm:$0x3]
  %v117 = vld [vmem:[%s0 + $0xb0] sm:$0x3]
  %v118 = vld [vmem:[%s0 + $0xb2] sm:$0x3]
  %v119 = vld [vmem:[%s0 + $0xb4] sm:$0x3]
  %v120 = vld [vmem:[%s0 + $0xb6] sm:$0x3]
  %v121 = vld [vmem:[%s0 + $0xb8] sm:$0x3]
  %v122 = vld [vmem:[%s0 + $0xba] sm:$0x3]
  %v123 = vld [vmem:[%s0 + $0xbc] sm:$0x3]
  %v124 = vld [vmem:[%s0 + $0xbe] sm:$0x3]
  %v125 = vld [vmem:[%s0 + $0xc0] sm:$0x3]
  %v126 = vld [vmem:[%s0 + $0xc2] sm:$0x3]
  %v127 = vld [vmem:[%s0 + $0xc4] sm:$0x3]
  %v128 = vld [vmem:[%s0 + $0xc6] sm:$0x3]
  %v129 = vld [vmem:[%s0 + $0xc8] sm:$0x3]
  %v130 = vld [vmem:[%s0 + $0xca] sm:$0x3]
  %v131 = vld [vmem:[%s0 + $0xcc] sm:$0x3]
  %v132 = vld [vmem:[%s0 + $0xce] sm:$0x3]
  %v133 = vld [vmem:[%s0 + $0xd0] sm:$0x3]
  %v134 = vld [vmem:[%s0 + $0xd2] sm:$0x3]
  %v135 = vld [vmem:[%s0 + $0xd4] sm:$0x3]
  %v136 = vld [vmem:[%s0 + $0xd6] sm:$0x3]
  %v137 = vld [vmem:[%s0 + $0xd8] sm:$0x3]
  %v138 = vld [vmem:[%s0 + $0xda] sm:$0x3]
  %v139 = vld [vmem:[%s0 + $0xdc] sm:$0x3]
  %v140 = vld [vmem:[%s0 + $0xde] sm:$0x3]
  %v141 = vld [vmem:[%s0 + $0xe0] sm:$0x3]
  %v142 = vld [vmem:[%s0 + $0xe2] sm:$0x3]
  %v143 = vld [vmem:[%s0 + $0xe4] sm:$0x3]
  %v144 = vld [vmem:[%s0 + $0xe6] sm:$0x3]
  %v145 = vld [vmem:[%s0 + $0xe8] sm:$0x3]
  %v146 = vld [vmem:[%s0 + $0xea] sm:$0x3]
  %v147 = vld [vmem:[%s0 + $0xec] sm:$0x3]
  %v148 = vld [vmem:[%s0 + $0xee] sm:$0x3]
  %v149 = vld [vmem:[%s0 + $0xf0] sm:$0x3]
  %v150 = vld [vmem:[%s0 + $0xf2] sm:$0x3]
  %v151 = vld [vmem:[%s0 + $0xf4] sm:$0x3]
  %v152 = vld [vmem:[%s0 + $0xf6] sm:$0x3]
  %v153 = vld [vmem:[%s0 + $0xf8] sm:$0x3]
  %v154 = vld [vmem:[%s0 + $0xfa] sm:$0x3]
  %v155 = vld [vmem:[%s0 + $0xfc] sm:$0x3]
  %v156 = vld [vmem:[%s0 + $0xfe] sm:$0x3]
  %v157 = vld [vmem:[%s0 + $0x100] sm:$0x3]
  %v158 = vld [vmem:[%s0 + $0x102] sm:$0x3]
  %v159 = vld [vmem:[%s0 + $0x104] sm:$0x3]
  %v160 = vld [vmem:[%s0 + $0x106] sm:$0x3]
  %v161 = vld [vmem:[%s0 + $0x108] sm:$0x3]
  %v162 = vld [vmem:[%s0 + $0x10a] sm:$0x3]
  %v163 = vld [vmem:[%s0 + $0x10c] sm:$0x3]
  %v164 = vld [vmem:[%s0 + $0x10e] sm:$0x3]
  %v165 = vld [vmem:[%s0 + $0x110] sm:$0x3]
  %v166 = vld [vmem:[%s0 + $0x112] sm:$0x3]
  %v167 = vld [vmem:[%s0 + $0x114] sm:$0x3]
  %v168 = vld [vmem:[%s0 + $0x116] sm:$0x3]
  %v169 = vld [vmem:[%s0 + $0x118] sm:$0x3]
  %v170 = vld [vmem:[%s0 + $0x11a] sm:$0x3]
  %v171 = vld [vmem:[%s0 + $0x11c] sm:$0x3]
  %v172 = vld [vmem:[%s0 + $0x11e] sm:$0x3]
  %v173 = vld [vmem:[%s0 + $0x120] sm:$0x3]
  %v174 = vld [vmem:[%s0 + $0x122] sm:$0x3]
  %v175 = vld [vmem:[%s0 + $0x124] sm:$0x3]
  %v176 = vld [vmem:[%s0 + $0x126] sm:$0x3]
  %v177 = vld [vmem:[%s0 + $0x128] sm:$0x3]
  %v178 = vld [vmem:[%s0 + $0x12a] sm:$0x3]
  %v179 = vld [vmem:[%s0 + $0x12c] sm:$0x3]
  %v180 = vld [vmem:[%s0 + $0x12e] sm:$0x3]
  %v181 = vld [vmem:[%s0 + $0x130] sm:$0x3]
  %v182 = vld [vmem:[%s0 + $0x132] sm:$0x3]
  %v183 = vld [vmem:[%s0 + $0x134] sm:$0x3]
  %v184 = vld [vmem:[%s0 + $0x136] sm:$0x3]
  %v185 = vld [vmem:[%s0 + $0x138] sm:$0x3]
  %v186 = vld [vmem:[%s0 + $0x13a] sm:$0x3]
  %v187 = vld [vmem:[%s0 + $0x13c] sm:$0x3]
  %v188 = vld [vmem:[%s0 + $0x13e] sm:$0x3]
  %v189 = vld [vmem:[%s0 + $0x140] sm:$0x3]
  %v190 = vld [vmem:[%s0 + $0x142] sm:$0x3]
  %v191 = vld [vmem:[%s0 + $0x144] sm:$0x3]
  %v192 = vld [vmem:[%s0 + $0x146] sm:$0x3]
  %v193 = vld [vmem:[%s0 + $0x148] sm:$0x3]
  %v194 = vld [vmem:[%s0 + $0x14a] sm:$0x3]
  %v195 = vld [vmem:[%s0 + $0x14c] sm:$0x3]
  %v196 = vld [vmem:[%s0 + $0x14e] sm:$0x3]
  %v197 = vld [vmem:[%s0 + $0x150] sm:$0x3]
  %v198 = vld [vmem:[%s0 + $0x152] sm:$0x3]
  %v199 = vld [vmem:[%s0 + $0x154] sm:$0x3]
  %v200 = vld [vmem:[%s0 + $0x156] sm:$0x3]
  %v201 = vld [vmem:[%s0 + $0x158] sm:$0x3]
  %v202 = vld [vmem:[%s0 + $0x15a] sm:$0x3]
  %v203 = vld [vmem:[%s0 + $0x15c] sm:$0x3]
  %v204 = vld [vmem:[%s0 + $0x15e] sm:$0x3]
  %v205 = vld [vmem:[%s0 + $0x160] sm:$0x3]
  %v206 = vld [vmem:[%s0 + $0x162] sm:$0x3]
  %v207 = vld [vmem:[%s0 + $0x164] sm:$0x3]
  %v208 = vld [vmem:[%s0 + $0x166] sm:$0x3]
  %v209 = vld [vmem:[%s0 + $0x168] sm:$0x3]
  %v210 = vld [vmem:[%s0 + $0x16a] sm:$0x3]
  %v211 = vld [vmem:[%s0 + $0x16c] sm:$0x3]
  %v212 = vld [vmem:[%s0 + $0x16e] sm:$0x3]
  %v213 = vld [vmem:[%s0 + $0x170] sm:$0x3]
  %v214 = vld [vmem:[%s0 + $0x172] sm:$0x3]
  %v215 = vld [vmem:[%s0 + $0x174] sm:$0x3]
  %v216 = vld [vmem:[%s0 + $0x176] sm:$0x3]
  %v217 = vld [vmem:[%s0 + $0x178] sm:$0x3]
  %v218 = vld [vmem:[%s0 + $0x17a] sm:$0x3]
  %v219 = vld [vmem:[%s0 + $0x17c] sm:$0x3]
  %v220 = vld [vmem:[%s0 + $0x17e] sm:$0x3]
  %v221 = vld [vmem:[%s0 + $0x180] sm:$0x3]
  %v222 = vld [vmem:[%s0 + $0x182] sm:$0x3]
  %v223 = vld [vmem:[%s0 + $0x184] sm:$0x3]
  %v224 = vld [vmem:[%s0 + $0x186] sm:$0x3]
  %v225 = vld [vmem:[%s0 + $0x188] sm:$0x3]
  %v226 = vld [vmem:[%s0 + $0x18a] sm:$0x3]
  %v227 = vld [vmem:[%s0 + $0x18c] sm:$0x3]
  %v228 = vld [vmem:[%s0 + $0x18e] sm:$0x3]
  %v229 = vld [vmem:[%s0 + $0x190] sm:$0x3]
  %v230 = vld [vmem:[%s0 + $0x192] sm:$0x3]
  %v231 = vld [vmem:[%s0 + $0x194] sm:$0x3]
  %v232 = vld [vmem:[%s0 + $0x196] sm:$0x3]
  %v233 = vld [vmem:[%s0 + $0x198] sm:$0x3]
  %v234 = vld [vmem:[%s0 + $0x19a] sm:$0x3]
  %v235 = vld [vmem:[%s0 + $0x19c] sm:$0x3]
  %v236 = vld [vmem:[%s0 + $0x19e] sm:$0x3]
  %v237 = vld [vmem:[%s0 + $0x1a0] sm:$0x3]
  %v238 = vld [vmem:[%s0 + $0x1a2] sm:$0x3]
  %v239 = vld [vmem:[%s0 + $0x1a4] sm:$0x3]
  %v240 = vld [vmem:[%s0 + $0x1a6] sm:$0x3]
  %v241 = vld [vmem:[%s0 + $0x1a8] sm:$0x3]
  %v242 = vld [vmem:[%s0 + $0x1aa] sm:$0x3]
  %v243 = vld [vmem:[%s0 + $0x1ac] sm:$0x3]
  %v244 = vld [vmem:[%s0 + $0x1ae] sm:$0x3]
  %v245 = vld [vmem:[%s0 + $0x1b0] sm:$0x3]
  %v246 = vld [vmem:[%s0 + $0x1b2] sm:$0x3]
  %v247 = vld [vmem:[%s0 + $0x1b4] sm:$0x3]
  %v248 = vld [vmem:[%s0 + $0x1b6] sm:$0x3]
  %v249 = vld [vmem:[%s0 + $0x1b8] sm:$0x3]
  %v250 = vld [vmem:[%s0 + $0x1ba] sm:$0x3]
  %v251 = vld [vmem:[%s0 + $0x1bc] sm:$0x3]
  %v252 = vld [vmem:[%s0 + $0x1be] sm:$0x3]
  %v253 = vld [vmem:[%s0 + $0x1c0] sm:$0x3]
  %v254 = vld [vmem:[%s0 + $0x1c2] sm:$0x3]
  %v255 = vld [vmem:[%s0 + $0x1c4] sm:$0x3]
  %v256 = vld [vmem:[%s0 + $0x1c6] sm:$0x3]
  %v257 = vld [vmem:[%s0 + $0x1c8] sm:$0x3]
  %v258 = vld [vmem:[%s0 + $0x1ca] sm:$0x3]
  %v259 = vld [vmem:[%s0 + $0x1cc] sm:$0x3]
  %v260 = vld [vmem:[%s0 + $0x1ce] sm:$0x3]
  %v261 = vld [vmem:[%s0 + $0x1d0] sm:$0x3]
  %v262 = vld [vmem:[%s0 + $0x1d2] sm:$0x3]
  %v263 = vld [vmem:[%s0 + $0x1d4] sm:$0x3]
  %v264 = vld [vmem:[%s0 + $0x1d6] sm:$0x3]
  %v265 = vld [vmem:[%s0 + $0x1d8] sm:$0x3]
  %v266 = vld [vmem:[%s0 + $0x1da] sm:$0x3]
  %v267 = vld [vmem:[%s0 + $0x1dc] sm:$0x3]
  %v268 = vld [vmem:[%s0 + $0x1de] sm:$0x3]
  %v269 = vld [vmem:[%s0 + $0x1e0] sm:$0x3]
  %v270 = vld [vmem:[%s0 + $0x1e2] sm:$0x3]
  %v271 = vld [vmem:[%s0 + $0x1e4] sm:$0x3]
  %v272 = vld [vmem:[%s0 + $0x1e6] sm:$0x3]
  %v273 = vld [vmem:[%s0 + $0x1e8] sm:$0x3]
  %v274 = vld [vmem:[%s0 + $0x1ea] sm:$0x3]
  %v275 = vld [vmem:[%s0 + $0x1ec] sm:$0x3]
  %v276 = vld [vmem:[%s0 + $0x1ee] sm:$0x3]
  %v277 = vld [vmem:[%s0 + $0x1f0] sm:$0x3]
  %v278 = vld [vmem:[%s0 + $0x1f2] sm:$0x3]
  %v279 = vld [vmem:[%s0 + $0x1f4] sm:$0x3]
  %v280 = vld [vmem:[%s0 + $0x1f6] sm:$0x3]
  %v281 = vld [vmem:[%s0 + $0x1f8] sm:$0x3]
  %v282 = vld [vmem:[%s0 + $0x1fa] sm:$0x3]
  %v283 = vld [vmem:[%s0 + $0x1fc] sm:$0x3]
  %v284 = vld [vmem:[%s0 + $0x1fe] sm:$0x3]
  %541 = vst [vmem:[#allocation1] ss:$4 sm:$0xff] %v29
  %s542 = scalar_lea.vmem [#allocation1], 1
  %543 = vst [vmem:[%s542] ss:$4 sm:$0xff] %v30
  %s544 = scalar_lea.vmem [#allocation1], 2
  %545 = vst [vmem:[%s544] ss:$4 sm:$0xff] %v31
  %s546 = scalar_lea.vmem [#allocation1], 3
  %547 = vst [vmem:[%s546] ss:$4 sm:$0xff] %v32
  %s548 = scalar_lea.vmem [#allocation1], 32
  %549 = vst [vmem:[%s548] ss:$4 sm:$0xff] %v33
  %s550 = scalar_lea.vmem [#allocation1], 33
  %551 = vst [vmem:[%s550] ss:$4 sm:$0xff] %v34
  %s552 = scalar_lea.vmem [#allocation1], 34
  %553 = vst [vmem:[%s552] ss:$4 sm:$0xff] %v35
  %s554 = scalar_lea.vmem [#allocation1], 35
  %555 = vst [vmem:[%s554] ss:$4 sm:$0xff] %v36
  %v556 = vld.sshfl [vmem:[#allocation1] sm:$0xff pattern:$0x73625140]
  %v557 = vld.sshfl [vmem:[#allocation1 + $0x20] sm:$0xff pattern:$0x73625140]
  %558 = vst [vmem:[#allocation1] ss:$4 sm:$0xff] %v37
  %559 = vst [vmem:[%s542] ss:$4 sm:$0xff] %v38
  %560 = vst [vmem:[%s544] ss:$4 sm:$0xff] %v39
  %561 = vst [vmem:[%s546] ss:$4 sm:$0xff] %v40
  %562 = vst [vmem:[%s548] ss:$4 sm:$0xff] %v41
  %563 = vst [vmem:[%s550] ss:$4 sm:$0xff] %v42
  %564 = vst [vmem:[%s552] ss:$4 sm:$0xff] %v43
  %565 = vst [vmem:[%s554] ss:$4 sm:$0xff] %v44
  %v566 = vld.sshfl [vmem:[#allocation1] sm:$0xff pattern:$0x73625140]
  %v567 = vld.sshfl [vmem:[#allocation1 + $0x20] sm:$0xff pattern:$0x73625140]
  %568 = vst [vmem:[#allocation1] ss:$4 sm:$0xff] %v45
  %569 = vst [vmem:[%s542] ss:$4 sm:$0xff] %v46
  %570 = vst [vmem:[%s544] ss:$4 sm:$0xff] %v47
  %571 = vst [vmem:[%s546] ss:$4 sm:$0xff] %v48
  %572 = vst [vmem:[%s548] ss:$4 sm:$0xff] %v49
  %573 = vst [vmem:[%s550] ss:$4 sm:$0xff] %v50
  %574 = vst [vmem:[%s552] ss:$4 sm:$0xff] %v51
  %575 = vst [vmem:[%s554] ss:$4 sm:$0xff] %v52
  %v576 = vld.sshfl [vmem:[#allocation1] sm:$0xff pattern:$0x73625140]
  %v577 = vld.sshfl [vmem:[#allocation1 + $0x20] sm:$0xff pattern:$0x73625140]
  %578 = vst [vmem:[#allocation1] ss:$4 sm:$0xff] %v53
  %579 = vst [vmem:[%s542] ss:$4 sm:$0xff] %v54
  %580 = vst [vmem:[%s544] ss:$4 sm:$0xff] %v55
  %581 = vst [vmem:[%s546] ss:$4 sm:$0xff] %v56
  %582 = vst [vmem:[%s548] ss:$4 sm:$0xff] %v57
  %583 = vst [vmem:[%s550] ss:$4 sm:$0xff] %v58
  %584 = vst [vmem:[%s552] ss:$4 sm:$0xff] %v59
  %585 = vst [vmem:[%s554] ss:$4 sm:$0xff] %v60
  %v586 = vld.sshfl [vmem:[#allocation1] sm:$0xff pattern:$0x73625140]
  %v587 = vld.sshfl [vmem:[#allocation1 + $0x20] sm:$0xff pattern:$0x73625140]
  %588 = vst [vmem:[#allocation1] ss:$4 sm:$0xff] %v61
  %589 = vst [vmem:[%s542] ss:$4 sm:$0xff] %v62
  %590 = vst [vmem:[%s544] ss:$4 sm:$0xff] %v63
  %591 = vst [vmem:[%s546] ss:$4 sm:$0xff] %v64
  %592 = vst [vmem:[%s548] ss:$4 sm:$0xff] %v65
  %593 = vst [vmem:[%s550] ss:$4 sm:$0xff] %v66
  %594 = vst [vmem:[%s552] ss:$4 sm:$0xff] %v67
  %595 = vst [vmem:[%s554] ss:$4 sm:$0xff] %v68
  %v596 = vld.sshfl [vmem:[#allocation1] sm:$0xff pattern:$0x73625140]
  %v597 = vld.sshfl [vmem:[#allocation1 + $0x20] sm:$0xff pattern:$0x73625140]
  %598 = vst [vmem:[#allocation1] ss:$4 sm:$0xff] %v69
  %599 = vst [vmem:[%s542] ss:$4 sm:$0xff] %v70
  %600 = vst [vmem:[%s544] ss:$4 sm:$0xff] %v71
  %601 = vst [vmem:[%s546] ss:$4 sm:$0xff] %v72
  %602 = vst [vmem:[%s548] ss:$4 sm:$0xff] %v73
  %603 = vst [vmem:[%s550] ss:$4 sm:$0xff] %v74
  %604 = vst [vmem:[%s552] ss:$4 sm:$0xff] %v75
  %605 = vst [vmem:[%s554] ss:$4 sm:$0xff] %v76
  %v606 = vld.sshfl [vmem:[#allocation1] sm:$0xff pattern:$0x73625140]
  %v607 = vld.sshfl [vmem:[#allocation1 + $0x20] sm:$0xff pattern:$0x73625140]
  %608 = vst [vmem:[#allocation1] ss:$4 sm:$0xff] %v77
  %609 = vst [vmem:[%s542] ss:$4 sm:$0xff] %v78
  %610 = vst [vmem:[%s544] ss:$4 sm:$0xff] %v79
  %611 = vst [vmem:[%s546] ss:$4 sm:$0xff] %v80
  %612 = vst [vmem:[%s548] ss:$4 sm:$0xff] %v81
  %613 = vst [vmem:[%s550] ss:$4 sm:$0xff] %v82
  %614 = vst [vmem:[%s552] ss:$4 sm:$0xff] %v83
  %615 = vst [vmem:[%s554] ss:$4 sm:$0xff] %v84
  %v616 = vld.sshfl [vmem:[#allocation1] sm:$0xff pattern:$0x73625140]
  %v617 = vld.sshfl [vmem:[#allocation1 + $0x20] sm:$0xff pattern:$0x73625140]
  %618 = vst [vmem:[#allocation1] ss:$4 sm:$0xff] %v85
  %619 = vst [vmem:[%s542] ss:$4 sm:$0xff] %v86
  %620 = vst [vmem:[%s544] ss:$4 sm:$0xff] %v87
  %621 = vst [vmem:[%s546] ss:$4 sm:$0xff] %v88
  %622 = vst [vmem:[%s548] ss:$4 sm:$0xff] %v89
  %623 = vst [vmem:[%s550] ss:$4 sm:$0xff] %v90
  %624 = vst [vmem:[%s552] ss:$4 sm:$0xff] %v91
  %625 = vst [vmem:[%s554] ss:$4 sm:$0xff] %v92
  %v626 = vld.sshfl [vmem:[#allocation1] sm:$0xff pattern:$0x73625140]
  %v627 = vld.sshfl [vmem:[#allocation1 + $0x20] sm:$0xff pattern:$0x73625140]
  %628 = vst [vmem:[#allocation1] ss:$4 sm:$0xff] %v93
  %629 = vst [vmem:[%s542] ss:$4 sm:$0xff] %v94
  %630 = vst [vmem:[%s544] ss:$4 sm:$0xff] %v95
  %631 = vst [vmem:[%s546] ss:$4 sm:$0xff] %v96
  %632 = vst [vmem:[%s548] ss:$4 sm:$0xff] %v97
  %633 = vst [vmem:[%s550] ss:$4 sm:$0xff] %v98
  %634 = vst [vmem:[%s552] ss:$4 sm:$0xff] %v99
  %635 = vst [vmem:[%s554] ss:$4 sm:$0xff] %v100
  %v636 = vld.sshfl [vmem:[#allocation1] sm:$0xff pattern:$0x73625140]
  %v637 = vld.sshfl [vmem:[#allocation1 + $0x20] sm:$0xff pattern:$0x73625140]
  %638 = vst [vmem:[#allocation1] ss:$4 sm:$0xff] %v101
  %639 = vst [vmem:[%s542] ss:$4 sm:$0xff] %v102
  %640 = vst [vmem:[%s544] ss:$4 sm:$0xff] %v103
  %641 = vst [vmem:[%s546] ss:$4 sm:$0xff] %v104
  %642 = vst [vmem:[%s548] ss:$4 sm:$0xff] %v105
  %643 = vst [vmem:[%s550] ss:$4 sm:$0xff] %v106
  %644 = vst [vmem:[%s552] ss:$4 sm:$0xff] %v107
  %645 = vst [vmem:[%s554] ss:$4 sm:$0xff] %v108
  %v646 = vld.sshfl [vmem:[#allocation1] sm:$0xff pattern:$0x73625140]
  %v647 = vld.sshfl [vmem:[#allocation1 + $0x20] sm:$0xff pattern:$0x73625140]
  %648 = vst [vmem:[#allocation1] ss:$4 sm:$0xff] %v109
  %649 = vst [vmem:[%s542] ss:$4 sm:$0xff] %v110
  %650 = vst [vmem:[%s544] ss:$4 sm:$0xff] %v111
  %651 = vst [vmem:[%s546] ss:$4 sm:$0xff] %v112
  %652 = vst [vmem:[%s548] ss:$4 sm:$0xff] %v113
  %653 = vst [vmem:[%s550] ss:$4 sm:$0xff] %v114
  %654 = vst [vmem:[%s552] ss:$4 sm:$0xff] %v115
  %655 = vst [vmem:[%s554] ss:$4 sm:$0xff] %v116
  %v656 = vld.sshfl [vmem:[#allocation1] sm:$0xff pattern:$0x73625140]
  %v657 = vld.sshfl [vmem:[#allocation1 + $0x20] sm:$0xff pattern:$0x73625140]
  %658 = vst [vmem:[#allocation1] ss:$4 sm:$0xff] %v117
  %659 = vst [vmem:[%s542] ss:$4 sm:$0xff] %v118
  %660 = vst [vmem:[%s544] ss:$4 sm:$0xff] %v119
  %661 = vst [vmem:[%s546] ss:$4 sm:$0xff] %v120
  %662 = vst [vmem:[%s548] ss:$4 sm:$0xff] %v121
  %663 = vst [vmem:[%s550] ss:$4 sm:$0xff] %v122
  %664 = vst [vmem:[%s552] ss:$4 sm:$0xff] %v123
  %665 = vst [vmem:[%s554] ss:$4 sm:$0xff] %v124
  %v666 = vld.sshfl [vmem:[#allocation1] sm:$0xff pattern:$0x73625140]
  %v667 = vld.sshfl [vmem:[#allocation1 + $0x20] sm:$0xff pattern:$0x73625140]
  %668 = vst [vmem:[#allocation1] ss:$4 sm:$0xff] %v125
  %669 = vst [vmem:[%s542] ss:$4 sm:$0xff] %v126
  %670 = vst [vmem:[%s544] ss:$4 sm:$0xff] %v127
  %671 = vst [vmem:[%s546] ss:$4 sm:$0xff] %v128
  %672 = vst [vmem:[%s548] ss:$4 sm:$0xff] %v129
  %673 = vst [vmem:[%s550] ss:$4 sm:$0xff] %v130
  %674 = vst [vmem:[%s552] ss:$4 sm:$0xff] %v131
  %675 = vst [vmem:[%s554] ss:$4 sm:$0xff] %v132
  %v676 = vld.sshfl [vmem:[#allocation1] sm:$0xff pattern:$0x73625140]
  %v677 = vld.sshfl [vmem:[#allocation1 + $0x20] sm:$0xff pattern:$0x73625140]
  %678 = vst [vmem:[#allocation1] ss:$4 sm:$0xff] %v133
  %679 = vst [vmem:[%s542] ss:$4 sm:$0xff] %v134
  %680 = vst [vmem:[%s544] ss:$4 sm:$0xff] %v135
  %681 = vst [vmem:[%s546] ss:$4 sm:$0xff] %v136
  %682 = vst [vmem:[%s548] ss:$4 sm:$0xff] %v137
  %683 = vst [vmem:[%s550] ss:$4 sm:$0xff] %v138
  %684 = vst [vmem:[%s552] ss:$4 sm:$0xff] %v139
  %685 = vst [vmem:[%s554] ss:$4 sm:$0xff] %v140
  %v686 = vld.sshfl [vmem:[#allocation1] sm:$0xff pattern:$0x73625140]
  %v687 = vld.sshfl [vmem:[#allocation1 + $0x20] sm:$0xff pattern:$0x73625140]
  %688 = vst [vmem:[#allocation1] ss:$4 sm:$0xff] %v141
  %689 = vst [vmem:[%s542] ss:$4 sm:$0xff] %v142
  %690 = vst [vmem:[%s544] ss:$4 sm:$0xff] %v143
  %691 = vst [vmem:[%s546] ss:$4 sm:$0xff] %v144
  %692 = vst [vmem:[%s548] ss:$4 sm:$0xff] %v145
  %693 = vst [vmem:[%s550] ss:$4 sm:$0xff] %v146
  %694 = vst [vmem:[%s552] ss:$4 sm:$0xff] %v147
  %695 = vst [vmem:[%s554] ss:$4 sm:$0xff] %v148
  %v696 = vld.sshfl [vmem:[#allocation1] sm:$0xff pattern:$0x73625140]
  %v697 = vld.sshfl [vmem:[#allocation1 + $0x20] sm:$0xff pattern:$0x73625140]
  %698 = vst [vmem:[#allocation1] ss:$4 sm:$0xff] %v149
  %699 = vst [vmem:[%s542] ss:$4 sm:$0xff] %v150
  %700 = vst [vmem:[%s544] ss:$4 sm:$0xff] %v151
  %701 = vst [vmem:[%s546] ss:$4 sm:$0xff] %v152
  %702 = vst [vmem:[%s548] ss:$4 sm:$0xff] %v153
  %703 = vst [vmem:[%s550] ss:$4 sm:$0xff] %v154
  %704 = vst [vmem:[%s552] ss:$4 sm:$0xff] %v155
  %705 = vst [vmem:[%s554] ss:$4 sm:$0xff] %v156
  %v706 = vld.sshfl [vmem:[#allocation1] sm:$0xff pattern:$0x73625140]
  %v707 = vld.sshfl [vmem:[#allocation1 + $0x20] sm:$0xff pattern:$0x73625140]
  %708 = vst [vmem:[#allocation1] ss:$4 sm:$0xff] %v157
  %709 = vst [vmem:[%s542] ss:$4 sm:$0xff] %v158
  %710 = vst [vmem:[%s544] ss:$4 sm:$0xff] %v159
  %711 = vst [vmem:[%s546] ss:$4 sm:$0xff] %v160
  %712 = vst [vmem:[%s548] ss:$4 sm:$0xff] %v161
  %713 = vst [vmem:[%s550] ss:$4 sm:$0xff] %v162
  %714 = vst [vmem:[%s552] ss:$4 sm:$0xff] %v163
  %715 = vst [vmem:[%s554] ss:$4 sm:$0xff] %v164
  %v716 = vld.sshfl [vmem:[#allocation1] sm:$0xff pattern:$0x73625140]
  %v717 = vld.sshfl [vmem:[#allocation1 + $0x20] sm:$0xff pattern:$0x73625140]
  %718 = vst [vmem:[#allocation1] ss:$4 sm:$0xff] %v165
  %719 = vst [vmem:[%s542] ss:$4 sm:$0xff] %v166
  %720 = vst [vmem:[%s544] ss:$4 sm:$0xff] %v167
  %721 = vst [vmem:[%s546] ss:$4 sm:$0xff] %v168
  %722 = vst [vmem:[%s548] ss:$4 sm:$0xff] %v169
  %723 = vst [vmem:[%s550] ss:$4 sm:$0xff] %v170
  %724 = vst [vmem:[%s552] ss:$4 sm:$0xff] %v171
  %725 = vst [vmem:[%s554] ss:$4 sm:$0xff] %v172
  %v726 = vld.sshfl [vmem:[#allocation1] sm:$0xff pattern:$0x73625140]
  %v727 = vld.sshfl [vmem:[#allocation1 + $0x20] sm:$0xff pattern:$0x73625140]
  %728 = vst [vmem:[#allocation1] ss:$4 sm:$0xff] %v173
  %729 = vst [vmem:[%s542] ss:$4 sm:$0xff] %v174
  %730 = vst [vmem:[%s544] ss:$4 sm:$0xff] %v175
  %731 = vst [vmem:[%s546] ss:$4 sm:$0xff] %v176
  %732 = vst [vmem:[%s548] ss:$4 sm:$0xff] %v177
  %733 = vst [vmem:[%s550] ss:$4 sm:$0xff] %v178
  %734 = vst [vmem:[%s552] ss:$4 sm:$0xff] %v179
  %735 = vst [vmem:[%s554] ss:$4 sm:$0xff] %v180
  %v736 = vld.sshfl [vmem:[#allocation1] sm:$0xff pattern:$0x73625140]
  %v737 = vld.sshfl [vmem:[#allocation1 + $0x20] sm:$0xff pattern:$0x73625140]
  %738 = vst [vmem:[#allocation1] ss:$4 sm:$0xff] %v181
  %739 = vst [vmem:[%s542] ss:$4 sm:$0xff] %v182
  %740 = vst [vmem:[%s544] ss:$4 sm:$0xff] %v183
  %741 = vst [vmem:[%s546] ss:$4 sm:$0xff] %v184
  %742 = vst [vmem:[%s548] ss:$4 sm:$0xff] %v185
  %743 = vst [vmem:[%s550] ss:$4 sm:$0xff] %v186
  %744 = vst [vmem:[%s552] ss:$4 sm:$0xff] %v187
  %745 = vst [vmem:[%s554] ss:$4 sm:$0xff] %v188
  %v746 = vld.sshfl [vmem:[#allocation1] sm:$0xff pattern:$0x73625140]
  %v747 = vld.sshfl [vmem:[#allocation1 + $0x20] sm:$0xff pattern:$0x73625140]
  %748 = vst [vmem:[#allocation1] ss:$4 sm:$0xff] %v189
  %749 = vst [vmem:[%s542] ss:$4 sm:$0xff] %v190
  %750 = vst [vmem:[%s544] ss:$4 sm:$0xff] %v191
  %751 = vst [vmem:[%s546] ss:$4 sm:$0xff] %v192
  %752 = vst [vmem:[%s548] ss:$4 sm:$0xff] %v193
  %753 = vst [vmem:[%s550] ss:$4 sm:$0xff] %v194
  %754 = vst [vmem:[%s552] ss:$4 sm:$0xff] %v195
  %755 = vst [vmem:[%s554] ss:$4 sm:$0xff] %v196
  %v756 = vld.sshfl [vmem:[#allocation1] sm:$0xff pattern:$0x73625140]
  %v757 = vld.sshfl [vmem:[#allocation1 + $0x20] sm:$0xff pattern:$0x73625140]
  %758 = vst [vmem:[#allocation1] ss:$4 sm:$0xff] %v197
  %759 = vst [vmem:[%s542] ss:$4 sm:$0xff] %v198
  %760 = vst [vmem:[%s544] ss:$4 sm:$0xff] %v199
  %761 = vst [vmem:[%s546] ss:$4 sm:$0xff] %v200
  %762 = vst [vmem:[%s548] ss:$4 sm:$0xff] %v201
  %763 = vst [vmem:[%s550] ss:$4 sm:$0xff] %v202
  %764 = vst [vmem:[%s552] ss:$4 sm:$0xff] %v203
  %765 = vst [vmem:[%s554] ss:$4 sm:$0xff] %v204
  %v766 = vld.sshfl [vmem:[#allocation1] sm:$0xff pattern:$0x73625140]
  %v767 = vld.sshfl [vmem:[#allocation1 + $0x20] sm:$0xff pattern:$0x73625140]
  %768 = vst [vmem:[#allocation1] ss:$4 sm:$0xff] %v205
  %769 = vst [vmem:[%s542] ss:$4 sm:$0xff] %v206
  %770 = vst [vmem:[%s544] ss:$4 sm:$0xff] %v207
  %771 = vst [vmem:[%s546] ss:$4 sm:$0xff] %v208
  %772 = vst [vmem:[%s548] ss:$4 sm:$0xff] %v209
  %773 = vst [vmem:[%s550] ss:$4 sm:$0xff] %v210
  %774 = vst [vmem:[%s552] ss:$4 sm:$0xff] %v211
  %775 = vst [vmem:[%s554] ss:$4 sm:$0xff] %v212
  %v776 = vld.sshfl [vmem:[#allocation1] sm:$0xff pattern:$0x73625140]
  %v777 = vld.sshfl [vmem:[#allocation1 + $0x20] sm:$0xff pattern:$0x73625140]
  %778 = vst [vmem:[#allocation1] ss:$4 sm:$0xff] %v213
  %779 = vst [vmem:[%s542] ss:$4 sm:$0xff] %v214
  %780 = vst [vmem:[%s544] ss:$4 sm:$0xff] %v215
  %781 = vst [vmem:[%s546] ss:$4 sm:$0xff] %v216
  %782 = vst [vmem:[%s548] ss:$4 sm:$0xff] %v217
  %783 = vst [vmem:[%s550] ss:$4 sm:$0xff] %v218
  %784 = vst [vmem:[%s552] ss:$4 sm:$0xff] %v219
  %785 = vst [vmem:[%s554] ss:$4 sm:$0xff] %v220
  %v786 = vld.sshfl [vmem:[#allocation1] sm:$0xff pattern:$0x73625140]
  %v787 = vld.sshfl [vmem:[#allocation1 + $0x20] sm:$0xff pattern:$0x73625140]
  %788 = vst [vmem:[#allocation1] ss:$4 sm:$0xff] %v221
  %789 = vst [vmem:[%s542] ss:$4 sm:$0xff] %v222
  %790 = vst [vmem:[%s544] ss:$4 sm:$0xff] %v223
  %791 = vst [vmem:[%s546] ss:$4 sm:$0xff] %v224
  %792 = vst [vmem:[%s548] ss:$4 sm:$0xff] %v225
  %793 = vst [vmem:[%s550] ss:$4 sm:$0xff] %v226
  %794 = vst [vmem:[%s552] ss:$4 sm:$0xff] %v227
  %795 = vst [vmem:[%s554] ss:$4 sm:$0xff] %v228
  %v796 = vld.sshfl [vmem:[#allocation1] sm:$0xff pattern:$0x73625140]
  %v797 = vld.sshfl [vmem:[#allocation1 + $0x20] sm:$0xff pattern:$0x73625140]
  %798 = vst [vmem:[#allocation1] ss:$4 sm:$0xff] %v229
  %799 = vst [vmem:[%s542] ss:$4 sm:$0xff] %v230
  %800 = vst [vmem:[%s544] ss:$4 sm:$0xff] %v231
  %801 = vst [vmem:[%s546] ss:$4 sm:$0xff] %v232
  %802 = vst [vmem:[%s548] ss:$4 sm:$0xff] %v233
  %803 = vst [vmem:[%s550] ss:$4 sm:$0xff] %v234
  %804 = vst [vmem:[%s552] ss:$4 sm:$0xff] %v235
  %805 = vst [vmem:[%s554] ss:$4 sm:$0xff] %v236
  %v806 = vld.sshfl [vmem:[#allocation1] sm:$0xff pattern:$0x73625140]
  %v807 = vld.sshfl [vmem:[#allocation1 + $0x20] sm:$0xff pattern:$0x73625140]
  %808 = vst [vmem:[#allocation1] ss:$4 sm:$0xff] %v237
  %809 = vst [vmem:[%s542] ss:$4 sm:$0xff] %v238
  %810 = vst [vmem:[%s544] ss:$4 sm:$0xff] %v239
  %811 = vst [vmem:[%s546] ss:$4 sm:$0xff] %v240
  %812 = vst [vmem:[%s548] ss:$4 sm:$0xff] %v241
  %813 = vst [vmem:[%s550] ss:$4 sm:$0xff] %v242
  %814 = vst [vmem:[%s552] ss:$4 sm:$0xff] %v243
  %815 = vst [vmem:[%s554] ss:$4 sm:$0xff] %v244
  %v816 = vld.sshfl [vmem:[#allocation1] sm:$0xff pattern:$0x73625140]
  %v817 = vld.sshfl [vmem:[#allocation1 + $0x20] sm:$0xff pattern:$0x73625140]
  %818 = vst [vmem:[#allocation1] ss:$4 sm:$0xff] %v245
  %819 = vst [vmem:[%s542] ss:$4 sm:$0xff] %v246
  %820 = vst [vmem:[%s544] ss:$4 sm:$0xff] %v247
  %821 = vst [vmem:[%s546] ss:$4 sm:$0xff] %v248
  %822 = vst [vmem:[%s548] ss:$4 sm:$0xff] %v249
  %823 = vst [vmem:[%s550] ss:$4 sm:$0xff] %v250
  %824 = vst [vmem:[%s552] ss:$4 sm:$0xff] %v251
  %825 = vst [vmem:[%s554] ss:$4 sm:$0xff] %v252
  %v826 = vld.sshfl [vmem:[#allocation1] sm:$0xff pattern:$0x73625140]
  %v827 = vld.sshfl [vmem:[#allocation1 + $0x20] sm:$0xff pattern:$0x73625140]
  %828 = vst [vmem:[#allocation1] ss:$4 sm:$0xff] %v253
  %829 = vst [vmem:[%s542] ss:$4 sm:$0xff] %v254
  %830 = vst [vmem:[%s544] ss:$4 sm:$0xff] %v255
  %831 = vst [vmem:[%s546] ss:$4 sm:$0xff] %v256
  %832 = vst [vmem:[%s548] ss:$4 sm:$0xff] %v257
  %833 = vst [vmem:[%s550] ss:$4 sm:$0xff] %v258
  %834 = vst [vmem:[%s552] ss:$4 sm:$0xff] %v259
  %835 = vst [vmem:[%s554] ss:$4 sm:$0xff] %v260
  %v836 = vld.sshfl [vmem:[#allocation1] sm:$0xff pattern:$0x73625140]
  %v837 = vld.sshfl [vmem:[#allocation1 + $0x20] sm:$0xff pattern:$0x73625140]
  %838 = vst [vmem:[#allocation1] ss:$4 sm:$0xff] %v261
  %839 = vst [vmem:[%s542] ss:$4 sm:$0xff] %v262
  %840 = vst [vmem:[%s544] ss:$4 sm:$0xff] %v263
  %841 = vst [vmem:[%s546] ss:$4 sm:$0xff] %v264
  %842 = vst [vmem:[%s548] ss:$4 sm:$0xff] %v265
  %843 = vst [vmem:[%s550] ss:$4 sm:$0xff] %v266
  %844 = vst [vmem:[%s552] ss:$4 sm:$0xff] %v267
  %845 = vst [vmem:[%s554] ss:$4 sm:$0xff] %v268
  %v846 = vld.sshfl [vmem:[#allocation1] sm:$0xff pattern:$0x73625140]
  %v847 = vld.sshfl [vmem:[#allocation1 + $0x20] sm:$0xff pattern:$0x73625140]
  %848 = vst [vmem:[#allocation1] ss:$4 sm:$0xff] %v269
  %849 = vst [vmem:[%s542] ss:$4 sm:$0xff] %v270
  %850 = vst [vmem:[%s544] ss:$4 sm:$0xff] %v271
  %851 = vst [vmem:[%s546] ss:$4 sm:$0xff] %v272
  %852 = vst [vmem:[%s548] ss:$4 sm:$0xff] %v273
  %853 = vst [vmem:[%s550] ss:$4 sm:$0xff] %v274
  %854 = vst [vmem:[%s552] ss:$4 sm:$0xff] %v275
  %855 = vst [vmem:[%s554] ss:$4 sm:$0xff] %v276
  %v856 = vld.sshfl [vmem:[#allocation1] sm:$0xff pattern:$0x73625140]
  %v857 = vld.sshfl [vmem:[#allocation1 + $0x20] sm:$0xff pattern:$0x73625140]
  %858 = vst [vmem:[#allocation1] ss:$4 sm:$0xff] %v277
  %859 = vst [vmem:[%s542] ss:$4 sm:$0xff] %v278
  %860 = vst [vmem:[%s544] ss:$4 sm:$0xff] %v279
  %861 = vst [vmem:[%s546] ss:$4 sm:$0xff] %v280
  %862 = vst [vmem:[%s548] ss:$4 sm:$0xff] %v281
  %863 = vst [vmem:[%s550] ss:$4 sm:$0xff] %v282
  %864 = vst [vmem:[%s552] ss:$4 sm:$0xff] %v283
  %865 = vst [vmem:[%s554] ss:$4 sm:$0xff] %v284
  %v866 = vld.sshfl [vmem:[#allocation1] sm:$0xff pattern:$0x73625140]
  %v867 = vld.sshfl [vmem:[#allocation1 + $0x20] sm:$0xff pattern:$0x73625140]
  %v932 = vpack.c.bf16 %v557, %v556
  %v933 = vpack.c.bf16 %v567, %v566
  %v934 = vpack.c.bf16 %v577, %v576
  %v935 = vpack.c.bf16 %v587, %v586
  %v936 = vpack.c.bf16 %v597, %v596
  %v937 = vpack.c.bf16 %v607, %v606
  %v938 = vpack.c.bf16 %v617, %v616
  %v939 = vpack.c.bf16 %v627, %v626
  %v940 = vpack.c.bf16 %v637, %v636
  %v941 = vpack.c.bf16 %v647, %v646
  %v942 = vpack.c.bf16 %v657, %v656
  %v943 = vpack.c.bf16 %v667, %v666
  %v944 = vpack.c.bf16 %v677, %v676
  %v945 = vpack.c.bf16 %v687, %v686
  %v946 = vpack.c.bf16 %v697, %v696
  %v947 = vpack.c.bf16 %v707, %v706
  %v948 = vpack.c.bf16 %v717, %v716
  %v949 = vpack.c.bf16 %v727, %v726
  %v950 = vpack.c.bf16 %v737, %v736
  %v951 = vpack.c.bf16 %v747, %v746
  %v952 = vpack.c.bf16 %v757, %v756
  %v953 = vpack.c.bf16 %v767, %v766
  %v954 = vpack.c.bf16 %v777, %v776
  %v955 = vpack.c.bf16 %v787, %v786
  %v956 = vpack.c.bf16 %v797, %v796
  %v957 = vpack.c.bf16 %v807, %v806
  %v958 = vpack.c.bf16 %v817, %v816
  %v959 = vpack.c.bf16 %v827, %v826
  %v960 = vpack.c.bf16 %v837, %v836
  %v961 = vpack.c.bf16 %v847, %v846
  %v962 = vpack.c.bf16 %v857, %v856
  %v963 = vpack.c.bf16 %v867, %v866
  %v964 = vld [vmem:[%s1] sm:$0xf]
  %v965 = vld [vmem:[%s1 + $0x4] sm:$0xf]
  %v966 = vld [vmem:[%s1 + $0x8] sm:$0xf]
  %v967 = vld [vmem:[%s1 + $0xc] sm:$0xf]
  %v968 = vld [vmem:[%s1 + $0x10] sm:$0xf]
  %v969 = vld [vmem:[%s1 + $0x14] sm:$0xf]
  %v970 = vld [vmem:[%s1 + $0x18] sm:$0xf]
  %v971 = vld [vmem:[%s1 + $0x1c] sm:$0xf]
  %v972 = vld [vmem:[%s1 + $0x20] sm:$0xf]
  %v973 = vld [vmem:[%s1 + $0x24] sm:$0xf]
  %v974 = vld [vmem:[%s1 + $0x28] sm:$0xf]
  %v975 = vld [vmem:[%s1 + $0x2c] sm:$0xf]
  %v976 = vld [vmem:[%s1 + $0x30] sm:$0xf]
  %v977 = vld [vmem:[%s1 + $0x34] sm:$0xf]
  %v978 = vld [vmem:[%s1 + $0x38] sm:$0xf]
  %v979 = vld [vmem:[%s1 + $0x3c] sm:$0xf]
  %v980 = vld [vmem:[%s2] sm:$0x1]
  %v982 = vperm.slane %v980, 0
  %v1000 = vunpack.c.l.b16 %v964
  %v1001 = vunpack.c.l.b16 %v965
  %v1002 = vunpack.c.l.b16 %v966
  %v1003 = vunpack.c.l.b16 %v967
  %v1004 = vunpack.c.l.b16 %v968
  %v1005 = vunpack.c.l.b16 %v969
  %v1006 = vunpack.c.l.b16 %v970
  %v1007 = vunpack.c.l.b16 %v971
  %v1008 = vunpack.c.l.b16 %v972
  %v1009 = vunpack.c.l.b16 %v973
  %v1010 = vunpack.c.l.b16 %v974
  %v1011 = vunpack.c.l.b16 %v975
  %v1012 = vunpack.c.l.b16 %v976
  %v1013 = vunpack.c.l.b16 %v977
  %v1014 = vunpack.c.l.b16 %v978
  %v1015 = vunpack.c.l.b16 %v979
  %v1016 = vpack.c.b16 %v1001, %v1000
  %v1017 = vpack.c.b16 %v1003, %v1002
  %v1018 = vpack.c.b16 %v1005, %v1004
  %v1019 = vpack.c.b16 %v1007, %v1006
  %v1020 = vpack.c.b16 %v1009, %v1008
  %v1021 = vpack.c.b16 %v1011, %v1010
  %v1022 = vpack.c.b16 %v1013, %v1012
  %v1023 = vpack.c.b16 %v1015, %v1014
  %1032 = vmatpush.bf16.msra.mxu0 %v1023
  %1033 = vmatpush.bf16.msra.mxu0 %v1022
  %1034 = vmatpush.bf16.msra.mxu0 %v1021
  %1035 = vmatpush.bf16.msra.mxu0 %v1020
  %1036 = vmatpush.bf16.msra.mxu0 %v1019
  %1037 = vmatpush.bf16.msra.mxu0 %v1018
  %1038 = vmatpush.bf16.msra.mxu0 %v1017
  %1039 = vmatpush.bf16.msra.mxu0 %v1016
  %1040 = vmatmul.bf16.gmra.mxu0 %v932
  %v1041 = vpop.f32.mrf.mxu0
  %v1042 = vadd.f32 %v982, %v1041
  %v1043 = vpop.f32.mrf.mxu0
  %v1044 = vadd.f32 %v982, %v1043
  %1045 = vmatmul.bf16.gmra.mxu0 %v933
  %v1046 = vpop.f32.mrf.mxu0
  %v1047 = vadd.f32 %v982, %v1046
  %v1048 = vpop.f32.mrf.mxu0
  %v1049 = vadd.f32 %v982, %v1048
  %1050 = vmatmul.bf16.gmra.mxu0 %v934
  %v1051 = vpop.f32.mrf.mxu0
  %v1052 = vadd.f32 %v982, %v1051
  %v1053 = vpop.f32.mrf.mxu0
  %v1054 = vadd.f32 %v982, %v1053
  %1055 = vmatmul.bf16.gmra.mxu0 %v935
  %v1056 = vpop.f32.mrf.mxu0
  %v1057 = vadd.f32 %v982, %v1056
  %v1058 = vpop.f32.mrf.mxu0
  %v1059 = vadd.f32 %v982, %v1058
  %1060 = vmatmul.bf16.gmra.mxu0 %v936
  %v1061 = vpop.f32.mrf.mxu0
  %v1062 = vadd.f32 %v982, %v1061
  %v1063 = vpop.f32.mrf.mxu0
  %v1064 = vadd.f32 %v982, %v1063
  %1065 = vmatmul.bf16.gmra.mxu0 %v937
  %v1066 = vpop.f32.mrf.mxu0
  %v1067 = vadd.f32 %v982, %v1066
  %v1068 = vpop.f32.mrf.mxu0
  %v1069 = vadd.f32 %v982, %v1068
  %1070 = vmatmul.bf16.gmra.mxu0 %v938
  %v1071 = vpop.f32.mrf.mxu0
  %v1072 = vadd.f32 %v982, %v1071
  %v1073 = vpop.f32.mrf.mxu0
  %v1074 = vadd.f32 %v982, %v1073
  %1075 = vmatmul.bf16.gmra.mxu0 %v939
  %v1076 = vpop.f32.mrf.mxu0
  %v1077 = vadd.f32 %v982, %v1076
  %v1078 = vpop.f32.mrf.mxu0
  %v1079 = vadd.f32 %v982, %v1078
  %1080 = vmatmul.bf16.gmra.mxu0 %v940
  %v1081 = vpop.f32.mrf.mxu0
  %v1082 = vadd.f32 %v982, %v1081
  %v1083 = vpop.f32.mrf.mxu0
  %v1084 = vadd.f32 %v982, %v1083
  %1085 = vmatmul.bf16.gmra.mxu0 %v941
  %v1086 = vpop.f32.mrf.mxu0
  %v1087 = vadd.f32 %v982, %v1086
  %v1088 = vpop.f32.mrf.mxu0
  %v1089 = vadd.f32 %v982, %v1088
  %1090 = vmatmul.bf16.gmra.mxu0 %v942
  %v1091 = vpop.f32.mrf.mxu0
  %v1092 = vadd.f32 %v982, %v1091
  %v1093 = vpop.f32.mrf.mxu0
  %v1094 = vadd.f32 %v982, %v1093
  %1095 = vmatmul.bf16.gmra.mxu0 %v943
  %v1096 = vpop.f32.mrf.mxu0
  %v1097 = vadd.f32 %v982, %v1096
  %v1098 = vpop.f32.mrf.mxu0
  %v1099 = vadd.f32 %v982, %v1098
  %1100 = vmatmul.bf16.gmra.mxu0 %v944
  %v1101 = vpop.f32.mrf.mxu0
  %v1102 = vadd.f32 %v982, %v1101
  %v1103 = vpop.f32.mrf.mxu0
  %v1104 = vadd.f32 %v982, %v1103
  %1105 = vmatmul.bf16.gmra.mxu0 %v945
  %v1106 = vpop.f32.mrf.mxu0
  %v1107 = vadd.f32 %v982, %v1106
  %v1108 = vpop.f32.mrf.mxu0
  %v1109 = vadd.f32 %v982, %v1108
  %1110 = vmatmul.bf16.gmra.mxu0 %v946
  %v1111 = vpop.f32.mrf.mxu0
  %v1112 = vadd.f32 %v982, %v1111
  %v1113 = vpop.f32.mrf.mxu0
  %v1114 = vadd.f32 %v982, %v1113
  %1115 = vmatmul.bf16.gmra.mxu0 %v947
  %v1116 = vpop.f32.mrf.mxu0
  %v1117 = vadd.f32 %v982, %v1116
  %v1118 = vpop.f32.mrf.mxu0
  %v1119 = vadd.f32 %v982, %v1118
  %1120 = vmatmul.bf16.gmra.mxu0 %v948
  %v1121 = vpop.f32.mrf.mxu0
  %v1122 = vadd.f32 %v982, %v1121
  %v1123 = vpop.f32.mrf.mxu0
  %v1124 = vadd.f32 %v982, %v1123
  %1125 = vmatmul.bf16.gmra.mxu0 %v949
  %v1126 = vpop.f32.mrf.mxu0
  %v1127 = vadd.f32 %v982, %v1126
  %v1128 = vpop.f32.mrf.mxu0
  %v1129 = vadd.f32 %v982, %v1128
  %1130 = vmatmul.bf16.gmra.mxu0 %v950
  %v1131 = vpop.f32.mrf.mxu0
  %v1132 = vadd.f32 %v982, %v1131
  %v1133 = vpop.f32.mrf.mxu0
  %v1134 = vadd.f32 %v982, %v1133
  %1135 = vmatmul.bf16.gmra.mxu0 %v951
  %v1136 = vpop.f32.mrf.mxu0
  %v1137 = vadd.f32 %v982, %v1136
  %v1138 = vpop.f32.mrf.mxu0
  %v1139 = vadd.f32 %v982, %v1138
  %1140 = vmatmul.bf16.gmra.mxu0 %v952
  %v1141 = vpop.f32.mrf.mxu0
  %v1142 = vadd.f32 %v982, %v1141
  %v1143 = vpop.f32.mrf.mxu0
  %v1144 = vadd.f32 %v982, %v1143
  %1145 = vmatmul.bf16.gmra.mxu0 %v953
  %v1146 = vpop.f32.mrf.mxu0
  %v1147 = vadd.f32 %v982, %v1146
  %v1148 = vpop.f32.mrf.mxu0
  %v1149 = vadd.f32 %v982, %v1148
  %1150 = vmatmul.bf16.gmra.mxu0 %v954
  %v1151 = vpop.f32.mrf.mxu0
  %v1152 = vadd.f32 %v982, %v1151
  %v1153 = vpop.f32.mrf.mxu0
  %v1154 = vadd.f32 %v982, %v1153
  %1155 = vmatmul.bf16.gmra.mxu0 %v955
  %v1156 = vpop.f32.mrf.mxu0
  %v1157 = vadd.f32 %v982, %v1156
  %v1158 = vpop.f32.mrf.mxu0
  %v1159 = vadd.f32 %v982, %v1158
  %1160 = vmatmul.bf16.gmra.mxu0 %v956
  %v1161 = vpop.f32.mrf.mxu0
  %v1162 = vadd.f32 %v982, %v1161
  %v1163 = vpop.f32.mrf.mxu0
  %v1164 = vadd.f32 %v982, %v1163
  %1165 = vmatmul.bf16.gmra.mxu0 %v957
  %v1166 = vpop.f32.mrf.mxu0
  %v1167 = vadd.f32 %v982, %v1166
  %v1168 = vpop.f32.mrf.mxu0
  %v1169 = vadd.f32 %v982, %v1168
  %1170 = vmatmul.bf16.gmra.mxu0 %v958
  %v1171 = vpop.f32.mrf.mxu0
  %v1172 = vadd.f32 %v982, %v1171
  %v1173 = vpop.f32.mrf.mxu0
  %v1174 = vadd.f32 %v982, %v1173
  %1175 = vmatmul.bf16.gmra.mxu0 %v959
  %v1176 = vpop.f32.mrf.mxu0
  %v1177 = vadd.f32 %v982, %v1176
  %v1178 = vpop.f32.mrf.mxu0
  %v1179 = vadd.f32 %v982, %v1178
  %1180 = vmatmul.bf16.gmra.mxu0 %v960
  %v1181 = vpop.f32.mrf.mxu0
  %v1182 = vadd.f32 %v982, %v1181
  %v1183 = vpop.f32.mrf.mxu0
  %v1184 = vadd.f32 %v982, %v1183
  %1185 = vmatmul.bf16.gmra.mxu0 %v961
  %v1186 = vpop.f32.mrf.mxu0
  %v1187 = vadd.f32 %v982, %v1186
  %v1188 = vpop.f32.mrf.mxu0
  %v1189 = vadd.f32 %v982, %v1188
  %1190 = vmatmul.bf16.gmra.mxu0 %v962
  %v1191 = vpop.f32.mrf.mxu0
  %v1192 = vadd.f32 %v982, %v1191
  %v1193 = vpop.f32.mrf.mxu0
  %v1194 = vadd.f32 %v982, %v1193
  %1195 = vmatmul.bf16.gmra.mxu0 %v963
  %v1196 = vpop.f32.mrf.mxu0
  %v1197 = vadd.f32 %v982, %v1196
  %v1198 = vpop.f32.mrf.mxu0
  %v1199 = vadd.f32 %v982, %v1198
  %1200 = vdwg.mxu0
  %v1201 = vmax.f32 %v1042, 0.0
  %v1202 = vmax.f32 %v1044, 0.0
  %v1203 = vmax.f32 %v1047, 0.0
  %v1204 = vmax.f32 %v1049, 0.0
  %v1205 = vmax.f32 %v1052, 0.0
  %v1206 = vmax.f32 %v1054, 0.0
  %v1207 = vmax.f32 %v1057, 0.0
  %v1208 = vmax.f32 %v1059, 0.0
  %v1209 = vmax.f32 %v1062, 0.0
  %v1210 = vmax.f32 %v1064, 0.0
  %v1211 = vmax.f32 %v1067, 0.0
  %v1212 = vmax.f32 %v1069, 0.0
  %v1213 = vmax.f32 %v1072, 0.0
  %v1214 = vmax.f32 %v1074, 0.0
  %v1215 = vmax.f32 %v1077, 0.0
  %v1216 = vmax.f32 %v1079, 0.0
  %v1217 = vmax.f32 %v1082, 0.0
  %v1218 = vmax.f32 %v1084, 0.0
  %v1219 = vmax.f32 %v1087, 0.0
  %v1220 = vmax.f32 %v1089, 0.0
  %v1221 = vmax.f32 %v1092, 0.0
  %v1222 = vmax.f32 %v1094, 0.0
  %v1223 = vmax.f32 %v1097, 0.0
  %v1224 = vmax.f32 %v1099, 0.0
  %v1225 = vmax.f32 %v1102, 0.0
  %v1226 = vmax.f32 %v1104, 0.0
  %v1227 = vmax.f32 %v1107, 0.0
  %v1228 = vmax.f32 %v1109, 0.0
  %v1229 = vmax.f32 %v1112, 0.0
  %v1230 = vmax.f32 %v1114, 0.0
  %v1231 = vmax.f32 %v1117, 0.0
  %v1232 = vmax.f32 %v1119, 0.0
  %v1233 = vmax.f32 %v1122, 0.0
  %v1234 = vmax.f32 %v1124, 0.0
  %v1235 = vmax.f32 %v1127, 0.0
  %v1236 = vmax.f32 %v1129, 0.0
  %v1237 = vmax.f32 %v1132, 0.0
  %v1238 = vmax.f32 %v1134, 0.0
  %v1239 = vmax.f32 %v1137, 0.0
  %v1240 = vmax.f32 %v1139, 0.0
  %v1241 = vmax.f32 %v1142, 0.0
  %v1242 = vmax.f32 %v1144, 0.0
  %v1243 = vmax.f32 %v1147, 0.0
  %v1244 = vmax.f32 %v1149, 0.0
  %v1245 = vmax.f32 %v1152, 0.0
  %v1246 = vmax.f32 %v1154, 0.0
  %v1247 = vmax.f32 %v1157, 0.0
  %v1248 = vmax.f32 %v1159, 0.0
  %v1249 = vmax.f32 %v1162, 0.0
  %v1250 = vmax.f32 %v1164, 0.0
  %v1251 = vmax.f32 %v1167, 0.0
  %v1252 = vmax.f32 %v1169, 0.0
  %v1253 = vmax.f32 %v1172, 0.0
  %v1254 = vmax.f32 %v1174, 0.0
  %v1255 = vmax.f32 %v1177, 0.0
  %v1256 = vmax.f32 %v1179, 0.0
  %v1257 = vmax.f32 %v1182, 0.0
  %v1258 = vmax.f32 %v1184, 0.0
  %v1259 = vmax.f32 %v1187, 0.0
  %v1260 = vmax.f32 %v1189, 0.0
  %v1261 = vmax.f32 %v1192, 0.0
  %v1262 = vmax.f32 %v1194, 0.0
  %v1263 = vmax.f32 %v1197, 0.0
  %v1264 = vmax.f32 %v1199, 0.0
  %v1329 = vrot.slane %v1201, 2
  %v1330 = vrot.slane %v1201, 4
  %v1331 = vrot.slane %v1201, 6
  %v1332 = vrot.slane %v1202, 2
  %v1333 = vrot.slane %v1202, 4
  %v1334 = vrot.slane %v1202, 6
  %v1335 = vrot.slane %v1203, 2
  %v1336 = vrot.slane %v1203, 4
  %v1337 = vrot.slane %v1203, 6
  %v1338 = vrot.slane %v1204, 2
  %v1339 = vrot.slane %v1204, 4
  %v1340 = vrot.slane %v1204, 6
  %v1341 = vrot.slane %v1205, 2
  %v1342 = vrot.slane %v1205, 4
  %v1343 = vrot.slane %v1205, 6
  %v1344 = vrot.slane %v1206, 2
  %v1345 = vrot.slane %v1206, 4
  %v1346 = vrot.slane %v1206, 6
  %v1347 = vrot.slane %v1207, 2
  %v1348 = vrot.slane %v1207, 4
  %v1349 = vrot.slane %v1207, 6
  %v1350 = vrot.slane %v1208, 2
  %v1351 = vrot.slane %v1208, 4
  %v1352 = vrot.slane %v1208, 6
  %v1353 = vrot.slane %v1209, 2
  %v1354 = vrot.slane %v1209, 4
  %v1355 = vrot.slane %v1209, 6
  %v1356 = vrot.slane %v1210, 2
  %v1357 = vrot.slane %v1210, 4
  %v1358 = vrot.slane %v1210, 6
  %v1359 = vrot.slane %v1211, 2
  %v1360 = vrot.slane %v1211, 4
  %v1361 = vrot.slane %v1211, 6
  %v1362 = vrot.slane %v1212, 2
  %v1363 = vrot.slane %v1212, 4
  %v1364 = vrot.slane %v1212, 6
  %v1365 = vrot.slane %v1213, 2
  %v1366 = vrot.slane %v1213, 4
  %v1367 = vrot.slane %v1213, 6
  %v1368 = vrot.slane %v1214, 2
  %v1369 = vrot.slane %v1214, 4
  %v1370 = vrot.slane %v1214, 6
  %v1371 = vrot.slane %v1215, 2
  %v1372 = vrot.slane %v1215, 4
  %v1373 = vrot.slane %v1215, 6
  %v1374 = vrot.slane %v1216, 2
  %v1375 = vrot.slane %v1216, 4
  %v1376 = vrot.slane %v1216, 6
  %v1377 = vrot.slane %v1217, 2
  %v1378 = vrot.slane %v1217, 4
  %v1379 = vrot.slane %v1217, 6
  %v1380 = vrot.slane %v1218, 2
  %v1381 = vrot.slane %v1218, 4
  %v1382 = vrot.slane %v1218, 6
  %v1383 = vrot.slane %v1219, 2
  %v1384 = vrot.slane %v1219, 4
  %v1385 = vrot.slane %v1219, 6
  %v1386 = vrot.slane %v1220, 2
  %v1387 = vrot.slane %v1220, 4
  %v1388 = vrot.slane %v1220, 6
  %v1389 = vrot.slane %v1221, 2
  %v1390 = vrot.slane %v1221, 4
  %v1391 = vrot.slane %v1221, 6
  %v1392 = vrot.slane %v1222, 2
  %v1393 = vrot.slane %v1222, 4
  %v1394 = vrot.slane %v1222, 6
  %v1395 = vrot.slane %v1223, 2
  %v1396 = vrot.slane %v1223, 4
  %v1397 = vrot.slane %v1223, 6
  %v1398 = vrot.slane %v1224, 2
  %v1399 = vrot.slane %v1224, 4
  %v1400 = vrot.slane %v1224, 6
  %v1401 = vrot.slane %v1225, 2
  %v1402 = vrot.slane %v1225, 4
  %v1403 = vrot.slane %v1225, 6
  %v1404 = vrot.slane %v1226, 2
  %v1405 = vrot.slane %v1226, 4
  %v1406 = vrot.slane %v1226, 6
  %v1407 = vrot.slane %v1227, 2
  %v1408 = vrot.slane %v1227, 4
  %v1409 = vrot.slane %v1227, 6
  %v1410 = vrot.slane %v1228, 2
  %v1411 = vrot.slane %v1228, 4
  %v1412 = vrot.slane %v1228, 6
  %v1413 = vrot.slane %v1229, 2
  %v1414 = vrot.slane %v1229, 4
  %v1415 = vrot.slane %v1229, 6
  %v1416 = vrot.slane %v1230, 2
  %v1417 = vrot.slane %v1230, 4
  %v1418 = vrot.slane %v1230, 6
  %v1419 = vrot.slane %v1231, 2
  %v1420 = vrot.slane %v1231, 4
  %v1421 = vrot.slane %v1231, 6
  %v1422 = vrot.slane %v1232, 2
  %v1423 = vrot.slane %v1232, 4
  %v1424 = vrot.slane %v1232, 6
  %v1425 = vrot.slane %v1233, 2
  %v1426 = vrot.slane %v1233, 4
  %v1427 = vrot.slane %v1233, 6
  %v1428 = vrot.slane %v1234, 2
  %v1429 = vrot.slane %v1234, 4
  %v1430 = vrot.slane %v1234, 6
  %v1431 = vrot.slane %v1235, 2
  %v1432 = vrot.slane %v1235, 4
  %v1433 = vrot.slane %v1235, 6
  %v1434 = vrot.slane %v1236, 2
  %v1435 = vrot.slane %v1236, 4
  %v1436 = vrot.slane %v1236, 6
  %v1437 = vrot.slane %v1237, 2
  %v1438 = vrot.slane %v1237, 4
  %v1439 = vrot.slane %v1237, 6
  %v1440 = vrot.slane %v1238, 2
  %v1441 = vrot.slane %v1238, 4
  %v1442 = vrot.slane %v1238, 6
  %v1443 = vrot.slane %v1239, 2
  %v1444 = vrot.slane %v1239, 4
  %v1445 = vrot.slane %v1239, 6
  %v1446 = vrot.slane %v1240, 2
  %v1447 = vrot.slane %v1240, 4
  %v1448 = vrot.slane %v1240, 6
  %v1449 = vrot.slane %v1241, 2
  %v1450 = vrot.slane %v1241, 4
  %v1451 = vrot.slane %v1241, 6
  %v1452 = vrot.slane %v1242, 2
  %v1453 = vrot.slane %v1242, 4
  %v1454 = vrot.slane %v1242, 6
  %v1455 = vrot.slane %v1243, 2
  %v1456 = vrot.slane %v1243, 4
  %v1457 = vrot.slane %v1243, 6
  %v1458 = vrot.slane %v1244, 2
  %v1459 = vrot.slane %v1244, 4
  %v1460 = vrot.slane %v1244, 6
  %v1461 = vrot.slane %v1245, 2
  %v1462 = vrot.slane %v1245, 4
  %v1463 = vrot.slane %v1245, 6
  %v1464 = vrot.slane %v1246, 2
  %v1465 = vrot.slane %v1246, 4
  %v1466 = vrot.slane %v1246, 6
  %v1467 = vrot.slane %v1247, 2
  %v1468 = vrot.slane %v1247, 4
  %v1469 = vrot.slane %v1247, 6
  %v1470 = vrot.slane %v1248, 2
  %v1471 = vrot.slane %v1248, 4
  %v1472 = vrot.slane %v1248, 6
  %v1473 = vrot.slane %v1249, 2
  %v1474 = vrot.slane %v1249, 4
  %v1475 = vrot.slane %v1249, 6
  %v1476 = vrot.slane %v1250, 2
  %v1477 = vrot.slane %v1250, 4
  %v1478 = vrot.slane %v1250, 6
  %v1479 = vrot.slane %v1251, 2
  %v1480 = vrot.slane %v1251, 4
  %v1481 = vrot.slane %v1251, 6
  %v1482 = vrot.slane %v1252, 2
  %v1483 = vrot.slane %v1252, 4
  %v1484 = vrot.slane %v1252, 6
  %v1485 = vrot.slane %v1253, 2
  %v1486 = vrot.slane %v1253, 4
  %v1487 = vrot.slane %v1253, 6
  %v1488 = vrot.slane %v1254, 2
  %v1489 = vrot.slane %v1254, 4
  %v1490 = vrot.slane %v1254, 6
  %v1491 = vrot.slane %v1255, 2
  %v1492 = vrot.slane %v1255, 4
  %v1493 = vrot.slane %v1255, 6
  %v1494 = vrot.slane %v1256, 2
  %v1495 = vrot.slane %v1256, 4
  %v1496 = vrot.slane %v1256, 6
  %v1497 = vrot.slane %v1257, 2
  %v1498 = vrot.slane %v1257, 4
  %v1499 = vrot.slane %v1257, 6
  %v1500 = vrot.slane %v1258, 2
  %v1501 = vrot.slane %v1258, 4
  %v1502 = vrot.slane %v1258, 6
  %v1503 = vrot.slane %v1259, 2
  %v1504 = vrot.slane %v1259, 4
  %v1505 = vrot.slane %v1259, 6
  %v1506 = vrot.slane %v1260, 2
  %v1507 = vrot.slane %v1260, 4
  %v1508 = vrot.slane %v1260, 6
  %v1509 = vrot.slane %v1261, 2
  %v1510 = vrot.slane %v1261, 4
  %v1511 = vrot.slane %v1261, 6
  %v1512 = vrot.slane %v1262, 2
  %v1513 = vrot.slane %v1262, 4
  %v1514 = vrot.slane %v1262, 6
  %v1515 = vrot.slane %v1263, 2
  %v1516 = vrot.slane %v1263, 4
  %v1517 = vrot.slane %v1263, 6
  %v1518 = vrot.slane %v1264, 2
  %v1519 = vrot.slane %v1264, 4
  %v1520 = vrot.slane %v1264, 6
  %vm1713 = vcmask 254976
  %1714 = vst.msk [vmem:[#allocation2] sm:$0x3] %vm1713, 0.0
  %1715 = vst.msk [vmem:[#allocation2 + $0x2] sm:$0x3] %vm1713, 0.0
  %1716 = vst.msk [vmem:[#allocation2 + $0x4] sm:$0x3] %vm1713, 0.0
  %1717 = vst.msk [vmem:[#allocation2 + $0x6] sm:$0x3] %vm1713, 0.0
  %1718 = vst.msk [vmem:[#allocation2 + $0x8] sm:$0x3] %vm1713, 0.0
  %1719 = vst.msk [vmem:[#allocation2 + $0xa] sm:$0x3] %vm1713, 0.0
  %1720 = vst.msk [vmem:[#allocation2 + $0xc] sm:$0x3] %vm1713, 0.0
  %1721 = vst.msk [vmem:[#allocation2 + $0xe] sm:$0x3] %vm1713, 0.0
  %1722 = vst.msk [vmem:[#allocation2 + $0x10] sm:$0x3] %vm1713, 0.0
  %1723 = vst.msk [vmem:[#allocation2 + $0x12] sm:$0x3] %vm1713, 0.0
  %1724 = vst.msk [vmem:[#allocation2 + $0x14] sm:$0x3] %vm1713, 0.0
  %1725 = vst.msk [vmem:[#allocation2 + $0x16] sm:$0x3] %vm1713, 0.0
  %1726 = vst.msk [vmem:[#allocation2 + $0x18] sm:$0x3] %vm1713, 0.0
  %1727 = vst.msk [vmem:[#allocation2 + $0x1a] sm:$0x3] %vm1713, 0.0
  %1728 = vst.msk [vmem:[#allocation2 + $0x1c] sm:$0x3] %vm1713, 0.0
  %1729 = vst.msk [vmem:[#allocation2 + $0x1e] sm:$0x3] %vm1713, 0.0
  %1730 = vst.msk [vmem:[#allocation2 + $0x20] sm:$0x3] %vm1713, 0.0
  %1731 = vst.msk [vmem:[#allocation2 + $0x22] sm:$0x3] %vm1713, 0.0
  %1732 = vst.msk [vmem:[#allocation2 + $0x24] sm:$0x3] %vm1713, 0.0
  %1733 = vst.msk [vmem:[#allocation2 + $0x26] sm:$0x3] %vm1713, 0.0
  %1734 = vst.msk [vmem:[#allocation2 + $0x28] sm:$0x3] %vm1713, 0.0
  %1735 = vst.msk [vmem:[#allocation2 + $0x2a] sm:$0x3] %vm1713, 0.0
  %1736 = vst.msk [vmem:[#allocation2 + $0x2c] sm:$0x3] %vm1713, 0.0
  %1737 = vst.msk [vmem:[#allocation2 + $0x2e] sm:$0x3] %vm1713, 0.0
  %1738 = vst.msk [vmem:[#allocation2 + $0x30] sm:$0x3] %vm1713, 0.0
  %1739 = vst.msk [vmem:[#allocation2 + $0x32] sm:$0x3] %vm1713, 0.0
  %1740 = vst.msk [vmem:[#allocation2 + $0x34] sm:$0x3] %vm1713, 0.0
  %1741 = vst.msk [vmem:[#allocation2 + $0x36] sm:$0x3] %vm1713, 0.0
  %1742 = vst.msk [vmem:[#allocation2 + $0x38] sm:$0x3] %vm1713, 0.0
  %1743 = vst.msk [vmem:[#allocation2 + $0x3a] sm:$0x3] %vm1713, 0.0
  %1744 = vst.msk [vmem:[#allocation2 + $0x3c] sm:$0x3] %vm1713, 0.0
  %1745 = vst.msk [vmem:[#allocation2 + $0x3e] sm:$0x3] %vm1713, 0.0
  %1746 = vst.msk [vmem:[#allocation2 + $0x40] sm:$0x3] %vm1713, 0.0
  %1747 = vst.msk [vmem:[#allocation2 + $0x42] sm:$0x3] %vm1713, 0.0
  %1748 = vst.msk [vmem:[#allocation2 + $0x44] sm:$0x3] %vm1713, 0.0
  %1749 = vst.msk [vmem:[#allocation2 + $0x46] sm:$0x3] %vm1713, 0.0
  %1750 = vst.msk [vmem:[#allocation2 + $0x48] sm:$0x3] %vm1713, 0.0
  %1751 = vst.msk [vmem:[#allocation2 + $0x4a] sm:$0x3] %vm1713, 0.0
  %1752 = vst.msk [vmem:[#allocation2 + $0x4c] sm:$0x3] %vm1713, 0.0
  %1753 = vst.msk [vmem:[#allocation2 + $0x4e] sm:$0x3] %vm1713, 0.0
  %1754 = vst.msk [vmem:[#allocation2 + $0x50] sm:$0x3] %vm1713, 0.0
  %1755 = vst.msk [vmem:[#allocation2 + $0x52] sm:$0x3] %vm1713, 0.0
  %1756 = vst.msk [vmem:[#allocation2 + $0x54] sm:$0x3] %vm1713, 0.0
  %1757 = vst.msk [vmem:[#allocation2 + $0x56] sm:$0x3] %vm1713, 0.0
  %1758 = vst.msk [vmem:[#allocation2 + $0x58] sm:$0x3] %vm1713, 0.0
  %1759 = vst.msk [vmem:[#allocation2 + $0x5a] sm:$0x3] %vm1713, 0.0
  %1760 = vst.msk [vmem:[#allocation2 + $0x5c] sm:$0x3] %vm1713, 0.0
  %1761 = vst.msk [vmem:[#allocation2 + $0x5e] sm:$0x3] %vm1713, 0.0
  %1762 = vst.msk [vmem:[#allocation2 + $0x60] sm:$0x3] %vm1713, 0.0
  %1763 = vst.msk [vmem:[#allocation2 + $0x62] sm:$0x3] %vm1713, 0.0
  %1764 = vst.msk [vmem:[#allocation2 + $0x64] sm:$0x3] %vm1713, 0.0
  %1765 = vst.msk [vmem:[#allocation2 + $0x66] sm:$0x3] %vm1713, 0.0
  %1766 = vst.msk [vmem:[#allocation2 + $0x68] sm:$0x3] %vm1713, 0.0
  %1767 = vst.msk [vmem:[#allocation2 + $0x6a] sm:$0x3] %vm1713, 0.0
  %1768 = vst.msk [vmem:[#allocation2 + $0x6c] sm:$0x3] %vm1713, 0.0
  %1769 = vst.msk [vmem:[#allocation2 + $0x6e] sm:$0x3] %vm1713, 0.0
  %1770 = vst.msk [vmem:[#allocation2 + $0x70] sm:$0x3] %vm1713, 0.0
  %1771 = vst.msk [vmem:[#allocation2 + $0x72] sm:$0x3] %vm1713, 0.0
  %1772 = vst.msk [vmem:[#allocation2 + $0x74] sm:$0x3] %vm1713, 0.0
  %1773 = vst.msk [vmem:[#allocation2 + $0x76] sm:$0x3] %vm1713, 0.0
  %1774 = vst.msk [vmem:[#allocation2 + $0x78] sm:$0x3] %vm1713, 0.0
  %1775 = vst.msk [vmem:[#allocation2 + $0x7a] sm:$0x3] %vm1713, 0.0
  %1776 = vst.msk [vmem:[#allocation2 + $0x7c] sm:$0x3] %vm1713, 0.0
  %1777 = vst.msk [vmem:[#allocation2 + $0x7e] sm:$0x3] %vm1713, 0.0
  %1778 = vst.msk [vmem:[#allocation2 + $0x80] sm:$0x3] %vm1713, 0.0
  %1779 = vst.msk [vmem:[#allocation2 + $0x82] sm:$0x3] %vm1713, 0.0
  %1780 = vst.msk [vmem:[#allocation2 + $0x84] sm:$0x3] %vm1713, 0.0
  %1781 = vst.msk [vmem:[#allocation2 + $0x86] sm:$0x3] %vm1713, 0.0
  %1782 = vst.msk [vmem:[#allocation2 + $0x88] sm:$0x3] %vm1713, 0.0
  %1783 = vst.msk [vmem:[#allocation2 + $0x8a] sm:$0x3] %vm1713, 0.0
  %1784 = vst.msk [vmem:[#allocation2 + $0x8c] sm:$0x3] %vm1713, 0.0
  %1785 = vst.msk [vmem:[#allocation2 + $0x8e] sm:$0x3] %vm1713, 0.0
  %1786 = vst.msk [vmem:[#allocation2 + $0x90] sm:$0x3] %vm1713, 0.0
  %1787 = vst.msk [vmem:[#allocation2 + $0x92] sm:$0x3] %vm1713, 0.0
  %1788 = vst.msk [vmem:[#allocation2 + $0x94] sm:$0x3] %vm1713, 0.0
  %1789 = vst.msk [vmem:[#allocation2 + $0x96] sm:$0x3] %vm1713, 0.0
  %1790 = vst.msk [vmem:[#allocation2 + $0x98] sm:$0x3] %vm1713, 0.0
  %1791 = vst.msk [vmem:[#allocation2 + $0x9a] sm:$0x3] %vm1713, 0.0
  %1792 = vst.msk [vmem:[#allocation2 + $0x9c] sm:$0x3] %vm1713, 0.0
  %1793 = vst.msk [vmem:[#allocation2 + $0x9e] sm:$0x3] %vm1713, 0.0
  %1794 = vst.msk [vmem:[#allocation2 + $0xa0] sm:$0x3] %vm1713, 0.0
  %1795 = vst.msk [vmem:[#allocation2 + $0xa2] sm:$0x3] %vm1713, 0.0
  %1796 = vst.msk [vmem:[#allocation2 + $0xa4] sm:$0x3] %vm1713, 0.0
  %1797 = vst.msk [vmem:[#allocation2 + $0xa6] sm:$0x3] %vm1713, 0.0
  %1798 = vst.msk [vmem:[#allocation2 + $0xa8] sm:$0x3] %vm1713, 0.0
  %1799 = vst.msk [vmem:[#allocation2 + $0xaa] sm:$0x3] %vm1713, 0.0
  %1800 = vst.msk [vmem:[#allocation2 + $0xac] sm:$0x3] %vm1713, 0.0
  %1801 = vst.msk [vmem:[#allocation2 + $0xae] sm:$0x3] %vm1713, 0.0
  %1802 = vst.msk [vmem:[#allocation2 + $0xb0] sm:$0x3] %vm1713, 0.0
  %1803 = vst.msk [vmem:[#allocation2 + $0xb2] sm:$0x3] %vm1713, 0.0
  %1804 = vst.msk [vmem:[#allocation2 + $0xb4] sm:$0x3] %vm1713, 0.0
  %1805 = vst.msk [vmem:[#allocation2 + $0xb6] sm:$0x3] %vm1713, 0.0
  %1806 = vst.msk [vmem:[#allocation2 + $0xb8] sm:$0x3] %vm1713, 0.0
  %1807 = vst.msk [vmem:[#allocation2 + $0xba] sm:$0x3] %vm1713, 0.0
  %1808 = vst.msk [vmem:[#allocation2 + $0xbc] sm:$0x3] %vm1713, 0.0
  %1809 = vst.msk [vmem:[#allocation2 + $0xbe] sm:$0x3] %vm1713, 0.0
  %1810 = vst.msk [vmem:[#allocation2 + $0xc0] sm:$0x3] %vm1713, 0.0
  %1811 = vst.msk [vmem:[#allocation2 + $0xc2] sm:$0x3] %vm1713, 0.0
  %1812 = vst.msk [vmem:[#allocation2 + $0xc4] sm:$0x3] %vm1713, 0.0
  %1813 = vst.msk [vmem:[#allocation2 + $0xc6] sm:$0x3] %vm1713, 0.0
  %1814 = vst.msk [vmem:[#allocation2 + $0xc8] sm:$0x3] %vm1713, 0.0
  %1815 = vst.msk [vmem:[#allocation2 + $0xca] sm:$0x3] %vm1713, 0.0
  %1816 = vst.msk [vmem:[#allocation2 + $0xcc] sm:$0x3] %vm1713, 0.0
  %1817 = vst.msk [vmem:[#allocation2 + $0xce] sm:$0x3] %vm1713, 0.0
  %1818 = vst.msk [vmem:[#allocation2 + $0xd0] sm:$0x3] %vm1713, 0.0
  %1819 = vst.msk [vmem:[#allocation2 + $0xd2] sm:$0x3] %vm1713, 0.0
  %1820 = vst.msk [vmem:[#allocation2 + $0xd4] sm:$0x3] %vm1713, 0.0
  %1821 = vst.msk [vmem:[#allocation2 + $0xd6] sm:$0x3] %vm1713, 0.0
  %1822 = vst.msk [vmem:[#allocation2 + $0xd8] sm:$0x3] %vm1713, 0.0
  %1823 = vst.msk [vmem:[#allocation2 + $0xda] sm:$0x3] %vm1713, 0.0
  %1824 = vst.msk [vmem:[#allocation2 + $0xdc] sm:$0x3] %vm1713, 0.0
  %1825 = vst.msk [vmem:[#allocation2 + $0xde] sm:$0x3] %vm1713, 0.0
  %1826 = vst.msk [vmem:[#allocation2 + $0xe0] sm:$0x3] %vm1713, 0.0
  %1827 = vst.msk [vmem:[#allocation2 + $0xe2] sm:$0x3] %vm1713, 0.0
  %1828 = vst.msk [vmem:[#allocation2 + $0xe4] sm:$0x3] %vm1713, 0.0
  %1829 = vst.msk [vmem:[#allocation2 + $0xe6] sm:$0x3] %vm1713, 0.0
  %1830 = vst.msk [vmem:[#allocation2 + $0xe8] sm:$0x3] %vm1713, 0.0
  %1831 = vst.msk [vmem:[#allocation2 + $0xea] sm:$0x3] %vm1713, 0.0
  %1832 = vst.msk [vmem:[#allocation2 + $0xec] sm:$0x3] %vm1713, 0.0
  %1833 = vst.msk [vmem:[#allocation2 + $0xee] sm:$0x3] %vm1713, 0.0
  %1834 = vst.msk [vmem:[#allocation2 + $0xf0] sm:$0x3] %vm1713, 0.0
  %1835 = vst.msk [vmem:[#allocation2 + $0xf2] sm:$0x3] %vm1713, 0.0
  %1836 = vst.msk [vmem:[#allocation2 + $0xf4] sm:$0x3] %vm1713, 0.0
  %1837 = vst.msk [vmem:[#allocation2 + $0xf6] sm:$0x3] %vm1713, 0.0
  %1838 = vst.msk [vmem:[#allocation2 + $0xf8] sm:$0x3] %vm1713, 0.0
  %1839 = vst.msk [vmem:[#allocation2 + $0xfa] sm:$0x3] %vm1713, 0.0
  %1840 = vst.msk [vmem:[#allocation2 + $0xfc] sm:$0x3] %vm1713, 0.0
  %1841 = vst.msk [vmem:[#allocation2 + $0xfe] sm:$0x3] %vm1713, 0.0
  %1842 = vst.msk [vmem:[#allocation2 + $0x100] sm:$0x3] %vm1713, 0.0
  %1843 = vst.msk [vmem:[#allocation2 + $0x102] sm:$0x3] %vm1713, 0.0
  %1844 = vst.msk [vmem:[#allocation2 + $0x104] sm:$0x3] %vm1713, 0.0
  %1845 = vst.msk [vmem:[#allocation2 + $0x106] sm:$0x3] %vm1713, 0.0
  %1846 = vst.msk [vmem:[#allocation2 + $0x108] sm:$0x3] %vm1713, 0.0
  %1847 = vst.msk [vmem:[#allocation2 + $0x10a] sm:$0x3] %vm1713, 0.0
  %1848 = vst.msk [vmem:[#allocation2 + $0x10c] sm:$0x3] %vm1713, 0.0
  %1849 = vst.msk [vmem:[#allocation2 + $0x10e] sm:$0x3] %vm1713, 0.0
  %1850 = vst.msk [vmem:[#allocation2 + $0x110] sm:$0x3] %vm1713, 0.0
  %1851 = vst.msk [vmem:[#allocation2 + $0x112] sm:$0x3] %vm1713, 0.0
  %1852 = vst.msk [vmem:[#allocation2 + $0x114] sm:$0x3] %vm1713, 0.0
  %1853 = vst.msk [vmem:[#allocation2 + $0x116] sm:$0x3] %vm1713, 0.0
  %1854 = vst.msk [vmem:[#allocation2 + $0x118] sm:$0x3] %vm1713, 0.0
  %1855 = vst.msk [vmem:[#allocation2 + $0x11a] sm:$0x3] %vm1713, 0.0
  %1856 = vst.msk [vmem:[#allocation2 + $0x11c] sm:$0x3] %vm1713, 0.0
  %1857 = vst.msk [vmem:[#allocation2 + $0x11e] sm:$0x3] %vm1713, 0.0
  %1858 = vst.msk [vmem:[#allocation2 + $0x120] sm:$0x3] %vm1713, 0.0
  %1859 = vst.msk [vmem:[#allocation2 + $0x122] sm:$0x3] %vm1713, 0.0
  %1860 = vst.msk [vmem:[#allocation2 + $0x124] sm:$0x3] %vm1713, 0.0
  %1861 = vst.msk [vmem:[#allocation2 + $0x126] sm:$0x3] %vm1713, 0.0
  %1862 = vst.msk [vmem:[#allocation2 + $0x128] sm:$0x3] %vm1713, 0.0
  %1863 = vst.msk [vmem:[#allocation2 + $0x12a] sm:$0x3] %vm1713, 0.0
  %1864 = vst.msk [vmem:[#allocation2 + $0x12c] sm:$0x3] %vm1713, 0.0
  %1865 = vst.msk [vmem:[#allocation2 + $0x12e] sm:$0x3] %vm1713, 0.0
  %1866 = vst.msk [vmem:[#allocation2 + $0x130] sm:$0x3] %vm1713, 0.0
  %1867 = vst.msk [vmem:[#allocation2 + $0x132] sm:$0x3] %vm1713, 0.0
  %1868 = vst.msk [vmem:[#allocation2 + $0x134] sm:$0x3] %vm1713, 0.0
  %1869 = vst.msk [vmem:[#allocation2 + $0x136] sm:$0x3] %vm1713, 0.0
  %1870 = vst.msk [vmem:[#allocation2 + $0x138] sm:$0x3] %vm1713, 0.0
  %1871 = vst.msk [vmem:[#allocation2 + $0x13a] sm:$0x3] %vm1713, 0.0
  %1872 = vst.msk [vmem:[#allocation2 + $0x13c] sm:$0x3] %vm1713, 0.0
  %1873 = vst.msk [vmem:[#allocation2 + $0x13e] sm:$0x3] %vm1713, 0.0
  %1874 = vst.msk [vmem:[#allocation2 + $0x140] sm:$0x3] %vm1713, 0.0
  %1875 = vst.msk [vmem:[#allocation2 + $0x142] sm:$0x3] %vm1713, 0.0
  %1876 = vst.msk [vmem:[#allocation2 + $0x144] sm:$0x3] %vm1713, 0.0
  %1877 = vst.msk [vmem:[#allocation2 + $0x146] sm:$0x3] %vm1713, 0.0
  %1878 = vst.msk [vmem:[#allocation2 + $0x148] sm:$0x3] %vm1713, 0.0
  %1879 = vst.msk [vmem:[#allocation2 + $0x14a] sm:$0x3] %vm1713, 0.0
  %1880 = vst.msk [vmem:[#allocation2 + $0x14c] sm:$0x3] %vm1713, 0.0
  %1881 = vst.msk [vmem:[#allocation2 + $0x14e] sm:$0x3] %vm1713, 0.0
  %1882 = vst.msk [vmem:[#allocation2 + $0x150] sm:$0x3] %vm1713, 0.0
  %1883 = vst.msk [vmem:[#allocation2 + $0x152] sm:$0x3] %vm1713, 0.0
  %1884 = vst.msk [vmem:[#allocation2 + $0x154] sm:$0x3] %vm1713, 0.0
  %1885 = vst.msk [vmem:[#allocation2 + $0x156] sm:$0x3] %vm1713, 0.0
  %1886 = vst.msk [vmem:[#allocation2 + $0x158] sm:$0x3] %vm1713, 0.0
  %1887 = vst.msk [vmem:[#allocation2 + $0x15a] sm:$0x3] %vm1713, 0.0
  %1888 = vst.msk [vmem:[#allocation2 + $0x15c] sm:$0x3] %vm1713, 0.0
  %1889 = vst.msk [vmem:[#allocation2 + $0x15e] sm:$0x3] %vm1713, 0.0
  %1890 = vst.msk [vmem:[#allocation2 + $0x160] sm:$0x3] %vm1713, 0.0
  %1891 = vst.msk [vmem:[#allocation2 + $0x162] sm:$0x3] %vm1713, 0.0
  %1892 = vst.msk [vmem:[#allocation2 + $0x164] sm:$0x3] %vm1713, 0.0
  %1893 = vst.msk [vmem:[#allocation2 + $0x166] sm:$0x3] %vm1713, 0.0
  %1894 = vst.msk [vmem:[#allocation2 + $0x168] sm:$0x3] %vm1713, 0.0
  %1895 = vst.msk [vmem:[#allocation2 + $0x16a] sm:$0x3] %vm1713, 0.0
  %1896 = vst.msk [vmem:[#allocation2 + $0x16c] sm:$0x3] %vm1713, 0.0
  %1897 = vst.msk [vmem:[#allocation2 + $0x16e] sm:$0x3] %vm1713, 0.0
  %1898 = vst.msk [vmem:[#allocation2 + $0x170] sm:$0x3] %vm1713, 0.0
  %1899 = vst.msk [vmem:[#allocation2 + $0x172] sm:$0x3] %vm1713, 0.0
  %1900 = vst.msk [vmem:[#allocation2 + $0x174] sm:$0x3] %vm1713, 0.0
  %1901 = vst.msk [vmem:[#allocation2 + $0x176] sm:$0x3] %vm1713, 0.0
  %1902 = vst.msk [vmem:[#allocation2 + $0x178] sm:$0x3] %vm1713, 0.0
  %1903 = vst.msk [vmem:[#allocation2 + $0x17a] sm:$0x3] %vm1713, 0.0
  %1904 = vst.msk [vmem:[#allocation2 + $0x17c] sm:$0x3] %vm1713, 0.0
  %1905 = vst.msk [vmem:[#allocation2 + $0x17e] sm:$0x3] %vm1713, 0.0
  %1906 = vst.msk [vmem:[#allocation2 + $0x180] sm:$0x3] %vm1713, 0.0
  %1907 = vst.msk [vmem:[#allocation2 + $0x182] sm:$0x3] %vm1713, 0.0
  %1908 = vst.msk [vmem:[#allocation2 + $0x184] sm:$0x3] %vm1713, 0.0
  %1909 = vst.msk [vmem:[#allocation2 + $0x186] sm:$0x3] %vm1713, 0.0
  %1910 = vst.msk [vmem:[#allocation2 + $0x188] sm:$0x3] %vm1713, 0.0
  %1911 = vst.msk [vmem:[#allocation2 + $0x18a] sm:$0x3] %vm1713, 0.0
  %1912 = vst.msk [vmem:[#allocation2 + $0x18c] sm:$0x3] %vm1713, 0.0
  %1913 = vst.msk [vmem:[#allocation2 + $0x18e] sm:$0x3] %vm1713, 0.0
  %1914 = vst.msk [vmem:[#allocation2 + $0x190] sm:$0x3] %vm1713, 0.0
  %1915 = vst.msk [vmem:[#allocation2 + $0x192] sm:$0x3] %vm1713, 0.0
  %1916 = vst.msk [vmem:[#allocation2 + $0x194] sm:$0x3] %vm1713, 0.0
  %1917 = vst.msk [vmem:[#allocation2 + $0x196] sm:$0x3] %vm1713, 0.0
  %1918 = vst.msk [vmem:[#allocation2 + $0x198] sm:$0x3] %vm1713, 0.0
  %1919 = vst.msk [vmem:[#allocation2 + $0x19a] sm:$0x3] %vm1713, 0.0
  %1920 = vst.msk [vmem:[#allocation2 + $0x19c] sm:$0x3] %vm1713, 0.0
  %1921 = vst.msk [vmem:[#allocation2 + $0x19e] sm:$0x3] %vm1713, 0.0
  %1922 = vst.msk [vmem:[#allocation2 + $0x1a0] sm:$0x3] %vm1713, 0.0
  %1923 = vst.msk [vmem:[#allocation2 + $0x1a2] sm:$0x3] %vm1713, 0.0
  %1924 = vst.msk [vmem:[#allocation2 + $0x1a4] sm:$0x3] %vm1713, 0.0
  %1925 = vst.msk [vmem:[#allocation2 + $0x1a6] sm:$0x3] %vm1713, 0.0
  %1926 = vst.msk [vmem:[#allocation2 + $0x1a8] sm:$0x3] %vm1713, 0.0
  %1927 = vst.msk [vmem:[#allocation2 + $0x1aa] sm:$0x3] %vm1713, 0.0
  %1928 = vst.msk [vmem:[#allocation2 + $0x1ac] sm:$0x3] %vm1713, 0.0
  %1929 = vst.msk [vmem:[#allocation2 + $0x1ae] sm:$0x3] %vm1713, 0.0
  %1930 = vst.msk [vmem:[#allocation2 + $0x1b0] sm:$0x3] %vm1713, 0.0
  %1931 = vst.msk [vmem:[#allocation2 + $0x1b2] sm:$0x3] %vm1713, 0.0
  %1932 = vst.msk [vmem:[#allocation2 + $0x1b4] sm:$0x3] %vm1713, 0.0
  %1933 = vst.msk [vmem:[#allocation2 + $0x1b6] sm:$0x3] %vm1713, 0.0
  %1934 = vst.msk [vmem:[#allocation2 + $0x1b8] sm:$0x3] %vm1713, 0.0
  %1935 = vst.msk [vmem:[#allocation2 + $0x1ba] sm:$0x3] %vm1713, 0.0
  %1936 = vst.msk [vmem:[#allocation2 + $0x1bc] sm:$0x3] %vm1713, 0.0
  %1937 = vst.msk [vmem:[#allocation2 + $0x1be] sm:$0x3] %vm1713, 0.0
  %1938 = vst.msk [vmem:[#allocation2 + $0x1c0] sm:$0x3] %vm1713, 0.0
  %1939 = vst.msk [vmem:[#allocation2 + $0x1c2] sm:$0x3] %vm1713, 0.0
  %1940 = vst.msk [vmem:[#allocation2 + $0x1c4] sm:$0x3] %vm1713, 0.0
  %1941 = vst.msk [vmem:[#allocation2 + $0x1c6] sm:$0x3] %vm1713, 0.0
  %1942 = vst.msk [vmem:[#allocation2 + $0x1c8] sm:$0x3] %vm1713, 0.0
  %1943 = vst.msk [vmem:[#allocation2 + $0x1ca] sm:$0x3] %vm1713, 0.0
  %1944 = vst.msk [vmem:[#allocation2 + $0x1cc] sm:$0x3] %vm1713, 0.0
  %1945 = vst.msk [vmem:[#allocation2 + $0x1ce] sm:$0x3] %vm1713, 0.0
  %1946 = vst.msk [vmem:[#allocation2 + $0x1d0] sm:$0x3] %vm1713, 0.0
  %1947 = vst.msk [vmem:[#allocation2 + $0x1d2] sm:$0x3] %vm1713, 0.0
  %1948 = vst.msk [vmem:[#allocation2 + $0x1d4] sm:$0x3] %vm1713, 0.0
  %1949 = vst.msk [vmem:[#allocation2 + $0x1d6] sm:$0x3] %vm1713, 0.0
  %1950 = vst.msk [vmem:[#allocation2 + $0x1d8] sm:$0x3] %vm1713, 0.0
  %1951 = vst.msk [vmem:[#allocation2 + $0x1da] sm:$0x3] %vm1713, 0.0
  %1952 = vst.msk [vmem:[#allocation2 + $0x1dc] sm:$0x3] %vm1713, 0.0
  %1953 = vst.msk [vmem:[#allocation2 + $0x1de] sm:$0x3] %vm1713, 0.0
  %1954 = vst.msk [vmem:[#allocation2 + $0x1e0] sm:$0x3] %vm1713, 0.0
  %1955 = vst.msk [vmem:[#allocation2 + $0x1e2] sm:$0x3] %vm1713, 0.0
  %1956 = vst.msk [vmem:[#allocation2 + $0x1e4] sm:$0x3] %vm1713, 0.0
  %1957 = vst.msk [vmem:[#allocation2 + $0x1e6] sm:$0x3] %vm1713, 0.0
  %1958 = vst.msk [vmem:[#allocation2 + $0x1e8] sm:$0x3] %vm1713, 0.0
  %1959 = vst.msk [vmem:[#allocation2 + $0x1ea] sm:$0x3] %vm1713, 0.0
  %1960 = vst.msk [vmem:[#allocation2 + $0x1ec] sm:$0x3] %vm1713, 0.0
  %1961 = vst.msk [vmem:[#allocation2 + $0x1ee] sm:$0x3] %vm1713, 0.0
  %1962 = vst.msk [vmem:[#allocation2 + $0x1f0] sm:$0x3] %vm1713, 0.0
  %1963 = vst.msk [vmem:[#allocation2 + $0x1f2] sm:$0x3] %vm1713, 0.0
  %1964 = vst.msk [vmem:[#allocation2 + $0x1f4] sm:$0x3] %vm1713, 0.0
  %1965 = vst.msk [vmem:[#allocation2 + $0x1f6] sm:$0x3] %vm1713, 0.0
  %1966 = vst.msk [vmem:[#allocation2 + $0x1f8] sm:$0x3] %vm1713, 0.0
  %1967 = vst.msk [vmem:[#allocation2 + $0x1fa] sm:$0x3] %vm1713, 0.0
  %1968 = vst.msk [vmem:[#allocation2 + $0x1fc] sm:$0x3] %vm1713, 0.0
  %1969 = vst.msk [vmem:[#allocation2 + $0x1fe] sm:$0x3] %vm1713, 0.0
  %1970 = vst.msk [vmem:[#allocation2 + $0x200] sm:$0x3] %vm1713, 0.0
  %1971 = vst.msk [vmem:[#allocation2 + $0x202] sm:$0x3] %vm1713, 0.0
  %1972 = vst.msk [vmem:[#allocation2 + $0x204] sm:$0x3] %vm1713, 0.0
  %1973 = vst.msk [vmem:[#allocation2 + $0x206] sm:$0x3] %vm1713, 0.0
  %1974 = vst.msk [vmem:[#allocation2 + $0x208] sm:$0x3] %vm1713, 0.0
  %1975 = vst.msk [vmem:[#allocation2 + $0x20a] sm:$0x3] %vm1713, 0.0
  %1976 = vst.msk [vmem:[#allocation2 + $0x20c] sm:$0x3] %vm1713, 0.0
  %1977 = vst.msk [vmem:[#allocation2 + $0x20e] sm:$0x3] %vm1713, 0.0
  %1978 = vst.msk [vmem:[#allocation2 + $0x210] sm:$0x3] %vm1713, 0.0
  %1979 = vst.msk [vmem:[#allocation2 + $0x212] sm:$0x3] %vm1713, 0.0
  %1980 = vst.msk [vmem:[#allocation2 + $0x214] sm:$0x3] %vm1713, 0.0
  %1981 = vst.msk [vmem:[#allocation2 + $0x216] sm:$0x3] %vm1713, 0.0
  %1982 = vst.msk [vmem:[#allocation2 + $0x218] sm:$0x3] %vm1713, 0.0
  %1983 = vst.msk [vmem:[#allocation2 + $0x21a] sm:$0x3] %vm1713, 0.0
  %1984 = vst.msk [vmem:[#allocation2 + $0x21c] sm:$0x3] %vm1713, 0.0
  %1985 = vst.msk [vmem:[#allocation2 + $0x21e] sm:$0x3] %vm1713, 0.0
  %1986 = vst.msk [vmem:[#allocation2 + $0x220] sm:$0x3] %vm1713, 0.0
  %1987 = vst.msk [vmem:[#allocation2 + $0x222] sm:$0x3] %vm1713, 0.0
  %1988 = vst.msk [vmem:[#allocation2 + $0x224] sm:$0x3] %vm1713, 0.0
  %1989 = vst.msk [vmem:[#allocation2 + $0x226] sm:$0x3] %vm1713, 0.0
  %1990 = vst.msk [vmem:[#allocation2 + $0x228] sm:$0x3] %vm1713, 0.0
  %1991 = vst.msk [vmem:[#allocation2 + $0x22a] sm:$0x3] %vm1713, 0.0
  %1992 = vst.msk [vmem:[#allocation2 + $0x22c] sm:$0x3] %vm1713, 0.0
  %1993 = vst.msk [vmem:[#allocation2 + $0x22e] sm:$0x3] %vm1713, 0.0
  %1994 = vst.msk [vmem:[#allocation2 + $0x230] sm:$0x3] %vm1713, 0.0
  %1995 = vst.msk [vmem:[#allocation2 + $0x232] sm:$0x3] %vm1713, 0.0
  %1996 = vst.msk [vmem:[#allocation2 + $0x234] sm:$0x3] %vm1713, 0.0
  %1997 = vst.msk [vmem:[#allocation2 + $0x236] sm:$0x3] %vm1713, 0.0
  %1998 = vst.msk [vmem:[#allocation2 + $0x238] sm:$0x3] %vm1713, 0.0
  %1999 = vst.msk [vmem:[#allocation2 + $0x23a] sm:$0x3] %vm1713, 0.0
  %2000 = vst.msk [vmem:[#allocation2 + $0x23c] sm:$0x3] %vm1713, 0.0
  %2001 = vst.msk [vmem:[#allocation2 + $0x23e] sm:$0x3] %vm1713, 0.0
  %2002 = vst.msk [vmem:[#allocation2 + $0x240] sm:$0x3] %vm1713, 0.0
  %2003 = vst.msk [vmem:[#allocation2 + $0x242] sm:$0x3] %vm1713, 0.0
  %2004 = vst.msk [vmem:[#allocation2 + $0x244] sm:$0x3] %vm1713, 0.0
  %2005 = vst.msk [vmem:[#allocation2 + $0x246] sm:$0x3] %vm1713, 0.0
  %2006 = vst.msk [vmem:[#allocation2 + $0x248] sm:$0x3] %vm1713, 0.0
  %2007 = vst.msk [vmem:[#allocation2 + $0x24a] sm:$0x3] %vm1713, 0.0
  %2008 = vst.msk [vmem:[#allocation2 + $0x24c] sm:$0x3] %vm1713, 0.0
  %2009 = vst.msk [vmem:[#allocation2 + $0x24e] sm:$0x3] %vm1713, 0.0
  %2010 = vst.msk [vmem:[#allocation2 + $0x250] sm:$0x3] %vm1713, 0.0
  %2011 = vst.msk [vmem:[#allocation2 + $0x252] sm:$0x3] %vm1713, 0.0
  %2012 = vst.msk [vmem:[#allocation2 + $0x254] sm:$0x3] %vm1713, 0.0
  %2013 = vst.msk [vmem:[#allocation2 + $0x256] sm:$0x3] %vm1713, 0.0
  %2014 = vst.msk [vmem:[#allocation2 + $0x258] sm:$0x3] %vm1713, 0.0
  %2015 = vst.msk [vmem:[#allocation2 + $0x25a] sm:$0x3] %vm1713, 0.0
  %2016 = vst.msk [vmem:[#allocation2 + $0x25c] sm:$0x3] %vm1713, 0.0
  %2017 = vst.msk [vmem:[#allocation2 + $0x25e] sm:$0x3] %vm1713, 0.0
  %2018 = vst.msk [vmem:[#allocation2 + $0x260] sm:$0x3] %vm1713, 0.0
  %2019 = vst.msk [vmem:[#allocation2 + $0x262] sm:$0x3] %vm1713, 0.0
  %2020 = vst.msk [vmem:[#allocation2 + $0x264] sm:$0x3] %vm1713, 0.0
  %2021 = vst.msk [vmem:[#allocation2 + $0x266] sm:$0x3] %vm1713, 0.0
  %2022 = vst.msk [vmem:[#allocation2 + $0x268] sm:$0x3] %vm1713, 0.0
  %2023 = vst.msk [vmem:[#allocation2 + $0x26a] sm:$0x3] %vm1713, 0.0
  %2024 = vst.msk [vmem:[#allocation2 + $0x26c] sm:$0x3] %vm1713, 0.0
  %2025 = vst.msk [vmem:[#allocation2 + $0x26e] sm:$0x3] %vm1713, 0.0
  %2026 = vst.msk [vmem:[#allocation2 + $0x270] sm:$0x3] %vm1713, 0.0
  %2027 = vst.msk [vmem:[#allocation2 + $0x272] sm:$0x3] %vm1713, 0.0
  %2028 = vst.msk [vmem:[#allocation2 + $0x274] sm:$0x3] %vm1713, 0.0
  %2029 = vst.msk [vmem:[#allocation2 + $0x276] sm:$0x3] %vm1713, 0.0
  %2030 = vst.msk [vmem:[#allocation2 + $0x278] sm:$0x3] %vm1713, 0.0
  %2031 = vst.msk [vmem:[#allocation2 + $0x27a] sm:$0x3] %vm1713, 0.0
  %2032 = vst.msk [vmem:[#allocation2 + $0x27c] sm:$0x3] %vm1713, 0.0
  %2033 = vst.msk [vmem:[#allocation2 + $0x27e] sm:$0x3] %vm1713, 0.0
  %2034 = vst.msk [vmem:[#allocation2 + $0x280] sm:$0x3] %vm1713, 0.0
  %2035 = vst.msk [vmem:[#allocation2 + $0x282] sm:$0x3] %vm1713, 0.0
  %2036 = vst.msk [vmem:[#allocation2 + $0x284] sm:$0x3] %vm1713, 0.0
  %2037 = vst.msk [vmem:[#allocation2 + $0x286] sm:$0x3] %vm1713, 0.0
  %2038 = vst.msk [vmem:[#allocation2 + $0x288] sm:$0x3] %vm1713, 0.0
  %2039 = vst.msk [vmem:[#allocation2 + $0x28a] sm:$0x3] %vm1713, 0.0
  %2040 = vst.msk [vmem:[#allocation2 + $0x28c] sm:$0x3] %vm1713, 0.0
  %2041 = vst.msk [vmem:[#allocation2 + $0x28e] sm:$0x3] %vm1713, 0.0
  %2042 = vst.msk [vmem:[#allocation2 + $0x290] sm:$0x3] %vm1713, 0.0
  %2043 = vst.msk [vmem:[#allocation2 + $0x292] sm:$0x3] %vm1713, 0.0
  %2044 = vst.msk [vmem:[#allocation2 + $0x294] sm:$0x3] %vm1713, 0.0
  %2045 = vst.msk [vmem:[#allocation2 + $0x296] sm:$0x3] %vm1713, 0.0
  %2046 = vst.msk [vmem:[#allocation2 + $0x298] sm:$0x3] %vm1713, 0.0
  %2047 = vst.msk [vmem:[#allocation2 + $0x29a] sm:$0x3] %vm1713, 0.0
  %2048 = vst.msk [vmem:[#allocation2 + $0x29c] sm:$0x3] %vm1713, 0.0
  %2049 = vst.msk [vmem:[#allocation2 + $0x29e] sm:$0x3] %vm1713, 0.0
  %2050 = vst.msk [vmem:[#allocation2 + $0x2a0] sm:$0x3] %vm1713, 0.0
  %2051 = vst.msk [vmem:[#allocation2 + $0x2a2] sm:$0x3] %vm1713, 0.0
  %2052 = vst.msk [vmem:[#allocation2 + $0x2a4] sm:$0x3] %vm1713, 0.0
  %2053 = vst.msk [vmem:[#allocation2 + $0x2a6] sm:$0x3] %vm1713, 0.0
  %2054 = vst.msk [vmem:[#allocation2 + $0x2a8] sm:$0x3] %vm1713, 0.0
  %2055 = vst.msk [vmem:[#allocation2 + $0x2aa] sm:$0x3] %vm1713, 0.0
  %2056 = vst.msk [vmem:[#allocation2 + $0x2ac] sm:$0x3] %vm1713, 0.0
  %2057 = vst.msk [vmem:[#allocation2 + $0x2ae] sm:$0x3] %vm1713, 0.0
  %2058 = vst.msk [vmem:[#allocation2 + $0x2b0] sm:$0x3] %vm1713, 0.0
  %2059 = vst.msk [vmem:[#allocation2 + $0x2b2] sm:$0x3] %vm1713, 0.0
  %2060 = vst.msk [vmem:[#allocation2 + $0x2b4] sm:$0x3] %vm1713, 0.0
  %2061 = vst.msk [vmem:[#allocation2 + $0x2b6] sm:$0x3] %vm1713, 0.0
  %2062 = vst.msk [vmem:[#allocation2 + $0x2b8] sm:$0x3] %vm1713, 0.0
  %2063 = vst.msk [vmem:[#allocation2 + $0x2ba] sm:$0x3] %vm1713, 0.0
  %2064 = vst.msk [vmem:[#allocation2 + $0x2bc] sm:$0x3] %vm1713, 0.0
  %2065 = vst.msk [vmem:[#allocation2 + $0x2be] sm:$0x3] %vm1713, 0.0
  %2066 = vst.msk [vmem:[#allocation2 + $0x2c0] sm:$0x3] %vm1713, 0.0
  %2067 = vst.msk [vmem:[#allocation2 + $0x2c2] sm:$0x3] %vm1713, 0.0
  %2068 = vst.msk [vmem:[#allocation2 + $0x2c4] sm:$0x3] %vm1713, 0.0
  %2069 = vst.msk [vmem:[#allocation2 + $0x2c6] sm:$0x3] %vm1713, 0.0
  %2070 = vst.msk [vmem:[#allocation2 + $0x2c8] sm:$0x3] %vm1713, 0.0
  %2071 = vst.msk [vmem:[#allocation2 + $0x2ca] sm:$0x3] %vm1713, 0.0
  %2072 = vst.msk [vmem:[#allocation2 + $0x2cc] sm:$0x3] %vm1713, 0.0
  %2073 = vst.msk [vmem:[#allocation2 + $0x2ce] sm:$0x3] %vm1713, 0.0
  %2074 = vst.msk [vmem:[#allocation2 + $0x2d0] sm:$0x3] %vm1713, 0.0
  %2075 = vst.msk [vmem:[#allocation2 + $0x2d2] sm:$0x3] %vm1713, 0.0
  %2076 = vst.msk [vmem:[#allocation2 + $0x2d4] sm:$0x3] %vm1713, 0.0
  %2077 = vst.msk [vmem:[#allocation2 + $0x2d6] sm:$0x3] %vm1713, 0.0
  %2078 = vst.msk [vmem:[#allocation2 + $0x2d8] sm:$0x3] %vm1713, 0.0
  %2079 = vst.msk [vmem:[#allocation2 + $0x2da] sm:$0x3] %vm1713, 0.0
  %2080 = vst.msk [vmem:[#allocation2 + $0x2dc] sm:$0x3] %vm1713, 0.0
  %2081 = vst.msk [vmem:[#allocation2 + $0x2de] sm:$0x3] %vm1713, 0.0
  %2082 = vst.msk [vmem:[#allocation2 + $0x2e0] sm:$0x3] %vm1713, 0.0
  %2083 = vst.msk [vmem:[#allocation2 + $0x2e2] sm:$0x3] %vm1713, 0.0
  %2084 = vst.msk [vmem:[#allocation2 + $0x2e4] sm:$0x3] %vm1713, 0.0
  %2085 = vst.msk [vmem:[#allocation2 + $0x2e6] sm:$0x3] %vm1713, 0.0
  %2086 = vst.msk [vmem:[#allocation2 + $0x2e8] sm:$0x3] %vm1713, 0.0
  %2087 = vst.msk [vmem:[#allocation2 + $0x2ea] sm:$0x3] %vm1713, 0.0
  %2088 = vst.msk [vmem:[#allocation2 + $0x2ec] sm:$0x3] %vm1713, 0.0
  %2089 = vst.msk [vmem:[#allocation2 + $0x2ee] sm:$0x3] %vm1713, 0.0
  %2090 = vst.msk [vmem:[#allocation2 + $0x2f0] sm:$0x3] %vm1713, 0.0
  %2091 = vst.msk [vmem:[#allocation2 + $0x2f2] sm:$0x3] %vm1713, 0.0
  %2092 = vst.msk [vmem:[#allocation2 + $0x2f4] sm:$0x3] %vm1713, 0.0
  %2093 = vst.msk [vmem:[#allocation2 + $0x2f6] sm:$0x3] %vm1713, 0.0
  %2094 = vst.msk [vmem:[#allocation2 + $0x2f8] sm:$0x3] %vm1713, 0.0
  %2095 = vst.msk [vmem:[#allocation2 + $0x2fa] sm:$0x3] %vm1713, 0.0
  %2096 = vst.msk [vmem:[#allocation2 + $0x2fc] sm:$0x3] %vm1713, 0.0
  %2097 = vst.msk [vmem:[#allocation2 + $0x2fe] sm:$0x3] %vm1713, 0.0
  %2098 = vst.msk [vmem:[#allocation2 + $0x300] sm:$0x3] %vm1713, 0.0
  %2099 = vst.msk [vmem:[#allocation2 + $0x302] sm:$0x3] %vm1713, 0.0
  %2100 = vst.msk [vmem:[#allocation2 + $0x304] sm:$0x3] %vm1713, 0.0
  %2101 = vst.msk [vmem:[#allocation2 + $0x306] sm:$0x3] %vm1713, 0.0
  %2102 = vst.msk [vmem:[#allocation2 + $0x308] sm:$0x3] %vm1713, 0.0
  %2103 = vst.msk [vmem:[#allocation2 + $0x30a] sm:$0x3] %vm1713, 0.0
  %2104 = vst.msk [vmem:[#allocation2 + $0x30c] sm:$0x3] %vm1713, 0.0
  %2105 = vst.msk [vmem:[#allocation2 + $0x30e] sm:$0x3] %vm1713, 0.0
  %2106 = vst.msk [vmem:[#allocation2 + $0x310] sm:$0x3] %vm1713, 0.0
  %2107 = vst.msk [vmem:[#allocation2 + $0x312] sm:$0x3] %vm1713, 0.0
  %2108 = vst.msk [vmem:[#allocation2 + $0x314] sm:$0x3] %vm1713, 0.0
  %2109 = vst.msk [vmem:[#allocation2 + $0x316] sm:$0x3] %vm1713, 0.0
  %2110 = vst.msk [vmem:[#allocation2 + $0x318] sm:$0x3] %vm1713, 0.0
  %2111 = vst.msk [vmem:[#allocation2 + $0x31a] sm:$0x3] %vm1713, 0.0
  %2112 = vst.msk [vmem:[#allocation2 + $0x31c] sm:$0x3] %vm1713, 0.0
  %2113 = vst.msk [vmem:[#allocation2 + $0x31e] sm:$0x3] %vm1713, 0.0
  %s2114 = scalar_lea.vmem [#allocation2], 84
  %2115 = vst.msk [vmem:[%s2114] sm:$0x3] %vm1713, %v1201
  %2116 = vst.msk [vmem:[%s2114 + $0x2] sm:$0x3] %vm1713, %v1329
  %2117 = vst.msk [vmem:[%s2114 + $0x8] sm:$0x3] %vm1713, %v1202
  %2118 = vst.msk [vmem:[%s2114 + $0xa] sm:$0x3] %vm1713, %v1332
  %2119 = vst.msk [vmem:[%s2114 + $0x10] sm:$0x3] %vm1713, %v1203
  %2120 = vst.msk [vmem:[%s2114 + $0x12] sm:$0x3] %vm1713, %v1335
  %2121 = vst.msk [vmem:[%s2114 + $0x18] sm:$0x3] %vm1713, %v1204
  %2122 = vst.msk [vmem:[%s2114 + $0x1a] sm:$0x3] %vm1713, %v1338
  %2123 = vst.msk [vmem:[%s2114 + $0x28] sm:$0x3] %vm1713, %v1205
  %2124 = vst.msk [vmem:[%s2114 + $0x2a] sm:$0x3] %vm1713, %v1341
  %2125 = vst.msk [vmem:[%s2114 + $0x30] sm:$0x3] %vm1713, %v1206
  %2126 = vst.msk [vmem:[%s2114 + $0x32] sm:$0x3] %vm1713, %v1344
  %2127 = vst.msk [vmem:[%s2114 + $0x38] sm:$0x3] %vm1713, %v1207
  %2128 = vst.msk [vmem:[%s2114 + $0x3a] sm:$0x3] %vm1713, %v1347
  %2129 = vst.msk [vmem:[%s2114 + $0x40] sm:$0x3] %vm1713, %v1208
  %2130 = vst.msk [vmem:[%s2114 + $0x42] sm:$0x3] %vm1713, %v1350
  %2131 = vst.msk [vmem:[%s2114 + $0xa0] sm:$0x3] %vm1713, %v1217
  %2132 = vst.msk [vmem:[%s2114 + $0xa2] sm:$0x3] %vm1713, %v1377
  %2133 = vst.msk [vmem:[%s2114 + $0xa8] sm:$0x3] %vm1713, %v1218
  %2134 = vst.msk [vmem:[%s2114 + $0xaa] sm:$0x3] %vm1713, %v1380
  %2135 = vst.msk [vmem:[%s2114 + $0xb0] sm:$0x3] %vm1713, %v1219
  %2136 = vst.msk [vmem:[%s2114 + $0xb2] sm:$0x3] %vm1713, %v1383
  %2137 = vst.msk [vmem:[%s2114 + $0xb8] sm:$0x3] %vm1713, %v1220
  %2138 = vst.msk [vmem:[%s2114 + $0xba] sm:$0x3] %vm1713, %v1386
  %2139 = vst.msk [vmem:[%s2114 + $0xc8] sm:$0x3] %vm1713, %v1221
  %2140 = vst.msk [vmem:[%s2114 + $0xca] sm:$0x3] %vm1713, %v1389
  %2141 = vst.msk [vmem:[%s2114 + $0xd0] sm:$0x3] %vm1713, %v1222
  %2142 = vst.msk [vmem:[%s2114 + $0xd2] sm:$0x3] %vm1713, %v1392
  %2143 = vst.msk [vmem:[%s2114 + $0xd8] sm:$0x3] %vm1713, %v1223
  %2144 = vst.msk [vmem:[%s2114 + $0xda] sm:$0x3] %vm1713, %v1395
  %2145 = vst.msk [vmem:[%s2114 + $0xe0] sm:$0x3] %vm1713, %v1224
  %2146 = vst.msk [vmem:[%s2114 + $0xe2] sm:$0x3] %vm1713, %v1398
  %2147 = vst.msk [vmem:[%s2114 + $0x140] sm:$0x3] %vm1713, %v1233
  %2148 = vst.msk [vmem:[%s2114 + $0x142] sm:$0x3] %vm1713, %v1425
  %2149 = vst.msk [vmem:[%s2114 + $0x148] sm:$0x3] %vm1713, %v1234
  %2150 = vst.msk [vmem:[%s2114 + $0x14a] sm:$0x3] %vm1713, %v1428
  %2151 = vst.msk [vmem:[%s2114 + $0x150] sm:$0x3] %vm1713, %v1235
  %2152 = vst.msk [vmem:[%s2114 + $0x152] sm:$0x3] %vm1713, %v1431
  %2153 = vst.msk [vmem:[%s2114 + $0x158] sm:$0x3] %vm1713, %v1236
  %2154 = vst.msk [vmem:[%s2114 + $0x15a] sm:$0x3] %vm1713, %v1434
  %2155 = vst.msk [vmem:[%s2114 + $0x168] sm:$0x3] %vm1713, %v1237
  %2156 = vst.msk [vmem:[%s2114 + $0x16a] sm:$0x3] %vm1713, %v1437
  %2157 = vst.msk [vmem:[%s2114 + $0x170] sm:$0x3] %vm1713, %v1238
  %2158 = vst.msk [vmem:[%s2114 + $0x172] sm:$0x3] %vm1713, %v1440
  %2159 = vst.msk [vmem:[%s2114 + $0x178] sm:$0x3] %vm1713, %v1239
  %2160 = vst.msk [vmem:[%s2114 + $0x17a] sm:$0x3] %vm1713, %v1443
  %2161 = vst.msk [vmem:[%s2114 + $0x180] sm:$0x3] %vm1713, %v1240
  %2162 = vst.msk [vmem:[%s2114 + $0x182] sm:$0x3] %vm1713, %v1446
  %2163 = vst.msk [vmem:[%s2114 + $0x1e0] sm:$0x3] %vm1713, %v1249
  %2164 = vst.msk [vmem:[%s2114 + $0x1e2] sm:$0x3] %vm1713, %v1473
  %2165 = vst.msk [vmem:[%s2114 + $0x1e8] sm:$0x3] %vm1713, %v1250
  %2166 = vst.msk [vmem:[%s2114 + $0x1ea] sm:$0x3] %vm1713, %v1476
  %2167 = vst.msk [vmem:[%s2114 + $0x1f0] sm:$0x3] %vm1713, %v1251
  %2168 = vst.msk [vmem:[%s2114 + $0x1f2] sm:$0x3] %vm1713, %v1479
  %2169 = vst.msk [vmem:[%s2114 + $0x1f8] sm:$0x3] %vm1713, %v1252
  %2170 = vst.msk [vmem:[%s2114 + $0x1fa] sm:$0x3] %vm1713, %v1482
  %2171 = vst.msk [vmem:[%s2114 + $0x208] sm:$0x3] %vm1713, %v1253
  %2172 = vst.msk [vmem:[%s2114 + $0x20a] sm:$0x3] %vm1713, %v1485
  %2173 = vst.msk [vmem:[%s2114 + $0x210] sm:$0x3] %vm1713, %v1254
  %2174 = vst.msk [vmem:[%s2114 + $0x212] sm:$0x3] %vm1713, %v1488
  %2175 = vst.msk [vmem:[%s2114 + $0x218] sm:$0x3] %vm1713, %v1255
  %2176 = vst.msk [vmem:[%s2114 + $0x21a] sm:$0x3] %vm1713, %v1491
  %2177 = vst.msk [vmem:[%s2114 + $0x220] sm:$0x3] %vm1713, %v1256
  %2178 = vst.msk [vmem:[%s2114 + $0x222] sm:$0x3] %vm1713, %v1494
  %s2179 = scalar_lea.vmem [#allocation2], 88
  %2180 = vst.msk [vmem:[%s2179] sm:$0x3] %vm1713, %v1330
  %2181 = vst.msk [vmem:[%s2179 + $0x2] sm:$0x3] %vm1713, %v1331
  %2182 = vst.msk [vmem:[%s2179 + $0x8] sm:$0x3] %vm1713, %v1333
  %2183 = vst.msk [vmem:[%s2179 + $0xa] sm:$0x3] %vm1713, %v1334
  %2184 = vst.msk [vmem:[%s2179 + $0x10] sm:$0x3] %vm1713, %v1336
  %2185 = vst.msk [vmem:[%s2179 + $0x12] sm:$0x3] %vm1713, %v1337
  %2186 = vst.msk [vmem:[%s2179 + $0x18] sm:$0x3] %vm1713, %v1339
  %2187 = vst.msk [vmem:[%s2179 + $0x1a] sm:$0x3] %vm1713, %v1340
  %2188 = vst.msk [vmem:[%s2179 + $0x28] sm:$0x3] %vm1713, %v1342
  %2189 = vst.msk [vmem:[%s2179 + $0x2a] sm:$0x3] %vm1713, %v1343
  %2190 = vst.msk [vmem:[%s2179 + $0x30] sm:$0x3] %vm1713, %v1345
  %2191 = vst.msk [vmem:[%s2179 + $0x32] sm:$0x3] %vm1713, %v1346
  %2192 = vst.msk [vmem:[%s2179 + $0x38] sm:$0x3] %vm1713, %v1348
  %2193 = vst.msk [vmem:[%s2179 + $0x3a] sm:$0x3] %vm1713, %v1349
  %2194 = vst.msk [vmem:[%s2179 + $0x40] sm:$0x3] %vm1713, %v1351
  %2195 = vst.msk [vmem:[%s2179 + $0x42] sm:$0x3] %vm1713, %v1352
  %2196 = vst.msk [vmem:[%s2179 + $0xa0] sm:$0x3] %vm1713, %v1378
  %2197 = vst.msk [vmem:[%s2179 + $0xa2] sm:$0x3] %vm1713, %v1379
  %2198 = vst.msk [vmem:[%s2179 + $0xa8] sm:$0x3] %vm1713, %v1381
  %2199 = vst.msk [vmem:[%s2179 + $0xaa] sm:$0x3] %vm1713, %v1382
  %2200 = vst.msk [vmem:[%s2179 + $0xb0] sm:$0x3] %vm1713, %v1384
  %2201 = vst.msk [vmem:[%s2179 + $0xb2] sm:$0x3] %vm1713, %v1385
  %2202 = vst.msk [vmem:[%s2179 + $0xb8] sm:$0x3] %vm1713, %v1387
  %2203 = vst.msk [vmem:[%s2179 + $0xba] sm:$0x3] %vm1713, %v1388
  %2204 = vst.msk [vmem:[%s2179 + $0xc8] sm:$0x3] %vm1713, %v1390
  %2205 = vst.msk [vmem:[%s2179 + $0xca] sm:$0x3] %vm1713, %v1391
  %2206 = vst.msk [vmem:[%s2179 + $0xd0] sm:$0x3] %vm1713, %v1393
  %2207 = vst.msk [vmem:[%s2179 + $0xd2] sm:$0x3] %vm1713, %v1394
  %2208 = vst.msk [vmem:[%s2179 + $0xd8] sm:$0x3] %vm1713, %v1396
  %2209 = vst.msk [vmem:[%s2179 + $0xda] sm:$0x3] %vm1713, %v1397
  %2210 = vst.msk [vmem:[%s2179 + $0xe0] sm:$0x3] %vm1713, %v1399
  %2211 = vst.msk [vmem:[%s2179 + $0xe2] sm:$0x3] %vm1713, %v1400
  %2212 = vst.msk [vmem:[%s2179 + $0x140] sm:$0x3] %vm1713, %v1426
  %2213 = vst.msk [vmem:[%s2179 + $0x142] sm:$0x3] %vm1713, %v1427
  %2214 = vst.msk [vmem:[%s2179 + $0x148] sm:$0x3] %vm1713, %v1429
  %2215 = vst.msk [vmem:[%s2179 + $0x14a] sm:$0x3] %vm1713, %v1430
  %2216 = vst.msk [vmem:[%s2179 + $0x150] sm:$0x3] %vm1713, %v1432
  %2217 = vst.msk [vmem:[%s2179 + $0x152] sm:$0x3] %vm1713, %v1433
  %2218 = vst.msk [vmem:[%s2179 + $0x158] sm:$0x3] %vm1713, %v1435
  %2219 = vst.msk [vmem:[%s2179 + $0x15a] sm:$0x3] %vm1713, %v1436
  %2220 = vst.msk [vmem:[%s2179 + $0x168] sm:$0x3] %vm1713, %v1438
  %2221 = vst.msk [vmem:[%s2179 + $0x16a] sm:$0x3] %vm1713, %v1439
  %2222 = vst.msk [vmem:[%s2179 + $0x170] sm:$0x3] %vm1713, %v1441
  %2223 = vst.msk [vmem:[%s2179 + $0x172] sm:$0x3] %vm1713, %v1442
  %2224 = vst.msk [vmem:[%s2179 + $0x178] sm:$0x3] %vm1713, %v1444
  %2225 = vst.msk [vmem:[%s2179 + $0x17a] sm:$0x3] %vm1713, %v1445
  %2226 = vst.msk [vmem:[%s2179 + $0x180] sm:$0x3] %vm1713, %v1447
  %2227 = vst.msk [vmem:[%s2179 + $0x182] sm:$0x3] %vm1713, %v1448
  %2228 = vst.msk [vmem:[%s2179 + $0x1e0] sm:$0x3] %vm1713, %v1474
  %2229 = vst.msk [vmem:[%s2179 + $0x1e2] sm:$0x3] %vm1713, %v1475
  %2230 = vst.msk [vmem:[%s2179 + $0x1e8] sm:$0x3] %vm1713, %v1477
  %2231 = vst.msk [vmem:[%s2179 + $0x1ea] sm:$0x3] %vm1713, %v1478
  %2232 = vst.msk [vmem:[%s2179 + $0x1f0] sm:$0x3] %vm1713, %v1480
  %2233 = vst.msk [vmem:[%s2179 + $0x1f2] sm:$0x3] %vm1713, %v1481
  %2234 = vst.msk [vmem:[%s2179 + $0x1f8] sm:$0x3] %vm1713, %v1483
  %2235 = vst.msk [vmem:[%s2179 + $0x1fa] sm:$0x3] %vm1713, %v1484
  %2236 = vst.msk [vmem:[%s2179 + $0x208] sm:$0x3] %vm1713, %v1486
  %2237 = vst.msk [vmem:[%s2179 + $0x20a] sm:$0x3] %vm1713, %v1487
  %2238 = vst.msk [vmem:[%s2179 + $0x210] sm:$0x3] %vm1713, %v1489
  %2239 = vst.msk [vmem:[%s2179 + $0x212] sm:$0x3] %vm1713, %v1490
  %2240 = vst.msk [vmem:[%s2179 + $0x218] sm:$0x3] %vm1713, %v1492
  %2241 = vst.msk [vmem:[%s2179 + $0x21a] sm:$0x3] %vm1713, %v1493
  %2242 = vst.msk [vmem:[%s2179 + $0x220] sm:$0x3] %vm1713, %v1495
  %2243 = vst.msk [vmem:[%s2179 + $0x222] sm:$0x3] %vm1713, %v1496
  %s2244 = scalar_lea.vmem [#allocation2], 164
  %2245 = vst.msk [vmem:[%s2244] sm:$0x3] %vm1713, %v1209
  %2246 = vst.msk [vmem:[%s2244 + $0x2] sm:$0x3] %vm1713, %v1353
  %2247 = vst.msk [vmem:[%s2244 + $0x8] sm:$0x3] %vm1713, %v1210
  %2248 = vst.msk [vmem:[%s2244 + $0xa] sm:$0x3] %vm1713, %v1356
  %2249 = vst.msk [vmem:[%s2244 + $0x10] sm:$0x3] %vm1713, %v1211
  %2250 = vst.msk [vmem:[%s2244 + $0x12] sm:$0x3] %vm1713, %v1359
  %2251 = vst.msk [vmem:[%s2244 + $0x18] sm:$0x3] %vm1713, %v1212
  %2252 = vst.msk [vmem:[%s2244 + $0x1a] sm:$0x3] %vm1713, %v1362
  %2253 = vst.msk [vmem:[%s2244 + $0x28] sm:$0x3] %vm1713, %v1213
  %2254 = vst.msk [vmem:[%s2244 + $0x2a] sm:$0x3] %vm1713, %v1365
  %2255 = vst.msk [vmem:[%s2244 + $0x30] sm:$0x3] %vm1713, %v1214
  %2256 = vst.msk [vmem:[%s2244 + $0x32] sm:$0x3] %vm1713, %v1368
  %2257 = vst.msk [vmem:[%s2244 + $0x38] sm:$0x3] %vm1713, %v1215
  %2258 = vst.msk [vmem:[%s2244 + $0x3a] sm:$0x3] %vm1713, %v1371
  %2259 = vst.msk [vmem:[%s2244 + $0x40] sm:$0x3] %vm1713, %v1216
  %2260 = vst.msk [vmem:[%s2244 + $0x42] sm:$0x3] %vm1713, %v1374
  %2261 = vst.msk [vmem:[%s2244 + $0xa0] sm:$0x3] %vm1713, %v1225
  %2262 = vst.msk [vmem:[%s2244 + $0xa2] sm:$0x3] %vm1713, %v1401
  %2263 = vst.msk [vmem:[%s2244 + $0xa8] sm:$0x3] %vm1713, %v1226
  %2264 = vst.msk [vmem:[%s2244 + $0xaa] sm:$0x3] %vm1713, %v1404
  %2265 = vst.msk [vmem:[%s2244 + $0xb0] sm:$0x3] %vm1713, %v1227
  %2266 = vst.msk [vmem:[%s2244 + $0xb2] sm:$0x3] %vm1713, %v1407
  %2267 = vst.msk [vmem:[%s2244 + $0xb8] sm:$0x3] %vm1713, %v1228
  %2268 = vst.msk [vmem:[%s2244 + $0xba] sm:$0x3] %vm1713, %v1410
  %2269 = vst.msk [vmem:[%s2244 + $0xc8] sm:$0x3] %vm1713, %v1229
  %2270 = vst.msk [vmem:[%s2244 + $0xca] sm:$0x3] %vm1713, %v1413
  %2271 = vst.msk [vmem:[%s2244 + $0xd0] sm:$0x3] %vm1713, %v1230
  %2272 = vst.msk [vmem:[%s2244 + $0xd2] sm:$0x3] %vm1713, %v1416
  %2273 = vst.msk [vmem:[%s2244 + $0xd8] sm:$0x3] %vm1713, %v1231
  %2274 = vst.msk [vmem:[%s2244 + $0xda] sm:$0x3] %vm1713, %v1419
  %2275 = vst.msk [vmem:[%s2244 + $0xe0] sm:$0x3] %vm1713, %v1232
  %2276 = vst.msk [vmem:[%s2244 + $0xe2] sm:$0x3] %vm1713, %v1422
  %2277 = vst.msk [vmem:[%s2244 + $0x140] sm:$0x3] %vm1713, %v1241
  %2278 = vst.msk [vmem:[%s2244 + $0x142] sm:$0x3] %vm1713, %v1449
  %2279 = vst.msk [vmem:[%s2244 + $0x148] sm:$0x3] %vm1713, %v1242
  %2280 = vst.msk [vmem:[%s2244 + $0x14a] sm:$0x3] %vm1713, %v1452
  %2281 = vst.msk [vmem:[%s2244 + $0x150] sm:$0x3] %vm1713, %v1243
  %2282 = vst.msk [vmem:[%s2244 + $0x152] sm:$0x3] %vm1713, %v1455
  %2283 = vst.msk [vmem:[%s2244 + $0x158] sm:$0x3] %vm1713, %v1244
  %2284 = vst.msk [vmem:[%s2244 + $0x15a] sm:$0x3] %vm1713, %v1458
  %2285 = vst.msk [vmem:[%s2244 + $0x168] sm:$0x3] %vm1713, %v1245
  %2286 = vst.msk [vmem:[%s2244 + $0x16a] sm:$0x3] %vm1713, %v1461
  %2287 = vst.msk [vmem:[%s2244 + $0x170] sm:$0x3] %vm1713, %v1246
  %2288 = vst.msk [vmem:[%s2244 + $0x172] sm:$0x3] %vm1713, %v1464
  %2289 = vst.msk [vmem:[%s2244 + $0x178] sm:$0x3] %vm1713, %v1247
  %2290 = vst.msk [vmem:[%s2244 + $0x17a] sm:$0x3] %vm1713, %v1467
  %2291 = vst.msk [vmem:[%s2244 + $0x180] sm:$0x3] %vm1713, %v1248
  %2292 = vst.msk [vmem:[%s2244 + $0x182] sm:$0x3] %vm1713, %v1470
  %2293 = vst.msk [vmem:[%s2244 + $0x1e0] sm:$0x3] %vm1713, %v1257
  %2294 = vst.msk [vmem:[%s2244 + $0x1e2] sm:$0x3] %vm1713, %v1497
  %2295 = vst.msk [vmem:[%s2244 + $0x1e8] sm:$0x3] %vm1713, %v1258
  %2296 = vst.msk [vmem:[%s2244 + $0x1ea] sm:$0x3] %vm1713, %v1500
  %2297 = vst.msk [vmem:[%s2244 + $0x1f0] sm:$0x3] %vm1713, %v1259
  %2298 = vst.msk [vmem:[%s2244 + $0x1f2] sm:$0x3] %vm1713, %v1503
  %2299 = vst.msk [vmem:[%s2244 + $0x1f8] sm:$0x3] %vm1713, %v1260
  %2300 = vst.msk [vmem:[%s2244 + $0x1fa] sm:$0x3] %vm1713, %v1506
  %2301 = vst.msk [vmem:[%s2244 + $0x208] sm:$0x3] %vm1713, %v1261
  %2302 = vst.msk [vmem:[%s2244 + $0x20a] sm:$0x3] %vm1713, %v1509
  %2303 = vst.msk [vmem:[%s2244 + $0x210] sm:$0x3] %vm1713, %v1262
  %2304 = vst.msk [vmem:[%s2244 + $0x212] sm:$0x3] %vm1713, %v1512
  %2305 = vst.msk [vmem:[%s2244 + $0x218] sm:$0x3] %vm1713, %v1263
  %2306 = vst.msk [vmem:[%s2244 + $0x21a] sm:$0x3] %vm1713, %v1515
  %2307 = vst.msk [vmem:[%s2244 + $0x220] sm:$0x3] %vm1713, %v1264
  %2308 = vst.msk [vmem:[%s2244 + $0x222] sm:$0x3] %vm1713, %v1518
  %s2309 = scalar_lea.vmem [#allocation2], 168
  %2310 = vst.msk [vmem:[%s2309] sm:$0x3] %vm1713, %v1354
  %2311 = vst.msk [vmem:[%s2309 + $0x2] sm:$0x3] %vm1713, %v1355
  %2312 = vst.msk [vmem:[%s2309 + $0x8] sm:$0x3] %vm1713, %v1357
  %2313 = vst.msk [vmem:[%s2309 + $0xa] sm:$0x3] %vm1713, %v1358
  %2314 = vst.msk [vmem:[%s2309 + $0x10] sm:$0x3] %vm1713, %v1360
  %2315 = vst.msk [vmem:[%s2309 + $0x12] sm:$0x3] %vm1713, %v1361
  %2316 = vst.msk [vmem:[%s2309 + $0x18] sm:$0x3] %vm1713, %v1363
  %2317 = vst.msk [vmem:[%s2309 + $0x1a] sm:$0x3] %vm1713, %v1364
  %2318 = vst.msk [vmem:[%s2309 + $0x28] sm:$0x3] %vm1713, %v1366
  %2319 = vst.msk [vmem:[%s2309 + $0x2a] sm:$0x3] %vm1713, %v1367
  %2320 = vst.msk [vmem:[%s2309 + $0x30] sm:$0x3] %vm1713, %v1369
  %2321 = vst.msk [vmem:[%s2309 + $0x32] sm:$0x3] %vm1713, %v1370
  %2322 = vst.msk [vmem:[%s2309 + $0x38] sm:$0x3] %vm1713, %v1372
  %2323 = vst.msk [vmem:[%s2309 + $0x3a] sm:$0x3] %vm1713, %v1373
  %2324 = vst.msk [vmem:[%s2309 + $0x40] sm:$0x3] %vm1713, %v1375
  %2325 = vst.msk [vmem:[%s2309 + $0x42] sm:$0x3] %vm1713, %v1376
  %2326 = vst.msk [vmem:[%s2309 + $0xa0] sm:$0x3] %vm1713, %v1402
  %2327 = vst.msk [vmem:[%s2309 + $0xa2] sm:$0x3] %vm1713, %v1403
  %2328 = vst.msk [vmem:[%s2309 + $0xa8] sm:$0x3] %vm1713, %v1405
  %2329 = vst.msk [vmem:[%s2309 + $0xaa] sm:$0x3] %vm1713, %v1406
  %2330 = vst.msk [vmem:[%s2309 + $0xb0] sm:$0x3] %vm1713, %v1408
  %2331 = vst.msk [vmem:[%s2309 + $0xb2] sm:$0x3] %vm1713, %v1409
  %2332 = vst.msk [vmem:[%s2309 + $0xb8] sm:$0x3] %vm1713, %v1411
  %2333 = vst.msk [vmem:[%s2309 + $0xba] sm:$0x3] %vm1713, %v1412
  %2334 = vst.msk [vmem:[%s2309 + $0xc8] sm:$0x3] %vm1713, %v1414
  %2335 = vst.msk [vmem:[%s2309 + $0xca] sm:$0x3] %vm1713, %v1415
  %2336 = vst.msk [vmem:[%s2309 + $0xd0] sm:$0x3] %vm1713, %v1417
  %2337 = vst.msk [vmem:[%s2309 + $0xd2] sm:$0x3] %vm1713, %v1418
  %2338 = vst.msk [vmem:[%s2309 + $0xd8] sm:$0x3] %vm1713, %v1420
  %2339 = vst.msk [vmem:[%s2309 + $0xda] sm:$0x3] %vm1713, %v1421
  %2340 = vst.msk [vmem:[%s2309 + $0xe0] sm:$0x3] %vm1713, %v1423
  %2341 = vst.msk [vmem:[%s2309 + $0xe2] sm:$0x3] %vm1713, %v1424
  %2342 = vst.msk [vmem:[%s2309 + $0x140] sm:$0x3] %vm1713, %v1450
  %2343 = vst.msk [vmem:[%s2309 + $0x142] sm:$0x3] %vm1713, %v1451
  %2344 = vst.msk [vmem:[%s2309 + $0x148] sm:$0x3] %vm1713, %v1453
  %2345 = vst.msk [vmem:[%s2309 + $0x14a] sm:$0x3] %vm1713, %v1454
  %2346 = vst.msk [vmem:[%s2309 + $0x150] sm:$0x3] %vm1713, %v1456
  %2347 = vst.msk [vmem:[%s2309 + $0x152] sm:$0x3] %vm1713, %v1457
  %2348 = vst.msk [vmem:[%s2309 + $0x158] sm:$0x3] %vm1713, %v1459
  %2349 = vst.msk [vmem:[%s2309 + $0x15a] sm:$0x3] %vm1713, %v1460
  %2350 = vst.msk [vmem:[%s2309 + $0x168] sm:$0x3] %vm1713, %v1462
  %2351 = vst.msk [vmem:[%s2309 + $0x16a] sm:$0x3] %vm1713, %v1463
  %2352 = vst.msk [vmem:[%s2309 + $0x170] sm:$0x3] %vm1713, %v1465
  %2353 = vst.msk [vmem:[%s2309 + $0x172] sm:$0x3] %vm1713, %v1466
  %2354 = vst.msk [vmem:[%s2309 + $0x178] sm:$0x3] %vm1713, %v1468
  %2355 = vst.msk [vmem:[%s2309 + $0x17a] sm:$0x3] %vm1713, %v1469
  %2356 = vst.msk [vmem:[%s2309 + $0x180] sm:$0x3] %vm1713, %v1471
  %2357 = vst.msk [vmem:[%s2309 + $0x182] sm:$0x3] %vm1713, %v1472
  %2358 = vst.msk [vmem:[%s2309 + $0x1e0] sm:$0x3] %vm1713, %v1498
  %2359 = vst.msk [vmem:[%s2309 + $0x1e2] sm:$0x3] %vm1713, %v1499
  %2360 = vst.msk [vmem:[%s2309 + $0x1e8] sm:$0x3] %vm1713, %v1501
  %2361 = vst.msk [vmem:[%s2309 + $0x1ea] sm:$0x3] %vm1713, %v1502
  %2362 = vst.msk [vmem:[%s2309 + $0x1f0] sm:$0x3] %vm1713, %v1504
  %2363 = vst.msk [vmem:[%s2309 + $0x1f2] sm:$0x3] %vm1713, %v1505
  %2364 = vst.msk [vmem:[%s2309 + $0x1f8] sm:$0x3] %vm1713, %v1507
  %2365 = vst.msk [vmem:[%s2309 + $0x1fa] sm:$0x3] %vm1713, %v1508
  %2366 = vst.msk [vmem:[%s2309 + $0x208] sm:$0x3] %vm1713, %v1510
  %2367 = vst.msk [vmem:[%s2309 + $0x20a] sm:$0x3] %vm1713, %v1511
  %2368 = vst.msk [vmem:[%s2309 + $0x210] sm:$0x3] %vm1713, %v1513
  %2369 = vst.msk [vmem:[%s2309 + $0x212] sm:$0x3] %vm1713, %v1514
  %2370 = vst.msk [vmem:[%s2309 + $0x218] sm:$0x3] %vm1713, %v1516
  %2371 = vst.msk [vmem:[%s2309 + $0x21a] sm:$0x3] %vm1713, %v1517
  %2372 = vst.msk [vmem:[%s2309 + $0x220] sm:$0x3] %vm1713, %v1519
  %2373 = vst.msk [vmem:[%s2309 + $0x222] sm:$0x3] %vm1713, %v1520
  %v2374 = vld [vmem:[#allocation2] sm:$0x3]
  %v2375 = vld [vmem:[#allocation2 + $0x8] sm:$0x3]
  %v2376 = vld [vmem:[#allocation2 + $0x10] sm:$0x3]
  %v2377 = vld [vmem:[#allocation2 + $0x18] sm:$0x3]
  %v2378 = vld [vmem:[#allocation2 + $0xa0] sm:$0x3]
  %v2379 = vld [vmem:[#allocation2 + $0xa8] sm:$0x3]
  %v2380 = vld [vmem:[#allocation2 + $0xb0] sm:$0x3]
  %v2381 = vld [vmem:[#allocation2 + $0xb8] sm:$0x3]
  %v2382 = vld [vmem:[#allocation2 + $0x140] sm:$0x3]
  %v2383 = vld [vmem:[#allocation2 + $0x148] sm:$0x3]
  %v2384 = vld [vmem:[#allocation2 + $0x150] sm:$0x3]
  %v2385 = vld [vmem:[#allocation2 + $0x158] sm:$0x3]
  %v2386 = vld [vmem:[#allocation2 + $0x1e0] sm:$0x3]
  %v2387 = vld [vmem:[#allocation2 + $0x1e8] sm:$0x3]
  %v2388 = vld [vmem:[#allocation2 + $0x1f0] sm:$0x3]
  %v2389 = vld [vmem:[#allocation2 + $0x1f8] sm:$0x3]
  %2406 = vst [vmem:[#allocation1] ss:$4 sm:$0xff] %v2374
  %s2407 = scalar_lea.vmem [#allocation1], 1
  %2408 = vst [vmem:[%s2407] ss:$4 sm:$0xff] %v2375
  %s2409 = scalar_lea.vmem [#allocation1], 2
  %2410 = vst [vmem:[%s2409] ss:$4 sm:$0xff] %v2376
  %s2411 = scalar_lea.vmem [#allocation1], 3
  %2412 = vst [vmem:[%s2411] ss:$4 sm:$0xff] %v2377
  %s2413 = scalar_lea.vmem [#allocation1], 32
  %2414 = vst [vmem:[%s2413] ss:$4 sm:$0xff] %v2378
  %s2415 = scalar_lea.vmem [#allocation1], 33
  %2416 = vst [vmem:[%s2415] ss:$4 sm:$0xff] %v2379
  %s2417 = scalar_lea.vmem [#allocation1], 34
  %2418 = vst [vmem:[%s2417] ss:$4 sm:$0xff] %v2380
  %s2419 = scalar_lea.vmem [#allocation1], 35
  %2420 = vst [vmem:[%s2419] ss:$4 sm:$0xff] %v2381
  %v2421 = vld.sshfl [vmem:[#allocation1] sm:$0xff pattern:$0x73625140]
  %v2422 = vld.sshfl [vmem:[#allocation1 + $0x20] sm:$0xff pattern:$0x73625140]
  %2423 = vst [vmem:[#allocation1] ss:$4 sm:$0xff] %v2382
  %2424 = vst [vmem:[%s2407] ss:$4 sm:$0xff] %v2383
  %2425 = vst [vmem:[%s2409] ss:$4 sm:$0xff] %v2384
  %2426 = vst [vmem:[%s2411] ss:$4 sm:$0xff] %v2385
  %2427 = vst [vmem:[%s2413] ss:$4 sm:$0xff] %v2386
  %2428 = vst [vmem:[%s2415] ss:$4 sm:$0xff] %v2387
  %2429 = vst [vmem:[%s2417] ss:$4 sm:$0xff] %v2388
  %2430 = vst [vmem:[%s2419] ss:$4 sm:$0xff] %v2389
  %v2431 = vld.sshfl [vmem:[#allocation1] sm:$0xff pattern:$0x73625140]
  %v2432 = vld.sshfl [vmem:[#allocation1 + $0x20] sm:$0xff pattern:$0x73625140]
  %v2437 = vpack.c.bf16 %v2422, %v2421
  %v2438 = vpack.c.bf16 %v2432, %v2431
  %v2439 = vld [vmem:[%s3] sm:$0xf]
  %v2440 = vld [vmem:[%s3 + $0x4] sm:$0xf]
  %v2441 = vld [vmem:[%s3 + $0x8] sm:$0xf]
  %v2442 = vld [vmem:[%s3 + $0xc] sm:$0xf]
  %s2443 = scalar_lea.vmem [#allocation2], 2
  %v2444 = vld [vmem:[%s2443] sm:$0x3]
  %v2445 = vld [vmem:[%s2443 + $0x8] sm:$0x3]
  %v2446 = vld [vmem:[%s2443 + $0x10] sm:$0x3]
  %v2447 = vld [vmem:[%s2443 + $0x18] sm:$0x3]
  %v2448 = vld [vmem:[%s2443 + $0xa0] sm:$0x3]
  %v2449 = vld [vmem:[%s2443 + $0xa8] sm:$0x3]
  %v2450 = vld [vmem:[%s2443 + $0xb0] sm:$0x3]
  %v2451 = vld [vmem:[%s2443 + $0xb8] sm:$0x3]
  %v2452 = vld [vmem:[%s2443 + $0x140] sm:$0x3]
  %v2453 = vld [vmem:[%s2443 + $0x148] sm:$0x3]
  %v2454 = vld [vmem:[%s2443 + $0x150] sm:$0x3]
  %v2455 = vld [vmem:[%s2443 + $0x158] sm:$0x3]
  %v2456 = vld [vmem:[%s2443 + $0x1e0] sm:$0x3]
  %v2457 = vld [vmem:[%s2443 + $0x1e8] sm:$0x3]
  %v2458 = vld [vmem:[%s2443 + $0x1f0] sm:$0x3]
  %v2459 = vld [vmem:[%s2443 + $0x1f8] sm:$0x3]
  %2476 = vst [vmem:[#allocation1] ss:$4 sm:$0xff] %v2444
  %s2477 = scalar_lea.vmem [#allocation1], 1
  %2478 = vst [vmem:[%s2477] ss:$4 sm:$0xff] %v2445
  %s2479 = scalar_lea.vmem [#allocation1], 2
  %2480 = vst [vmem:[%s2479] ss:$4 sm:$0xff] %v2446
  %s2481 = scalar_lea.vmem [#allocation1], 3
  %2482 = vst [vmem:[%s2481] ss:$4 sm:$0xff] %v2447
  %s2483 = scalar_lea.vmem [#allocation1], 32
  %2484 = vst [vmem:[%s2483] ss:$4 sm:$0xff] %v2448
  %s2485 = scalar_lea.vmem [#allocation1], 33
  %2486 = vst [vmem:[%s2485] ss:$4 sm:$0xff] %v2449
  %s2487 = scalar_lea.vmem [#allocation1], 34
  %2488 = vst [vmem:[%s2487] ss:$4 sm:$0xff] %v2450
  %s2489 = scalar_lea.vmem [#allocation1], 35
  %2490 = vst [vmem:[%s2489] ss:$4 sm:$0xff] %v2451
  %v2491 = vld.sshfl [vmem:[#allocation1] sm:$0xff pattern:$0x73625140]
  %v2492 = vld.sshfl [vmem:[#allocation1 + $0x20] sm:$0xff pattern:$0x73625140]
  %2493 = vst [vmem:[#allocation1] ss:$4 sm:$0xff] %v2452
  %2494 = vst [vmem:[%s2477] ss:$4 sm:$0xff] %v2453
  %2495 = vst [vmem:[%s2479] ss:$4 sm:$0xff] %v2454
  %2496 = vst [vmem:[%s2481] ss:$4 sm:$0xff] %v2455
  %2497 = vst [vmem:[%s2483] ss:$4 sm:$0xff] %v2456
  %2498 = vst [vmem:[%s2485] ss:$4 sm:$0xff] %v2457
  %2499 = vst [vmem:[%s2487] ss:$4 sm:$0xff] %v2458
  %2500 = vst [vmem:[%s2489] ss:$4 sm:$0xff] %v2459
  %v2501 = vld.sshfl [vmem:[#allocation1] sm:$0xff pattern:$0x73625140]
  %v2502 = vld.sshfl [vmem:[#allocation1 + $0x20] sm:$0xff pattern:$0x73625140]
  %v2507 = vpack.c.bf16 %v2492, %v2491
  %v2508 = vpack.c.bf16 %v2502, %v2501
  %s2509 = scalar_lea.vmem %s3, 16
  %v2510 = vld [vmem:[%s2509] sm:$0xf]
  %v2511 = vld [vmem:[%s2509 + $0x4] sm:$0xf]
  %v2512 = vld [vmem:[%s2509 + $0x8] sm:$0xf]
  %v2513 = vld [vmem:[%s2509 + $0xc] sm:$0xf]
  %v2518 = vunpack.c.l.b16 %v2510
  %v2519 = vunpack.c.l.b16 %v2511
  %v2520 = vunpack.c.l.b16 %v2512
  %v2521 = vunpack.c.l.b16 %v2513
  %v2522 = vpack.c.b16 %v2519, %v2518
  %v2523 = vpack.c.b16 %v2521, %v2520
  %vm2526 = vcmask 261120
  %v2528 = vsel %vm2526, %v2507, 0
  %v2531 = vsel %vm2526, %v2508, 0
  %2533 = vmatpush.bf16.msra.mxu0 0
  %2534 = vmatpush.bf16.msra.mxu0 0
  %2535 = vmatpush.bf16.msra.mxu0 0
  %2536 = vmatpush.bf16.msra.mxu0 0
  %2537 = vmatpush.bf16.msra.mxu0 0
  %2538 = vmatpush.bf16.msra.mxu0 0
  %2539 = vmatpush.bf16.msra.mxu0 %v2523
  %2540 = vmatpush.bf16.msra.mxu0 %v2522
  %2541 = vmatmul.bf16.gmra.mxu0 %v2528
  %v2542 = vpop.f32.mrf.mxu0
  %v2543 = vadd.f32 0.0, %v2542
  %v2544 = vpop.f32.mrf.mxu0
  %v2545 = vadd.f32 0.0, %v2544
  %2546 = vmatmul.bf16.gmra.mxu0 %v2531
  %v2547 = vpop.f32.mrf.mxu0
  %v2548 = vadd.f32 0.0, %v2547
  %v2549 = vpop.f32.mrf.mxu0
  %v2550 = vadd.f32 0.0, %v2549
  %2551 = vdwg.mxu0
  %v2556 = vunpack.c.l.b16 %v2439
  %v2557 = vunpack.c.l.b16 %v2440
  %v2558 = vunpack.c.l.b16 %v2441
  %v2559 = vunpack.c.l.b16 %v2442
  %v2560 = vpack.c.b16 %v2557, %v2556
  %v2561 = vpack.c.b16 %v2559, %v2558
  %v2565 = vsel %vm2526, %v2437, 0
  %v2568 = vsel %vm2526, %v2438, 0
  %2570 = vmatpush.bf16.msra.mxu0 0
  %2571 = vmatpush.bf16.msra.mxu0 0
  %2572 = vmatpush.bf16.msra.mxu0 0
  %2573 = vmatpush.bf16.msra.mxu0 0
  %2574 = vmatpush.bf16.msra.mxu0 0
  %2575 = vmatpush.bf16.msra.mxu0 0
  %2576 = vmatpush.bf16.msra.mxu0 %v2561
  %2577 = vmatpush.bf16.msra.mxu0 %v2560
  %2578 = vmatmul.bf16.gmra.mxu0 %v2565
  %v2579 = vpop.f32.mrf.mxu0
  %v2580 = vadd.f32 %v2543, %v2579
  %v2581 = vpop.f32.mrf.mxu0
  %v2582 = vadd.f32 %v2545, %v2581
  %2583 = vmatmul.bf16.gmra.mxu0 %v2568
  %v2584 = vpop.f32.mrf.mxu0
  %v2585 = vadd.f32 %v2548, %v2584
  %v2586 = vpop.f32.mrf.mxu0
  %v2587 = vadd.f32 %v2550, %v2586
  %2588 = vdwg.mxu0
  %s2589 = scalar_lea.vmem [#allocation2], 4
  %v2590 = vld [vmem:[%s2589] sm:$0x3]
  %v2591 = vld [vmem:[%s2589 + $0x8] sm:$0x3]
  %v2592 = vld [vmem:[%s2589 + $0x10] sm:$0x3]
  %v2593 = vld [vmem:[%s2589 + $0x18] sm:$0x3]
  %v2594 = vld [vmem:[%s2589 + $0xa0] sm:$0x3]
  %v2595 = vld [vmem:[%s2589 + $0xa8] sm:$0x3]
  %v2596 = vld [vmem:[%s2589 + $0xb0] sm:$0x3]
  %v2597 = vld [vmem:[%s2589 + $0xb8] sm:$0x3]
  %v2598 = vld [vmem:[%s2589 + $0x140] sm:$0x3]
  %v2599 = vld [vmem:[%s2589 + $0x148] sm:$0x3]
  %v2600 = vld [vmem:[%s2589 + $0x150] sm:$0x3]
  %v2601 = vld [vmem:[%s2589 + $0x158] sm:$0x3]
  %v2602 = vld [vmem:[%s2589 + $0x1e0] sm:$0x3]
  %v2603 = vld [vmem:[%s2589 + $0x1e8] sm:$0x3]
  %v2604 = vld [vmem:[%s2589 + $0x1f0] sm:$0x3]
  %v2605 = vld [vmem:[%s2589 + $0x1f8] sm:$0x3]
  %2622 = vst [vmem:[#allocation1] ss:$4 sm:$0xff] %v2590
  %s2623 = scalar_lea.vmem [#allocation1], 1
  %2624 = vst [vmem:[%s2623] ss:$4 sm:$0xff] %v2591
  %s2625 = scalar_lea.vmem [#allocation1], 2
  %2626 = vst [vmem:[%s2625] ss:$4 sm:$0xff] %v2592
  %s2627 = scalar_lea.vmem [#allocation1], 3
  %2628 = vst [vmem:[%s2627] ss:$4 sm:$0xff] %v2593
  %s2629 = scalar_lea.vmem [#allocation1], 32
  %2630 = vst [vmem:[%s2629] ss:$4 sm:$0xff] %v2594
  %s2631 = scalar_lea.vmem [#allocation1], 33
  %2632 = vst [vmem:[%s2631] ss:$4 sm:$0xff] %v2595
  %s2633 = scalar_lea.vmem [#allocation1], 34
  %2634 = vst [vmem:[%s2633] ss:$4 sm:$0xff] %v2596
  %s2635 = scalar_lea.vmem [#allocation1], 35
  %2636 = vst [vmem:[%s2635] ss:$4 sm:$0xff] %v2597
  %v2637 = vld.sshfl [vmem:[#allocation1] sm:$0xff pattern:$0x73625140]
  %v2638 = vld.sshfl [vmem:[#allocation1 + $0x20] sm:$0xff pattern:$0x73625140]
  %2639 = vst [vmem:[#allocation1] ss:$4 sm:$0xff] %v2598
  %2640 = vst [vmem:[%s2623] ss:$4 sm:$0xff] %v2599
  %2641 = vst [vmem:[%s2625] ss:$4 sm:$0xff] %v2600
  %2642 = vst [vmem:[%s2627] ss:$4 sm:$0xff] %v2601
  %2643 = vst [vmem:[%s2629] ss:$4 sm:$0xff] %v2602
  %2644 = vst [vmem:[%s2631] ss:$4 sm:$0xff] %v2603
  %2645 = vst [vmem:[%s2633] ss:$4 sm:$0xff] %v2604
  %2646 = vst [vmem:[%s2635] ss:$4 sm:$0xff] %v2605
  %v2647 = vld.sshfl [vmem:[#allocation1] sm:$0xff pattern:$0x73625140]
  %v2648 = vld.sshfl [vmem:[#allocation1 + $0x20] sm:$0xff pattern:$0x73625140]
  %v2653 = vpack.c.bf16 %v2638, %v2637
  %v2654 = vpack.c.bf16 %v2648, %v2647
  %s2655 = scalar_lea.vmem %s3, 32
  %v2656 = vld [vmem:[%s2655] sm:$0xf]
  %v2657 = vld [vmem:[%s2655 + $0x4] sm:$0xf]
  %v2658 = vld [vmem:[%s2655 + $0x8] sm:$0xf]
  %v2659 = vld [vmem:[%s2655 + $0xc] sm:$0xf]
  %v2664 = vunpack.c.l.b16 %v2656
  %v2665 = vunpack.c.l.b16 %v2657
  %v2666 = vunpack.c.l.b16 %v2658
  %v2667 = vunpack.c.l.b16 %v2659
  %v2668 = vpack.c.b16 %v2665, %v2664
  %v2669 = vpack.c.b16 %v2667, %v2666
  %v2673 = vsel %vm2526, %v2653, 0
  %v2676 = vsel %vm2526, %v2654, 0
  %2678 = vmatpush.bf16.msra.mxu0 0
  %2679 = vmatpush.bf16.msra.mxu0 0
  %2680 = vmatpush.bf16.msra.mxu0 0
  %2681 = vmatpush.bf16.msra.mxu0 0
  %2682 = vmatpush.bf16.msra.mxu0 0
  %2683 = vmatpush.bf16.msra.mxu0 0
  %2684 = vmatpush.bf16.msra.mxu0 %v2669
  %2685 = vmatpush.bf16.msra.mxu0 %v2668
  %2686 = vmatmul.bf16.gmra.mxu0 %v2673
  %v2687 = vpop.f32.mrf.mxu0
  %v2688 = vadd.f32 0.0, %v2687
  %v2689 = vpop.f32.mrf.mxu0
  %v2690 = vadd.f32 0.0, %v2689
  %2691 = vmatmul.bf16.gmra.mxu0 %v2676
  %v2692 = vpop.f32.mrf.mxu0
  %v2693 = vadd.f32 0.0, %v2692
  %v2694 = vpop.f32.mrf.mxu0
  %v2695 = vadd.f32 0.0, %v2694
  %2696 = vdwg.mxu0
  %v2697 = vadd.f32 %v2580, %v2688
  %v2698 = vadd.f32 %v2582, %v2690
  %v2699 = vadd.f32 %v2585, %v2693
  %v2700 = vadd.f32 %v2587, %v2695
  %s2701 = scalar_lea.vmem [#allocation2], 6
  %v2702 = vld [vmem:[%s2701] sm:$0x3]
  %v2703 = vld [vmem:[%s2701 + $0x8] sm:$0x3]
  %v2704 = vld [vmem:[%s2701 + $0x10] sm:$0x3]
  %v2705 = vld [vmem:[%s2701 + $0x18] sm:$0x3]
  %v2706 = vld [vmem:[%s2701 + $0xa0] sm:$0x3]
  %v2707 = vld [vmem:[%s2701 + $0xa8] sm:$0x3]
  %v2708 = vld [vmem:[%s2701 + $0xb0] sm:$0x3]
  %v2709 = vld [vmem:[%s2701 + $0xb8] sm:$0x3]
  %v2710 = vld [vmem:[%s2701 + $0x140] sm:$0x3]
  %v2711 = vld [vmem:[%s2701 + $0x148] sm:$0x3]
  %v2712 = vld [vmem:[%s2701 + $0x150] sm:$0x3]
  %v2713 = vld [vmem:[%s2701 + $0x158] sm:$0x3]
  %v2714 = vld [vmem:[%s2701 + $0x1e0] sm:$0x3]
  %v2715 = vld [vmem:[%s2701 + $0x1e8] sm:$0x3]
  %v2716 = vld [vmem:[%s2701 + $0x1f0] sm:$0x3]
  %v2717 = vld [vmem:[%s2701 + $0x1f8] sm:$0x3]
  %2734 = vst [vmem:[#allocation1] ss:$4 sm:$0xff] %v2702
  %s2735 = scalar_lea.vmem [#allocation1], 1
  %2736 = vst [vmem:[%s2735] ss:$4 sm:$0xff] %v2703
  %s2737 = scalar_lea.vmem [#allocation1], 2
  %2738 = vst [vmem:[%s2737] ss:$4 sm:$0xff] %v2704
  %s2739 = scalar_lea.vmem [#allocation1], 3
  %2740 = vst [vmem:[%s2739] ss:$4 sm:$0xff] %v2705
  %s2741 = scalar_lea.vmem [#allocation1], 32
  %2742 = vst [vmem:[%s2741] ss:$4 sm:$0xff] %v2706
  %s2743 = scalar_lea.vmem [#allocation1], 33
  %2744 = vst [vmem:[%s2743] ss:$4 sm:$0xff] %v2707
  %s2745 = scalar_lea.vmem [#allocation1], 34
  %2746 = vst [vmem:[%s2745] ss:$4 sm:$0xff] %v2708
  %s2747 = scalar_lea.vmem [#allocation1], 35
  %2748 = vst [vmem:[%s2747] ss:$4 sm:$0xff] %v2709
  %v2749 = vld.sshfl [vmem:[#allocation1] sm:$0xff pattern:$0x73625140]
  %v2750 = vld.sshfl [vmem:[#allocation1 + $0x20] sm:$0xff pattern:$0x73625140]
  %2751 = vst [vmem:[#allocation1] ss:$4 sm:$0xff] %v2710
  %2752 = vst [vmem:[%s2735] ss:$4 sm:$0xff] %v2711
  %2753 = vst [vmem:[%s2737] ss:$4 sm:$0xff] %v2712
  %2754 = vst [vmem:[%s2739] ss:$4 sm:$0xff] %v2713
  %2755 = vst [vmem:[%s2741] ss:$4 sm:$0xff] %v2714
  %2756 = vst [vmem:[%s2743] ss:$4 sm:$0xff] %v2715
  %2757 = vst [vmem:[%s2745] ss:$4 sm:$0xff] %v2716
  %2758 = vst [vmem:[%s2747] ss:$4 sm:$0xff] %v2717
  %v2759 = vld.sshfl [vmem:[#allocation1] sm:$0xff pattern:$0x73625140]
  %v2760 = vld.sshfl [vmem:[#allocation1 + $0x20] sm:$0xff pattern:$0x73625140]
  %v2765 = vpack.c.bf16 %v2750, %v2749
  %v2766 = vpack.c.bf16 %v2760, %v2759
  %s2767 = scalar_lea.vmem %s3, 48
  %v2768 = vld [vmem:[%s2767] sm:$0xf]
  %v2769 = vld [vmem:[%s2767 + $0x4] sm:$0xf]
  %v2770 = vld [vmem:[%s2767 + $0x8] sm:$0xf]
  %v2771 = vld [vmem:[%s2767 + $0xc] sm:$0xf]
  %v2776 = vunpack.c.l.b16 %v2768
  %v2777 = vunpack.c.l.b16 %v2769
  %v2778 = vunpack.c.l.b16 %v2770
  %v2779 = vunpack.c.l.b16 %v2771
  %v2780 = vpack.c.b16 %v2777, %v2776
  %v2781 = vpack.c.b16 %v2779, %v2778
  %v2785 = vsel %vm2526, %v2765, 0
  %v2788 = vsel %vm2526, %v2766, 0
  %2790 = vmatpush.bf16.msra.mxu0 0
  %2791 = vmatpush.bf16.msra.mxu0 0
  %2792 = vmatpush.bf16.msra.mxu0 0
  %2793 = vmatpush.bf16.msra.mxu0 0
  %2794 = vmatpush.bf16.msra.mxu0 0
  %2795 = vmatpush.bf16.msra.mxu0 0
  %2796 = vmatpush.bf16.msra.mxu0 %v2781
  %2797 = vmatpush.bf16.msra.mxu0 %v2780
  %2798 = vmatmul.bf16.gmra.mxu0 %v2785
  %v2799 = vpop.f32.mrf.mxu0
  %v2800 = vadd.f32 0.0, %v2799
  %v2801 = vpop.f32.mrf.mxu0
  %v2802 = vadd.f32 0.0, %v2801
  %2803 = vmatmul.bf16.gmra.mxu0 %v2788
  %v2804 = vpop.f32.mrf.mxu0
  %v2805 = vadd.f32 0.0, %v2804
  %v2806 = vpop.f32.mrf.mxu0
  %v2807 = vadd.f32 0.0, %v2806
  %2808 = vdwg.mxu0
  %v2809 = vadd.f32 %v2697, %v2800
  %v2810 = vadd.f32 %v2698, %v2802
  %v2811 = vadd.f32 %v2699, %v2805
  %v2812 = vadd.f32 %v2700, %v2807
  %s2813 = scalar_lea.vmem [#allocation2], 8
  %v2814 = vld [vmem:[%s2813] sm:$0x3]
  %v2815 = vld [vmem:[%s2813 + $0x8] sm:$0x3]
  %v2816 = vld [vmem:[%s2813 + $0x10] sm:$0x3]
  %v2817 = vld [vmem:[%s2813 + $0x18] sm:$0x3]
  %v2818 = vld [vmem:[%s2813 + $0xa0] sm:$0x3]
  %v2819 = vld [vmem:[%s2813 + $0xa8] sm:$0x3]
  %v2820 = vld [vmem:[%s2813 + $0xb0] sm:$0x3]
  %v2821 = vld [vmem:[%s2813 + $0xb8] sm:$0x3]
  %v2822 = vld [vmem:[%s2813 + $0x140] sm:$0x3]
  %v2823 = vld [vmem:[%s2813 + $0x148] sm:$0x3]
  %v2824 = vld [vmem:[%s2813 + $0x150] sm:$0x3]
  %v2825 = vld [vmem:[%s2813 + $0x158] sm:$0x3]
  %v2826 = vld [vmem:[%s2813 + $0x1e0] sm:$0x3]
  %v2827 = vld [vmem:[%s2813 + $0x1e8] sm:$0x3]
  %v2828 = vld [vmem:[%s2813 + $0x1f0] sm:$0x3]
  %v2829 = vld [vmem:[%s2813 + $0x1f8] sm:$0x3]
  %2846 = vst [vmem:[#allocation1] ss:$4 sm:$0xff] %v2814
  %s2847 = scalar_lea.vmem [#allocation1], 1
  %2848 = vst [vmem:[%s2847] ss:$4 sm:$0xff] %v2815
  %s2849 = scalar_lea.vmem [#allocation1], 2
  %2850 = vst [vmem:[%s2849] ss:$4 sm:$0xff] %v2816
  %s2851 = scalar_lea.vmem [#allocation1], 3
  %2852 = vst [vmem:[%s2851] ss:$4 sm:$0xff] %v2817
  %s2853 = scalar_lea.vmem [#allocation1], 32
  %2854 = vst [vmem:[%s2853] ss:$4 sm:$0xff] %v2818
  %s2855 = scalar_lea.vmem [#allocation1], 33
  %2856 = vst [vmem:[%s2855] ss:$4 sm:$0xff] %v2819
  %s2857 = scalar_lea.vmem [#allocation1], 34
  %2858 = vst [vmem:[%s2857] ss:$4 sm:$0xff] %v2820
  %s2859 = scalar_lea.vmem [#allocation1], 35
  %2860 = vst [vmem:[%s2859] ss:$4 sm:$0xff] %v2821
  %v2861 = vld.sshfl [vmem:[#allocation1] sm:$0xff pattern:$0x73625140]
  %v2862 = vld.sshfl [vmem:[#allocation1 + $0x20] sm:$0xff pattern:$0x73625140]
  %2863 = vst [vmem:[#allocation1] ss:$4 sm:$0xff] %v2822
  %2864 = vst [vmem:[%s2847] ss:$4 sm:$0xff] %v2823
  %2865 = vst [vmem:[%s2849] ss:$4 sm:$0xff] %v2824
  %2866 = vst [vmem:[%s2851] ss:$4 sm:$0xff] %v2825
  %2867 = vst [vmem:[%s2853] ss:$4 sm:$0xff] %v2826
  %2868 = vst [vmem:[%s2855] ss:$4 sm:$0xff] %v2827
  %2869 = vst [vmem:[%s2857] ss:$4 sm:$0xff] %v2828
  %2870 = vst [vmem:[%s2859] ss:$4 sm:$0xff] %v2829
  %v2871 = vld.sshfl [vmem:[#allocation1] sm:$0xff pattern:$0x73625140]
  %v2872 = vld.sshfl [vmem:[#allocation1 + $0x20] sm:$0xff pattern:$0x73625140]
  %v2877 = vpack.c.bf16 %v2862, %v2861
  %v2878 = vpack.c.bf16 %v2872, %v2871
  %s2879 = scalar_lea.vmem %s3, 64
  %v2880 = vld [vmem:[%s2879] sm:$0xf]
  %v2881 = vld [vmem:[%s2879 + $0x4] sm:$0xf]
  %v2882 = vld [vmem:[%s2879 + $0x8] sm:$0xf]
  %v2883 = vld [vmem:[%s2879 + $0xc] sm:$0xf]
  %v2888 = vunpack.c.l.b16 %v2880
  %v2889 = vunpack.c.l.b16 %v2881
  %v2890 = vunpack.c.l.b16 %v2882
  %v2891 = vunpack.c.l.b16 %v2883
  %v2892 = vpack.c.b16 %v2889, %v2888
  %v2893 = vpack.c.b16 %v2891, %v2890
  %v2897 = vsel %vm2526, %v2877, 0
  %v2900 = vsel %vm2526, %v2878, 0
  %2902 = vmatpush.bf16.msra.mxu0 0
  %2903 = vmatpush.bf16.msra.mxu0 0
  %2904 = vmatpush.bf16.msra.mxu0 0
  %2905 = vmatpush.bf16.msra.mxu0 0
  %2906 = vmatpush.bf16.msra.mxu0 0
  %2907 = vmatpush.bf16.msra.mxu0 0
  %2908 = vmatpush.bf16.msra.mxu0 %v2893
  %2909 = vmatpush.bf16.msra.mxu0 %v2892
  %2910 = vmatmul.bf16.gmra.mxu0 %v2897
  %v2911 = vpop.f32.mrf.mxu0
  %v2912 = vadd.f32 0.0, %v2911
  %v2913 = vpop.f32.mrf.mxu0
  %v2914 = vadd.f32 0.0, %v2913
  %2915 = vmatmul.bf16.gmra.mxu0 %v2900
  %v2916 = vpop.f32.mrf.mxu0
  %v2917 = vadd.f32 0.0, %v2916
  %v2918 = vpop.f32.mrf.mxu0
  %v2919 = vadd.f32 0.0, %v2918
  %2920 = vdwg.mxu0
  %v2921 = vadd.f32 %v2809, %v2912
  %v2922 = vadd.f32 %v2810, %v2914
  %v2923 = vadd.f32 %v2811, %v2917
  %v2924 = vadd.f32 %v2812, %v2919
  %s2925 = scalar_lea.vmem [#allocation2], 40
  %v2926 = vld [vmem:[%s2925] sm:$0x3]
  %v2927 = vld [vmem:[%s2925 + $0x8] sm:$0x3]
  %v2928 = vld [vmem:[%s2925 + $0x10] sm:$0x3]
  %v2929 = vld [vmem:[%s2925 + $0x18] sm:$0x3]
  %v2930 = vld [vmem:[%s2925 + $0xa0] sm:$0x3]
  %v2931 = vld [vmem:[%s2925 + $0xa8] sm:$0x3]
  %v2932 = vld [vmem:[%s2925 + $0xb0] sm:$0x3]
  %v2933 = vld [vmem:[%s2925 + $0xb8] sm:$0x3]
  %v2934 = vld [vmem:[%s2925 + $0x140] sm:$0x3]
  %v2935 = vld [vmem:[%s2925 + $0x148] sm:$0x3]
  %v2936 = vld [vmem:[%s2925 + $0x150] sm:$0x3]
  %v2937 = vld [vmem:[%s2925 + $0x158] sm:$0x3]
  %v2938 = vld [vmem:[%s2925 + $0x1e0] sm:$0x3]
  %v2939 = vld [vmem:[%s2925 + $0x1e8] sm:$0x3]
  %v2940 = vld [vmem:[%s2925 + $0x1f0] sm:$0x3]
  %v2941 = vld [vmem:[%s2925 + $0x1f8] sm:$0x3]
  %2958 = vst [vmem:[#allocation1] ss:$4 sm:$0xff] %v2926
  %s2959 = scalar_lea.vmem [#allocation1], 1
  %2960 = vst [vmem:[%s2959] ss:$4 sm:$0xff] %v2927
  %s2961 = scalar_lea.vmem [#allocation1], 2
  %2962 = vst [vmem:[%s2961] ss:$4 sm:$0xff] %v2928
  %s2963 = scalar_lea.vmem [#allocation1], 3
  %2964 = vst [vmem:[%s2963] ss:$4 sm:$0xff] %v2929
  %s2965 = scalar_lea.vmem [#allocation1], 32
  %2966 = vst [vmem:[%s2965] ss:$4 sm:$0xff] %v2930
  %s2967 = scalar_lea.vmem [#allocation1], 33
  %2968 = vst [vmem:[%s2967] ss:$4 sm:$0xff] %v2931
  %s2969 = scalar_lea.vmem [#allocation1], 34
  %2970 = vst [vmem:[%s2969] ss:$4 sm:$0xff] %v2932
  %s2971 = scalar_lea.vmem [#allocation1], 35
  %2972 = vst [vmem:[%s2971] ss:$4 sm:$0xff] %v2933
  %v2973 = vld.sshfl [vmem:[#allocation1] sm:$0xff pattern:$0x73625140]
  %v2974 = vld.sshfl [vmem:[#allocation1 + $0x20] sm:$0xff pattern:$0x73625140]
  %2975 = vst [vmem:[#allocation1] ss:$4 sm:$0xff] %v2934
  %2976 = vst [vmem:[%s2959] ss:$4 sm:$0xff] %v2935
  %2977 = vst [vmem:[%s2961] ss:$4 sm:$0xff] %v2936
  %2978 = vst [vmem:[%s2963] ss:$4 sm:$0xff] %v2937
  %2979 = vst [vmem:[%s2965] ss:$4 sm:$0xff] %v2938
  %2980 = vst [vmem:[%s2967] ss:$4 sm:$0xff] %v2939
  %2981 = vst [vmem:[%s2969] ss:$4 sm:$0xff] %v2940
  %2982 = vst [vmem:[%s2971] ss:$4 sm:$0xff] %v2941
  %v2983 = vld.sshfl [vmem:[#allocation1] sm:$0xff pattern:$0x73625140]
  %v2984 = vld.sshfl [vmem:[#allocation1 + $0x20] sm:$0xff pattern:$0x73625140]
  %v2989 = vpack.c.bf16 %v2974, %v2973
  %v2990 = vpack.c.bf16 %v2984, %v2983
  %s2991 = scalar_lea.vmem %s3, 80
  %v2992 = vld [vmem:[%s2991] sm:$0xf]
  %v2993 = vld [vmem:[%s2991 + $0x4] sm:$0xf]
  %v2994 = vld [vmem:[%s2991 + $0x8] sm:$0xf]
  %v2995 = vld [vmem:[%s2991 + $0xc] sm:$0xf]
  %v3000 = vunpack.c.l.b16 %v2992
  %v3001 = vunpack.c.l.b16 %v2993
  %v3002 = vunpack.c.l.b16 %v2994
  %v3003 = vunpack.c.l.b16 %v2995
  %v3004 = vpack.c.b16 %v3001, %v3000
  %v3005 = vpack.c.b16 %v3003, %v3002
  %v3009 = vsel %vm2526, %v2989, 0
  %v3012 = vsel %vm2526, %v2990, 0
  %3014 = vmatpush.bf16.msra.mxu0 0
  %3015 = vmatpush.bf16.msra.mxu0 0
  %3016 = vmatpush.bf16.msra.mxu0 0
  %3017 = vmatpush.bf16.msra.mxu0 0
  %3018 = vmatpush.bf16.msra.mxu0 0
  %3019 = vmatpush.bf16.msra.mxu0 0
  %3020 = vmatpush.bf16.msra.mxu0 %v3005
  %3021 = vmatpush.bf16.msra.mxu0 %v3004
  %3022 = vmatmul.bf16.gmra.mxu0 %v3009
  %v3023 = vpop.f32.mrf.mxu0
  %v3024 = vadd.f32 0.0, %v3023
  %v3025 = vpop.f32.mrf.mxu0
  %v3026 = vadd.f32 0.0, %v3025
  %3027 = vmatmul.bf16.gmra.mxu0 %v3012
  %v3028 = vpop.f32.mrf.mxu0
  %v3029 = vadd.f32 0.0, %v3028
  %v3030 = vpop.f32.mrf.mxu0
  %v3031 = vadd.f32 0.0, %v3030
  %3032 = vdwg.mxu0
  %v3033 = vadd.f32 %v2921, %v3024
  %v3034 = vadd.f32 %v2922, %v3026
  %v3035 = vadd.f32 %v2923, %v3029
  %v3036 = vadd.f32 %v2924, %v3031
  %s3037 = scalar_lea.vmem [#allocation2], 42
  %v3038 = vld [vmem:[%s3037] sm:$0x3]
  %v3039 = vld [vmem:[%s3037 + $0x8] sm:$0x3]
  %v3040 = vld [vmem:[%s3037 + $0x10] sm:$0x3]
  %v3041 = vld [vmem:[%s3037 + $0x18] sm:$0x3]
  %v3042 = vld [vmem:[%s3037 + $0xa0] sm:$0x3]
  %v3043 = vld [vmem:[%s3037 + $0xa8] sm:$0x3]
  %v3044 = vld [vmem:[%s3037 + $0xb0] sm:$0x3]
  %v3045 = vld [vmem:[%s3037 + $0xb8] sm:$0x3]
  %v3046 = vld [vmem:[%s3037 + $0x140] sm:$0x3]
  %v3047 = vld [vmem:[%s3037 + $0x148] sm:$0x3]
  %v3048 = vld [vmem:[%s3037 + $0x150] sm:$0x3]
  %v3049 = vld [vmem:[%s3037 + $0x158] sm:$0x3]
  %v3050 = vld [vmem:[%s3037 + $0x1e0] sm:$0x3]
  %v3051 = vld [vmem:[%s3037 + $0x1e8] sm:$0x3]
  %v3052 = vld [vmem:[%s3037 + $0x1f0] sm:$0x3]
  %v3053 = vld [vmem:[%s3037 + $0x1f8] sm:$0x3]
  %3070 = vst [vmem:[#allocation1] ss:$4 sm:$0xff] %v3038
  %s3071 = scalar_lea.vmem [#allocation1], 1
  %3072 = vst [vmem:[%s3071] ss:$4 sm:$0xff] %v3039
  %s3073 = scalar_lea.vmem [#allocation1], 2
  %3074 = vst [vmem:[%s3073] ss:$4 sm:$0xff] %v3040
  %s3075 = scalar_lea.vmem [#allocation1], 3
  %3076 = vst [vmem:[%s3075] ss:$4 sm:$0xff] %v3041
  %s3077 = scalar_lea.vmem [#allocation1], 32
  %3078 = vst [vmem:[%s3077] ss:$4 sm:$0xff] %v3042
  %s3079 = scalar_lea.vmem [#allocation1], 33
  %3080 = vst [vmem:[%s3079] ss:$4 sm:$0xff] %v3043
  %s3081 = scalar_lea.vmem [#allocation1], 34
  %3082 = vst [vmem:[%s3081] ss:$4 sm:$0xff] %v3044
  %s3083 = scalar_lea.vmem [#allocation1], 35
  %3084 = vst [vmem:[%s3083] ss:$4 sm:$0xff] %v3045
  %v3085 = vld.sshfl [vmem:[#allocation1] sm:$0xff pattern:$0x73625140]
  %v3086 = vld.sshfl [vmem:[#allocation1 + $0x20] sm:$0xff pattern:$0x73625140]
  %3087 = vst [vmem:[#allocation1] ss:$4 sm:$0xff] %v3046
  %3088 = vst [vmem:[%s3071] ss:$4 sm:$0xff] %v3047
  %3089 = vst [vmem:[%s3073] ss:$4 sm:$0xff] %v3048
  %3090 = vst [vmem:[%s3075] ss:$4 sm:$0xff] %v3049
  %3091 = vst [vmem:[%s3077] ss:$4 sm:$0xff] %v3050
  %3092 = vst [vmem:[%s3079] ss:$4 sm:$0xff] %v3051
  %3093 = vst [vmem:[%s3081] ss:$4 sm:$0xff] %v3052
  %3094 = vst [vmem:[%s3083] ss:$4 sm:$0xff] %v3053
  %v3095 = vld.sshfl [vmem:[#allocation1] sm:$0xff pattern:$0x73625140]
  %v3096 = vld.sshfl [vmem:[#allocation1 + $0x20] sm:$0xff pattern:$0x73625140]
  %v3101 = vpack.c.bf16 %v3086, %v3085
  %v3102 = vpack.c.bf16 %v3096, %v3095
  %s3103 = scalar_lea.vmem %s3, 96
  %v3104 = vld [vmem:[%s3103] sm:$0xf]
  %v3105 = vld [vmem:[%s3103 + $0x4] sm:$0xf]
  %v3106 = vld [vmem:[%s3103 + $0x8] sm:$0xf]
  %v3107 = vld [vmem:[%s3103 + $0xc] sm:$0xf]
  %v3112 = vunpack.c.l.b16 %v3104
  %v3113 = vunpack.c.l.b16 %v3105
  %v3114 = vunpack.c.l.b16 %v3106
  %v3115 = vunpack.c.l.b16 %v3107
  %v3116 = vpack.c.b16 %v3113, %v3112
  %v3117 = vpack.c.b16 %v3115, %v3114
  %v3121 = vsel %vm2526, %v3101, 0
  %v3124 = vsel %vm2526, %v3102, 0
  %3126 = vmatpush.bf16.msra.mxu0 0
  %3127 = vmatpush.bf16.msra.mxu0 0
  %3128 = vmatpush.bf16.msra.mxu0 0
  %3129 = vmatpush.bf16.msra.mxu0 0
  %3130 = vmatpush.bf16.msra.mxu0 0
  %3131 = vmatpush.bf16.msra.mxu0 0
  %3132 = vmatpush.bf16.msra.mxu0 %v3117
  %3133 = vmatpush.bf16.msra.mxu0 %v3116
  %3134 = vmatmul.bf16.gmra.mxu0 %v3121
  %v3135 = vpop.f32.mrf.mxu0
  %v3136 = vadd.f32 0.0, %v3135
  %v3137 = vpop.f32.mrf.mxu0
  %v3138 = vadd.f32 0.0, %v3137
  %3139 = vmatmul.bf16.gmra.mxu0 %v3124
  %v3140 = vpop.f32.mrf.mxu0
  %v3141 = vadd.f32 0.0, %v3140
  %v3142 = vpop.f32.mrf.mxu0
  %v3143 = vadd.f32 0.0, %v3142
  %3144 = vdwg.mxu0
  %v3145 = vadd.f32 %v3033, %v3136
  %v3146 = vadd.f32 %v3034, %v3138
  %v3147 = vadd.f32 %v3035, %v3141
  %v3148 = vadd.f32 %v3036, %v3143
  %s3149 = scalar_lea.vmem [#allocation2], 44
  %v3150 = vld [vmem:[%s3149] sm:$0x3]
  %v3151 = vld [vmem:[%s3149 + $0x8] sm:$0x3]
  %v3152 = vld [vmem:[%s3149 + $0x10] sm:$0x3]
  %v3153 = vld [vmem:[%s3149 + $0x18] sm:$0x3]
  %v3154 = vld [vmem:[%s3149 + $0xa0] sm:$0x3]
  %v3155 = vld [vmem:[%s3149 + $0xa8] sm:$0x3]
  %v3156 = vld [vmem:[%s3149 + $0xb0] sm:$0x3]
  %v3157 = vld [vmem:[%s3149 + $0xb8] sm:$0x3]
  %v3158 = vld [vmem:[%s3149 + $0x140] sm:$0x3]
  %v3159 = vld [vmem:[%s3149 + $0x148] sm:$0x3]
  %v3160 = vld [vmem:[%s3149 + $0x150] sm:$0x3]
  %v3161 = vld [vmem:[%s3149 + $0x158] sm:$0x3]
  %v3162 = vld [vmem:[%s3149 + $0x1e0] sm:$0x3]
  %v3163 = vld [vmem:[%s3149 + $0x1e8] sm:$0x3]
  %v3164 = vld [vmem:[%s3149 + $0x1f0] sm:$0x3]
  %v3165 = vld [vmem:[%s3149 + $0x1f8] sm:$0x3]
  %3182 = vst [vmem:[#allocation1] ss:$4 sm:$0xff] %v3150
  %s3183 = scalar_lea.vmem [#allocation1], 1
  %3184 = vst [vmem:[%s3183] ss:$4 sm:$0xff] %v3151
  %s3185 = scalar_lea.vmem [#allocation1], 2
  %3186 = vst [vmem:[%s3185] ss:$4 sm:$0xff] %v3152
  %s3187 = scalar_lea.vmem [#allocation1], 3
  %3188 = vst [vmem:[%s3187] ss:$4 sm:$0xff] %v3153
  %s3189 = scalar_lea.vmem [#allocation1], 32
  %3190 = vst [vmem:[%s3189] ss:$4 sm:$0xff] %v3154
  %s3191 = scalar_lea.vmem [#allocation1], 33
  %3192 = vst [vmem:[%s3191] ss:$4 sm:$0xff] %v3155
  %s3193 = scalar_lea.vmem [#allocation1], 34
  %3194 = vst [vmem:[%s3193] ss:$4 sm:$0xff] %v3156
  %s3195 = scalar_lea.vmem [#allocation1], 35
  %3196 = vst [vmem:[%s3195] ss:$4 sm:$0xff] %v3157
  %v3197 = vld.sshfl [vmem:[#allocation1] sm:$0xff pattern:$0x73625140]
  %v3198 = vld.sshfl [vmem:[#allocation1 + $0x20] sm:$0xff pattern:$0x73625140]
  %3199 = vst [vmem:[#allocation1] ss:$4 sm:$0xff] %v3158
  %3200 = vst [vmem:[%s3183] ss:$4 sm:$0xff] %v3159
  %3201 = vst [vmem:[%s3185] ss:$4 sm:$0xff] %v3160
  %3202 = vst [vmem:[%s3187] ss:$4 sm:$0xff] %v3161
  %3203 = vst [vmem:[%s3189] ss:$4 sm:$0xff] %v3162
  %3204 = vst [vmem:[%s3191] ss:$4 sm:$0xff] %v3163
  %3205 = vst [vmem:[%s3193] ss:$4 sm:$0xff] %v3164
  %3206 = vst [vmem:[%s3195] ss:$4 sm:$0xff] %v3165
  %v3207 = vld.sshfl [vmem:[#allocation1] sm:$0xff pattern:$0x73625140]
  %v3208 = vld.sshfl [vmem:[#allocation1 + $0x20] sm:$0xff pattern:$0x73625140]
  %v3213 = vpack.c.bf16 %v3198, %v3197
  %v3214 = vpack.c.bf16 %v3208, %v3207
  %s3215 = scalar_lea.vmem %s3, 112
  %v3216 = vld [vmem:[%s3215] sm:$0xf]
  %v3217 = vld [vmem:[%s3215 + $0x4] sm:$0xf]
  %v3218 = vld [vmem:[%s3215 + $0x8] sm:$0xf]
  %v3219 = vld [vmem:[%s3215 + $0xc] sm:$0xf]
  %v3224 = vunpack.c.l.b16 %v3216
  %v3225 = vunpack.c.l.b16 %v3217
  %v3226 = vunpack.c.l.b16 %v3218
  %v3227 = vunpack.c.l.b16 %v3219
  %v3228 = vpack.c.b16 %v3225, %v3224
  %v3229 = vpack.c.b16 %v3227, %v3226
  %v3233 = vsel %vm2526, %v3213, 0
  %v3236 = vsel %vm2526, %v3214, 0
  %3238 = vmatpush.bf16.msra.mxu0 0
  %3239 = vmatpush.bf16.msra.mxu0 0
  %3240 = vmatpush.bf16.msra.mxu0 0
  %3241 = vmatpush.bf16.msra.mxu0 0
  %3242 = vmatpush.bf16.msra.mxu0 0
  %3243 = vmatpush.bf16.msra.mxu0 0
  %3244 = vmatpush.bf16.msra.mxu0 %v3229
  %3245 = vmatpush.bf16.msra.mxu0 %v3228
  %3246 = vmatmul.bf16.gmra.mxu0 %v3233
  %v3247 = vpop.f32.mrf.mxu0
  %v3248 = vadd.f32 0.0, %v3247
  %v3249 = vpop.f32.mrf.mxu0
  %v3250 = vadd.f32 0.0, %v3249
  %3251 = vmatmul.bf16.gmra.mxu0 %v3236
  %v3252 = vpop.f32.mrf.mxu0
  %v3253 = vadd.f32 0.0, %v3252
  %v3254 = vpop.f32.mrf.mxu0
  %v3255 = vadd.f32 0.0, %v3254
  %3256 = vdwg.mxu0
  %v3257 = vadd.f32 %v3145, %v3248
  %v3258 = vadd.f32 %v3146, %v3250
  %v3259 = vadd.f32 %v3147, %v3253
  %v3260 = vadd.f32 %v3148, %v3255
  %s3261 = scalar_lea.vmem [#allocation2], 46
  %v3262 = vld [vmem:[%s3261] sm:$0x3]
  %v3263 = vld [vmem:[%s3261 + $0x8] sm:$0x3]
  %v3264 = vld [vmem:[%s3261 + $0x10] sm:$0x3]
  %v3265 = vld [vmem:[%s3261 + $0x18] sm:$0x3]
  %v3266 = vld [vmem:[%s3261 + $0xa0] sm:$0x3]
  %v3267 = vld [vmem:[%s3261 + $0xa8] sm:$0x3]
  %v3268 = vld [vmem:[%s3261 + $0xb0] sm:$0x3]
  %v3269 = vld [vmem:[%s3261 + $0xb8] sm:$0x3]
  %v3270 = vld [vmem:[%s3261 + $0x140] sm:$0x3]
  %v3271 = vld [vmem:[%s3261 + $0x148] sm:$0x3]
  %v3272 = vld [vmem:[%s3261 + $0x150] sm:$0x3]
  %v3273 = vld [vmem:[%s3261 + $0x158] sm:$0x3]
  %v3274 = vld [vmem:[%s3261 + $0x1e0] sm:$0x3]
  %v3275 = vld [vmem:[%s3261 + $0x1e8] sm:$0x3]
  %v3276 = vld [vmem:[%s3261 + $0x1f0] sm:$0x3]
  %v3277 = vld [vmem:[%s3261 + $0x1f8] sm:$0x3]
  %3294 = vst [vmem:[#allocation1] ss:$4 sm:$0xff] %v3262
  %s3295 = scalar_lea.vmem [#allocation1], 1
  %3296 = vst [vmem:[%s3295] ss:$4 sm:$0xff] %v3263
  %s3297 = scalar_lea.vmem [#allocation1], 2
  %3298 = vst [vmem:[%s3297] ss:$4 sm:$0xff] %v3264
  %s3299 = scalar_lea.vmem [#allocation1], 3
  %3300 = vst [vmem:[%s3299] ss:$4 sm:$0xff] %v3265
  %s3301 = scalar_lea.vmem [#allocation1], 32
  %3302 = vst [vmem:[%s3301] ss:$4 sm:$0xff] %v3266
  %s3303 = scalar_lea.vmem [#allocation1], 33
  %3304 = vst [vmem:[%s3303] ss:$4 sm:$0xff] %v3267
  %s3305 = scalar_lea.vmem [#allocation1], 34
  %3306 = vst [vmem:[%s3305] ss:$4 sm:$0xff] %v3268
  %s3307 = scalar_lea.vmem [#allocation1], 35
  %3308 = vst [vmem:[%s3307] ss:$4 sm:$0xff] %v3269
  %v3309 = vld.sshfl [vmem:[#allocation1] sm:$0xff pattern:$0x73625140]
  %v3310 = vld.sshfl [vmem:[#allocation1 + $0x20] sm:$0xff pattern:$0x73625140]
  %3311 = vst [vmem:[#allocation1] ss:$4 sm:$0xff] %v3270
  %3312 = vst [vmem:[%s3295] ss:$4 sm:$0xff] %v3271
  %3313 = vst [vmem:[%s3297] ss:$4 sm:$0xff] %v3272
  %3314 = vst [vmem:[%s3299] ss:$4 sm:$0xff] %v3273
  %3315 = vst [vmem:[%s3301] ss:$4 sm:$0xff] %v3274
  %3316 = vst [vmem:[%s3303] ss:$4 sm:$0xff] %v3275
  %3317 = vst [vmem:[%s3305] ss:$4 sm:$0xff] %v3276
  %3318 = vst [vmem:[%s3307] ss:$4 sm:$0xff] %v3277
  %v3319 = vld.sshfl [vmem:[#allocation1] sm:$0xff pattern:$0x73625140]
  %v3320 = vld.sshfl [vmem:[#allocation1 + $0x20] sm:$0xff pattern:$0x73625140]
  %v3325 = vpack.c.bf16 %v3310, %v3309
  %v3326 = vpack.c.bf16 %v3320, %v3319
  %s3327 = scalar_lea.vmem %s3, 128
  %v3328 = vld [vmem:[%s3327] sm:$0xf]
  %v3329 = vld [vmem:[%s3327 + $0x4] sm:$0xf]
  %v3330 = vld [vmem:[%s3327 + $0x8] sm:$0xf]
  %v3331 = vld [vmem:[%s3327 + $0xc] sm:$0xf]
  %v3336 = vunpack.c.l.b16 %v3328
  %v3337 = vunpack.c.l.b16 %v3329
  %v3338 = vunpack.c.l.b16 %v3330
  %v3339 = vunpack.c.l.b16 %v3331
  %v3340 = vpack.c.b16 %v3337, %v3336
  %v3341 = vpack.c.b16 %v3339, %v3338
  %v3345 = vsel %vm2526, %v3325, 0
  %v3348 = vsel %vm2526, %v3326, 0
  %3350 = vmatpush.bf16.msra.mxu0 0
  %3351 = vmatpush.bf16.msra.mxu0 0
  %3352 = vmatpush.bf16.msra.mxu0 0
  %3353 = vmatpush.bf16.msra.mxu0 0
  %3354 = vmatpush.bf16.msra.mxu0 0
  %3355 = vmatpush.bf16.msra.mxu0 0
  %3356 = vmatpush.bf16.msra.mxu0 %v3341
  %3357 = vmatpush.bf16.msra.mxu0 %v3340
  %3358 = vmatmul.bf16.gmra.mxu0 %v3345
  %v3359 = vpop.f32.mrf.mxu0
  %v3360 = vadd.f32 0.0, %v3359
  %v3361 = vpop.f32.mrf.mxu0
  %v3362 = vadd.f32 0.0, %v3361
  %3363 = vmatmul.bf16.gmra.mxu0 %v3348
  %v3364 = vpop.f32.mrf.mxu0
  %v3365 = vadd.f32 0.0, %v3364
  %v3366 = vpop.f32.mrf.mxu0
  %v3367 = vadd.f32 0.0, %v3366
  %3368 = vdwg.mxu0
  %v3369 = vadd.f32 %v3257, %v3360
  %v3370 = vadd.f32 %v3258, %v3362
  %v3371 = vadd.f32 %v3259, %v3365
  %v3372 = vadd.f32 %v3260, %v3367
  %s3373 = scalar_lea.vmem [#allocation2], 48
  %v3374 = vld [vmem:[%s3373] sm:$0x3]
  %v3375 = vld [vmem:[%s3373 + $0x8] sm:$0x3]
  %v3376 = vld [vmem:[%s3373 + $0x10] sm:$0x3]
  %v3377 = vld [vmem:[%s3373 + $0x18] sm:$0x3]
  %v3378 = vld [vmem:[%s3373 + $0xa0] sm:$0x3]
  %v3379 = vld [vmem:[%s3373 + $0xa8] sm:$0x3]
  %v3380 = vld [vmem:[%s3373 + $0xb0] sm:$0x3]
  %v3381 = vld [vmem:[%s3373 + $0xb8] sm:$0x3]
  %v3382 = vld [vmem:[%s3373 + $0x140] sm:$0x3]
  %v3383 = vld [vmem:[%s3373 + $0x148] sm:$0x3]
  %v3384 = vld [vmem:[%s3373 + $0x150] sm:$0x3]
  %v3385 = vld [vmem:[%s3373 + $0x158] sm:$0x3]
  %v3386 = vld [vmem:[%s3373 + $0x1e0] sm:$0x3]
  %v3387 = vld [vmem:[%s3373 + $0x1e8] sm:$0x3]
  %v3388 = vld [vmem:[%s3373 + $0x1f0] sm:$0x3]
  %v3389 = vld [vmem:[%s3373 + $0x1f8] sm:$0x3]
  %3406 = vst [vmem:[#allocation1] ss:$4 sm:$0xff] %v3374
  %s3407 = scalar_lea.vmem [#allocation1], 1
  %3408 = vst [vmem:[%s3407] ss:$4 sm:$0xff] %v3375
  %s3409 = scalar_lea.vmem [#allocation1], 2
  %3410 = vst [vmem:[%s3409] ss:$4 sm:$0xff] %v3376
  %s3411 = scalar_lea.vmem [#allocation1], 3
  %3412 = vst [vmem:[%s3411] ss:$4 sm:$0xff] %v3377
  %s3413 = scalar_lea.vmem [#allocation1], 32
  %3414 = vst [vmem:[%s3413] ss:$4 sm:$0xff] %v3378
  %s3415 = scalar_lea.vmem [#allocation1], 33
  %3416 = vst [vmem:[%s3415] ss:$4 sm:$0xff] %v3379
  %s3417 = scalar_lea.vmem [#allocation1], 34
  %3418 = vst [vmem:[%s3417] ss:$4 sm:$0xff] %v3380
  %s3419 = scalar_lea.vmem [#allocation1], 35
  %3420 = vst [vmem:[%s3419] ss:$4 sm:$0xff] %v3381
  %v3421 = vld.sshfl [vmem:[#allocation1] sm:$0xff pattern:$0x73625140]
  %v3422 = vld.sshfl [vmem:[#allocation1 + $0x20] sm:$0xff pattern:$0x73625140]
  %3423 = vst [vmem:[#allocation1] ss:$4 sm:$0xff] %v3382
  %3424 = vst [vmem:[%s3407] ss:$4 sm:$0xff] %v3383
  %3425 = vst [vmem:[%s3409] ss:$4 sm:$0xff] %v3384
  %3426 = vst [vmem:[%s3411] ss:$4 sm:$0xff] %v3385
  %3427 = vst [vmem:[%s3413] ss:$4 sm:$0xff] %v3386
  %3428 = vst [vmem:[%s3415] ss:$4 sm:$0xff] %v3387
  %3429 = vst [vmem:[%s3417] ss:$4 sm:$0xff] %v3388
  %3430 = vst [vmem:[%s3419] ss:$4 sm:$0xff] %v3389
  %v3431 = vld.sshfl [vmem:[#allocation1] sm:$0xff pattern:$0x73625140]
  %v3432 = vld.sshfl [vmem:[#allocation1 + $0x20] sm:$0xff pattern:$0x73625140]
  %v3437 = vpack.c.bf16 %v3422, %v3421
  %v3438 = vpack.c.bf16 %v3432, %v3431
  %s3439 = scalar_lea.vmem %s3, 144
  %v3440 = vld [vmem:[%s3439] sm:$0xf]
  %v3441 = vld [vmem:[%s3439 + $0x4] sm:$0xf]
  %v3442 = vld [vmem:[%s3439 + $0x8] sm:$0xf]
  %v3443 = vld [vmem:[%s3439 + $0xc] sm:$0xf]
  %v3448 = vunpack.c.l.b16 %v3440
  %v3449 = vunpack.c.l.b16 %v3441
  %v3450 = vunpack.c.l.b16 %v3442
  %v3451 = vunpack.c.l.b16 %v3443
  %v3452 = vpack.c.b16 %v3449, %v3448
  %v3453 = vpack.c.b16 %v3451, %v3450
  %v3457 = vsel %vm2526, %v3437, 0
  %v3460 = vsel %vm2526, %v3438, 0
  %3462 = vmatpush.bf16.msra.mxu0 0
  %3463 = vmatpush.bf16.msra.mxu0 0
  %3464 = vmatpush.bf16.msra.mxu0 0
  %3465 = vmatpush.bf16.msra.mxu0 0
  %3466 = vmatpush.bf16.msra.mxu0 0
  %3467 = vmatpush.bf16.msra.mxu0 0
  %3468 = vmatpush.bf16.msra.mxu0 %v3453
  %3469 = vmatpush.bf16.msra.mxu0 %v3452
  %3470 = vmatmul.bf16.gmra.mxu0 %v3457
  %v3471 = vpop.f32.mrf.mxu0
  %v3472 = vadd.f32 0.0, %v3471
  %v3473 = vpop.f32.mrf.mxu0
  %v3474 = vadd.f32 0.0, %v3473
  %3475 = vmatmul.bf16.gmra.mxu0 %v3460
  %v3476 = vpop.f32.mrf.mxu0
  %v3477 = vadd.f32 0.0, %v3476
  %v3478 = vpop.f32.mrf.mxu0
  %v3479 = vadd.f32 0.0, %v3478
  %3480 = vdwg.mxu0
  %v3481 = vadd.f32 %v3369, %v3472
  %v3482 = vadd.f32 %v3370, %v3474
  %v3483 = vadd.f32 %v3371, %v3477
  %v3484 = vadd.f32 %v3372, %v3479
  %s3485 = scalar_lea.vmem [#allocation2], 80
  %v3486 = vld [vmem:[%s3485] sm:$0x3]
  %v3487 = vld [vmem:[%s3485 + $0x8] sm:$0x3]
  %v3488 = vld [vmem:[%s3485 + $0x10] sm:$0x3]
  %v3489 = vld [vmem:[%s3485 + $0x18] sm:$0x3]
  %v3490 = vld [vmem:[%s3485 + $0xa0] sm:$0x3]
  %v3491 = vld [vmem:[%s3485 + $0xa8] sm:$0x3]
  %v3492 = vld [vmem:[%s3485 + $0xb0] sm:$0x3]
  %v3493 = vld [vmem:[%s3485 + $0xb8] sm:$0x3]
  %v3494 = vld [vmem:[%s3485 + $0x140] sm:$0x3]
  %v3495 = vld [vmem:[%s3485 + $0x148] sm:$0x3]
  %v3496 = vld [vmem:[%s3485 + $0x150] sm:$0x3]
  %v3497 = vld [vmem:[%s3485 + $0x158] sm:$0x3]
  %v3498 = vld [vmem:[%s3485 + $0x1e0] sm:$0x3]
  %v3499 = vld [vmem:[%s3485 + $0x1e8] sm:$0x3]
  %v3500 = vld [vmem:[%s3485 + $0x1f0] sm:$0x3]
  %v3501 = vld [vmem:[%s3485 + $0x1f8] sm:$0x3]
  %3518 = vst [vmem:[#allocation1] ss:$4 sm:$0xff] %v3486
  %s3519 = scalar_lea.vmem [#allocation1], 1
  %3520 = vst [vmem:[%s3519] ss:$4 sm:$0xff] %v3487
  %s3521 = scalar_lea.vmem [#allocation1], 2
  %3522 = vst [vmem:[%s3521] ss:$4 sm:$0xff] %v3488
  %s3523 = scalar_lea.vmem [#allocation1], 3
  %3524 = vst [vmem:[%s3523] ss:$4 sm:$0xff] %v3489
  %s3525 = scalar_lea.vmem [#allocation1], 32
  %3526 = vst [vmem:[%s3525] ss:$4 sm:$0xff] %v3490
  %s3527 = scalar_lea.vmem [#allocation1], 33
  %3528 = vst [vmem:[%s3527] ss:$4 sm:$0xff] %v3491
  %s3529 = scalar_lea.vmem [#allocation1], 34
  %3530 = vst [vmem:[%s3529] ss:$4 sm:$0xff] %v3492
  %s3531 = scalar_lea.vmem [#allocation1], 35
  %3532 = vst [vmem:[%s3531] ss:$4 sm:$0xff] %v3493
  %v3533 = vld.sshfl [vmem:[#allocation1] sm:$0xff pattern:$0x73625140]
  %v3534 = vld.sshfl [vmem:[#allocation1 + $0x20] sm:$0xff pattern:$0x73625140]
  %3535 = vst [vmem:[#allocation1] ss:$4 sm:$0xff] %v3494
  %3536 = vst [vmem:[%s3519] ss:$4 sm:$0xff] %v3495
  %3537 = vst [vmem:[%s3521] ss:$4 sm:$0xff] %v3496
  %3538 = vst [vmem:[%s3523] ss:$4 sm:$0xff] %v3497
  %3539 = vst [vmem:[%s3525] ss:$4 sm:$0xff] %v3498
  %3540 = vst [vmem:[%s3527] ss:$4 sm:$0xff] %v3499
  %3541 = vst [vmem:[%s3529] ss:$4 sm:$0xff] %v3500
  %3542 = vst [vmem:[%s3531] ss:$4 sm:$0xff] %v3501
  %v3543 = vld.sshfl [vmem:[#allocation1] sm:$0xff pattern:$0x73625140]
  %v3544 = vld.sshfl [vmem:[#allocation1 + $0x20] sm:$0xff pattern:$0x73625140]
  %v3549 = vpack.c.bf16 %v3534, %v3533
  %v3550 = vpack.c.bf16 %v3544, %v3543
  %s3551 = scalar_lea.vmem %s3, 160
  %v3552 = vld [vmem:[%s3551] sm:$0xf]
  %v3553 = vld [vmem:[%s3551 + $0x4] sm:$0xf]
  %v3554 = vld [vmem:[%s3551 + $0x8] sm:$0xf]
  %v3555 = vld [vmem:[%s3551 + $0xc] sm:$0xf]
  %v3560 = vunpack.c.l.b16 %v3552
  %v3561 = vunpack.c.l.b16 %v3553
  %v3562 = vunpack.c.l.b16 %v3554
  %v3563 = vunpack.c.l.b16 %v3555
  %v3564 = vpack.c.b16 %v3561, %v3560
  %v3565 = vpack.c.b16 %v3563, %v3562
  %v3569 = vsel %vm2526, %v3549, 0
  %v3572 = vsel %vm2526, %v3550, 0
  %3574 = vmatpush.bf16.msra.mxu0 0
  %3575 = vmatpush.bf16.msra.mxu0 0
  %3576 = vmatpush.bf16.msra.mxu0 0
  %3577 = vmatpush.bf16.msra.mxu0 0
  %3578 = vmatpush.bf16.msra.mxu0 0
  %3579 = vmatpush.bf16.msra.mxu0 0
  %3580 = vmatpush.bf16.msra.mxu0 %v3565
  %3581 = vmatpush.bf16.msra.mxu0 %v3564
  %3582 = vmatmul.bf16.gmra.mxu0 %v3569
  %v3583 = vpop.f32.mrf.mxu0
  %v3584 = vadd.f32 0.0, %v3583
  %v3585 = vpop.f32.mrf.mxu0
  %v3586 = vadd.f32 0.0, %v3585
  %3587 = vmatmul.bf16.gmra.mxu0 %v3572
  %v3588 = vpop.f32.mrf.mxu0
  %v3589 = vadd.f32 0.0, %v3588
  %v3590 = vpop.f32.mrf.mxu0
  %v3591 = vadd.f32 0.0, %v3590
  %3592 = vdwg.mxu0
  %v3593 = vadd.f32 %v3481, %v3584
  %v3594 = vadd.f32 %v3482, %v3586
  %v3595 = vadd.f32 %v3483, %v3589
  %v3596 = vadd.f32 %v3484, %v3591
  %s3597 = scalar_lea.vmem [#allocation2], 82
  %v3598 = vld [vmem:[%s3597] sm:$0x3]
  %v3599 = vld [vmem:[%s3597 + $0x8] sm:$0x3]
  %v3600 = vld [vmem:[%s3597 + $0x10] sm:$0x3]
  %v3601 = vld [vmem:[%s3597 + $0x18] sm:$0x3]
  %v3602 = vld [vmem:[%s3597 + $0xa0] sm:$0x3]
  %v3603 = vld [vmem:[%s3597 + $0xa8] sm:$0x3]
  %v3604 = vld [vmem:[%s3597 + $0xb0] sm:$0x3]
  %v3605 = vld [vmem:[%s3597 + $0xb8] sm:$0x3]
  %v3606 = vld [vmem:[%s3597 + $0x140] sm:$0x3]
  %v3607 = vld [vmem:[%s3597 + $0x148] sm:$0x3]
  %v3608 = vld [vmem:[%s3597 + $0x150] sm:$0x3]
  %v3609 = vld [vmem:[%s3597 + $0x158] sm:$0x3]
  %v3610 = vld [vmem:[%s3597 + $0x1e0] sm:$0x3]
  %v3611 = vld [vmem:[%s3597 + $0x1e8] sm:$0x3]
  %v3612 = vld [vmem:[%s3597 + $0x1f0] sm:$0x3]
  %v3613 = vld [vmem:[%s3597 + $0x1f8] sm:$0x3]
  %3630 = vst [vmem:[#allocation1] ss:$4 sm:$0xff] %v3598
  %s3631 = scalar_lea.vmem [#allocation1], 1
  %3632 = vst [vmem:[%s3631] ss:$4 sm:$0xff] %v3599
  %s3633 = scalar_lea.vmem [#allocation1], 2
  %3634 = vst [vmem:[%s3633] ss:$4 sm:$0xff] %v3600
  %s3635 = scalar_lea.vmem [#allocation1], 3
  %3636 = vst [vmem:[%s3635] ss:$4 sm:$0xff] %v3601
  %s3637 = scalar_lea.vmem [#allocation1], 32
  %3638 = vst [vmem:[%s3637] ss:$4 sm:$0xff] %v3602
  %s3639 = scalar_lea.vmem [#allocation1], 33
  %3640 = vst [vmem:[%s3639] ss:$4 sm:$0xff] %v3603
  %s3641 = scalar_lea.vmem [#allocation1], 34
  %3642 = vst [vmem:[%s3641] ss:$4 sm:$0xff] %v3604
  %s3643 = scalar_lea.vmem [#allocation1], 35
  %3644 = vst [vmem:[%s3643] ss:$4 sm:$0xff] %v3605
  %v3645 = vld.sshfl [vmem:[#allocation1] sm:$0xff pattern:$0x73625140]
  %v3646 = vld.sshfl [vmem:[#allocation1 + $0x20] sm:$0xff pattern:$0x73625140]
  %3647 = vst [vmem:[#allocation1] ss:$4 sm:$0xff] %v3606
  %3648 = vst [vmem:[%s3631] ss:$4 sm:$0xff] %v3607
  %3649 = vst [vmem:[%s3633] ss:$4 sm:$0xff] %v3608
  %3650 = vst [vmem:[%s3635] ss:$4 sm:$0xff] %v3609
  %3651 = vst [vmem:[%s3637] ss:$4 sm:$0xff] %v3610
  %3652 = vst [vmem:[%s3639] ss:$4 sm:$0xff] %v3611
  %3653 = vst [vmem:[%s3641] ss:$4 sm:$0xff] %v3612
  %3654 = vst [vmem:[%s3643] ss:$4 sm:$0xff] %v3613
  %v3655 = vld.sshfl [vmem:[#allocation1] sm:$0xff pattern:$0x73625140]
  %v3656 = vld.sshfl [vmem:[#allocation1 + $0x20] sm:$0xff pattern:$0x73625140]
  %v3661 = vpack.c.bf16 %v3646, %v3645
  %v3662 = vpack.c.bf16 %v3656, %v3655
  %s3663 = scalar_lea.vmem %s3, 176
  %v3664 = vld [vmem:[%s3663] sm:$0xf]
  %v3665 = vld [vmem:[%s3663 + $0x4] sm:$0xf]
  %v3666 = vld [vmem:[%s3663 + $0x8] sm:$0xf]
  %v3667 = vld [vmem:[%s3663 + $0xc] sm:$0xf]
  %v3672 = vunpack.c.l.b16 %v3664
  %v3673 = vunpack.c.l.b16 %v3665
  %v3674 = vunpack.c.l.b16 %v3666
  %v3675 = vunpack.c.l.b16 %v3667
  %v3676 = vpack.c.b16 %v3673, %v3672
  %v3677 = vpack.c.b16 %v3675, %v3674
  %v3681 = vsel %vm2526, %v3661, 0
  %v3684 = vsel %vm2526, %v3662, 0
  %3686 = vmatpush.bf16.msra.mxu0 0
  %3687 = vmatpush.bf16.msra.mxu0 0
  %3688 = vmatpush.bf16.msra.mxu0 0
  %3689 = vmatpush.bf16.msra.mxu0 0
  %3690 = vmatpush.bf16.msra.mxu0 0
  %3691 = vmatpush.bf16.msra.mxu0 0
  %3692 = vmatpush.bf16.msra.mxu0 %v3677
  %3693 = vmatpush.bf16.msra.mxu0 %v3676
  %3694 = vmatmul.bf16.gmra.mxu0 %v3681
  %v3695 = vpop.f32.mrf.mxu0
  %v3696 = vadd.f32 0.0, %v3695
  %v3697 = vpop.f32.mrf.mxu0
  %v3698 = vadd.f32 0.0, %v3697
  %3699 = vmatmul.bf16.gmra.mxu0 %v3684
  %v3700 = vpop.f32.mrf.mxu0
  %v3701 = vadd.f32 0.0, %v3700
  %v3702 = vpop.f32.mrf.mxu0
  %v3703 = vadd.f32 0.0, %v3702
  %3704 = vdwg.mxu0
  %v3705 = vadd.f32 %v3593, %v3696
  %v3706 = vadd.f32 %v3594, %v3698
  %v3707 = vadd.f32 %v3595, %v3701
  %v3708 = vadd.f32 %v3596, %v3703
  %v3709 = vld [vmem:[%s2114] sm:$0x3]
  %v3710 = vld [vmem:[%s2114 + $0x8] sm:$0x3]
  %v3711 = vld [vmem:[%s2114 + $0x10] sm:$0x3]
  %v3712 = vld [vmem:[%s2114 + $0x18] sm:$0x3]
  %v3713 = vld [vmem:[%s2114 + $0xa0] sm:$0x3]
  %v3714 = vld [vmem:[%s2114 + $0xa8] sm:$0x3]
  %v3715 = vld [vmem:[%s2114 + $0xb0] sm:$0x3]
  %v3716 = vld [vmem:[%s2114 + $0xb8] sm:$0x3]
  %v3717 = vld [vmem:[%s2114 + $0x140] sm:$0x3]
  %v3718 = vld [vmem:[%s2114 + $0x148] sm:$0x3]
  %v3719 = vld [vmem:[%s2114 + $0x150] sm:$0x3]
  %v3720 = vld [vmem:[%s2114 + $0x158] sm:$0x3]
  %v3721 = vld [vmem:[%s2114 + $0x1e0] sm:$0x3]
  %v3722 = vld [vmem:[%s2114 + $0x1e8] sm:$0x3]
  %v3723 = vld [vmem:[%s2114 + $0x1f0] sm:$0x3]
  %v3724 = vld [vmem:[%s2114 + $0x1f8] sm:$0x3]
  %3741 = vst [vmem:[#allocation1] ss:$4 sm:$0xff] %v3709
  %s3742 = scalar_lea.vmem [#allocation1], 1
  %3743 = vst [vmem:[%s3742] ss:$4 sm:$0xff] %v3710
  %s3744 = scalar_lea.vmem [#allocation1], 2
  %3745 = vst [vmem:[%s3744] ss:$4 sm:$0xff] %v3711
  %s3746 = scalar_lea.vmem [#allocation1], 3
  %3747 = vst [vmem:[%s3746] ss:$4 sm:$0xff] %v3712
  %s3748 = scalar_lea.vmem [#allocation1], 32
  %3749 = vst [vmem:[%s3748] ss:$4 sm:$0xff] %v3713
  %s3750 = scalar_lea.vmem [#allocation1], 33
  %3751 = vst [vmem:[%s3750] ss:$4 sm:$0xff] %v3714
  %s3752 = scalar_lea.vmem [#allocation1], 34
  %3753 = vst [vmem:[%s3752] ss:$4 sm:$0xff] %v3715
  %s3754 = scalar_lea.vmem [#allocation1], 35
  %3755 = vst [vmem:[%s3754] ss:$4 sm:$0xff] %v3716
  %v3756 = vld.sshfl [vmem:[#allocation1] sm:$0xff pattern:$0x73625140]
  %v3757 = vld.sshfl [vmem:[#allocation1 + $0x20] sm:$0xff pattern:$0x73625140]
  %3758 = vst [vmem:[#allocation1] ss:$4 sm:$0xff] %v3717
  %3759 = vst [vmem:[%s3742] ss:$4 sm:$0xff] %v3718
  %3760 = vst [vmem:[%s3744] ss:$4 sm:$0xff] %v3719
  %3761 = vst [vmem:[%s3746] ss:$4 sm:$0xff] %v3720
  %3762 = vst [vmem:[%s3748] ss:$4 sm:$0xff] %v3721
  %3763 = vst [vmem:[%s3750] ss:$4 sm:$0xff] %v3722
  %3764 = vst [vmem:[%s3752] ss:$4 sm:$0xff] %v3723
  %3765 = vst [vmem:[%s3754] ss:$4 sm:$0xff] %v3724
  %v3766 = vld.sshfl [vmem:[#allocation1] sm:$0xff pattern:$0x73625140]
  %v3767 = vld.sshfl [vmem:[#allocation1 + $0x20] sm:$0xff pattern:$0x73625140]
  %v3772 = vpack.c.bf16 %v3757, %v3756
  %v3773 = vpack.c.bf16 %v3767, %v3766
  %s3774 = scalar_lea.vmem %s3, 192
  %v3775 = vld [vmem:[%s3774] sm:$0xf]
  %v3776 = vld [vmem:[%s3774 + $0x4] sm:$0xf]
  %v3777 = vld [vmem:[%s3774 + $0x8] sm:$0xf]
  %v3778 = vld [vmem:[%s3774 + $0xc] sm:$0xf]
  %v3783 = vunpack.c.l.b16 %v3775
  %v3784 = vunpack.c.l.b16 %v3776
  %v3785 = vunpack.c.l.b16 %v3777
  %v3786 = vunpack.c.l.b16 %v3778
  %v3787 = vpack.c.b16 %v3784, %v3783
  %v3788 = vpack.c.b16 %v3786, %v3785
  %v3792 = vsel %vm2526, %v3772, 0
  %v3795 = vsel %vm2526, %v3773, 0
  %3797 = vmatpush.bf16.msra.mxu0 0
  %3798 = vmatpush.bf16.msra.mxu0 0
  %3799 = vmatpush.bf16.msra.mxu0 0
  %3800 = vmatpush.bf16.msra.mxu0 0
  %3801 = vmatpush.bf16.msra.mxu0 0
  %3802 = vmatpush.bf16.msra.mxu0 0
  %3803 = vmatpush.bf16.msra.mxu0 %v3788
  %3804 = vmatpush.bf16.msra.mxu0 %v3787
  %3805 = vmatmul.bf16.gmra.mxu0 %v3792
  %v3806 = vpop.f32.mrf.mxu0
  %v3807 = vadd.f32 0.0, %v3806
  %v3808 = vpop.f32.mrf.mxu0
  %v3809 = vadd.f32 0.0, %v3808
  %3810 = vmatmul.bf16.gmra.mxu0 %v3795
  %v3811 = vpop.f32.mrf.mxu0
  %v3812 = vadd.f32 0.0, %v3811
  %v3813 = vpop.f32.mrf.mxu0
  %v3814 = vadd.f32 0.0, %v3813
  %3815 = vdwg.mxu0
  %v3816 = vadd.f32 %v3705, %v3807
  %v3817 = vadd.f32 %v3706, %v3809
  %v3818 = vadd.f32 %v3707, %v3812
  %v3819 = vadd.f32 %v3708, %v3814
  %s3820 = scalar_lea.vmem [#allocation2], 86
  %v3821 = vld [vmem:[%s3820] sm:$0x3]
  %v3822 = vld [vmem:[%s3820 + $0x8] sm:$0x3]
  %v3823 = vld [vmem:[%s3820 + $0x10] sm:$0x3]
  %v3824 = vld [vmem:[%s3820 + $0x18] sm:$0x3]
  %v3825 = vld [vmem:[%s3820 + $0xa0] sm:$0x3]
  %v3826 = vld [vmem:[%s3820 + $0xa8] sm:$0x3]
  %v3827 = vld [vmem:[%s3820 + $0xb0] sm:$0x3]
  %v3828 = vld [vmem:[%s3820 + $0xb8] sm:$0x3]
  %v3829 = vld [vmem:[%s3820 + $0x140] sm:$0x3]
  %v3830 = vld [vmem:[%s3820 + $0x148] sm:$0x3]
  %v3831 = vld [vmem:[%s3820 + $0x150] sm:$0x3]
  %v3832 = vld [vmem:[%s3820 + $0x158] sm:$0x3]
  %v3833 = vld [vmem:[%s3820 + $0x1e0] sm:$0x3]
  %v3834 = vld [vmem:[%s3820 + $0x1e8] sm:$0x3]
  %v3835 = vld [vmem:[%s3820 + $0x1f0] sm:$0x3]
  %v3836 = vld [vmem:[%s3820 + $0x1f8] sm:$0x3]
  %3853 = vst [vmem:[#allocation1] ss:$4 sm:$0xff] %v3821
  %s3854 = scalar_lea.vmem [#allocation1], 1
  %3855 = vst [vmem:[%s3854] ss:$4 sm:$0xff] %v3822
  %s3856 = scalar_lea.vmem [#allocation1], 2
  %3857 = vst [vmem:[%s3856] ss:$4 sm:$0xff] %v3823
  %s3858 = scalar_lea.vmem [#allocation1], 3
  %3859 = vst [vmem:[%s3858] ss:$4 sm:$0xff] %v3824
  %s3860 = scalar_lea.vmem [#allocation1], 32
  %3861 = vst [vmem:[%s3860] ss:$4 sm:$0xff] %v3825
  %s3862 = scalar_lea.vmem [#allocation1], 33
  %3863 = vst [vmem:[%s3862] ss:$4 sm:$0xff] %v3826
  %s3864 = scalar_lea.vmem [#allocation1], 34
  %3865 = vst [vmem:[%s3864] ss:$4 sm:$0xff] %v3827
  %s3866 = scalar_lea.vmem [#allocation1], 35
  %3867 = vst [vmem:[%s3866] ss:$4 sm:$0xff] %v3828
  %v3868 = vld.sshfl [vmem:[#allocation1] sm:$0xff pattern:$0x73625140]
  %v3869 = vld.sshfl [vmem:[#allocation1 + $0x20] sm:$0xff pattern:$0x73625140]
  %3870 = vst [vmem:[#allocation1] ss:$4 sm:$0xff] %v3829
  %3871 = vst [vmem:[%s3854] ss:$4 sm:$0xff] %v3830
  %3872 = vst [vmem:[%s3856] ss:$4 sm:$0xff] %v3831
  %3873 = vst [vmem:[%s3858] ss:$4 sm:$0xff] %v3832
  %3874 = vst [vmem:[%s3860] ss:$4 sm:$0xff] %v3833
  %3875 = vst [vmem:[%s3862] ss:$4 sm:$0xff] %v3834
  %3876 = vst [vmem:[%s3864] ss:$4 sm:$0xff] %v3835
  %3877 = vst [vmem:[%s3866] ss:$4 sm:$0xff] %v3836
  %v3878 = vld.sshfl [vmem:[#allocation1] sm:$0xff pattern:$0x73625140]
  %v3879 = vld.sshfl [vmem:[#allocation1 + $0x20] sm:$0xff pattern:$0x73625140]
  %v3884 = vpack.c.bf16 %v3869, %v3868
  %v3885 = vpack.c.bf16 %v3879, %v3878
  %s3886 = scalar_lea.vmem %s3, 208
  %v3887 = vld [vmem:[%s3886] sm:$0xf]
  %v3888 = vld [vmem:[%s3886 + $0x4] sm:$0xf]
  %v3889 = vld [vmem:[%s3886 + $0x8] sm:$0xf]
  %v3890 = vld [vmem:[%s3886 + $0xc] sm:$0xf]
  %v3895 = vunpack.c.l.b16 %v3887
  %v3896 = vunpack.c.l.b16 %v3888
  %v3897 = vunpack.c.l.b16 %v3889
  %v3898 = vunpack.c.l.b16 %v3890
  %v3899 = vpack.c.b16 %v3896, %v3895
  %v3900 = vpack.c.b16 %v3898, %v3897
  %v3904 = vsel %vm2526, %v3884, 0
  %v3907 = vsel %vm2526, %v3885, 0
  %3909 = vmatpush.bf16.msra.mxu0 0
  %3910 = vmatpush.bf16.msra.mxu0 0
  %3911 = vmatpush.bf16.msra.mxu0 0
  %3912 = vmatpush.bf16.msra.mxu0 0
  %3913 = vmatpush.bf16.msra.mxu0 0
  %3914 = vmatpush.bf16.msra.mxu0 0
  %3915 = vmatpush.bf16.msra.mxu0 %v3900
  %3916 = vmatpush.bf16.msra.mxu0 %v3899
  %3917 = vmatmul.bf16.gmra.mxu0 %v3904
  %v3918 = vpop.f32.mrf.mxu0
  %v3919 = vadd.f32 0.0, %v3918
  %v3920 = vpop.f32.mrf.mxu0
  %v3921 = vadd.f32 0.0, %v3920
  %3922 = vmatmul.bf16.gmra.mxu0 %v3907
  %v3923 = vpop.f32.mrf.mxu0
  %v3924 = vadd.f32 0.0, %v3923
  %v3925 = vpop.f32.mrf.mxu0
  %v3926 = vadd.f32 0.0, %v3925
  %3927 = vdwg.mxu0
  %v3928 = vadd.f32 %v3816, %v3919
  %v3929 = vadd.f32 %v3817, %v3921
  %v3930 = vadd.f32 %v3818, %v3924
  %v3931 = vadd.f32 %v3819, %v3926
  %v3932 = vld [vmem:[%s2179] sm:$0x3]
  %v3933 = vld [vmem:[%s2179 + $0x8] sm:$0x3]
  %v3934 = vld [vmem:[%s2179 + $0x10] sm:$0x3]
  %v3935 = vld [vmem:[%s2179 + $0x18] sm:$0x3]
  %v3936 = vld [vmem:[%s2179 + $0xa0] sm:$0x3]
  %v3937 = vld [vmem:[%s2179 + $0xa8] sm:$0x3]
  %v3938 = vld [vmem:[%s2179 + $0xb0] sm:$0x3]
  %v3939 = vld [vmem:[%s2179 + $0xb8] sm:$0x3]
  %v3940 = vld [vmem:[%s2179 + $0x140] sm:$0x3]
  %v3941 = vld [vmem:[%s2179 + $0x148] sm:$0x3]
  %v3942 = vld [vmem:[%s2179 + $0x150] sm:$0x3]
  %v3943 = vld [vmem:[%s2179 + $0x158] sm:$0x3]
  %v3944 = vld [vmem:[%s2179 + $0x1e0] sm:$0x3]
  %v3945 = vld [vmem:[%s2179 + $0x1e8] sm:$0x3]
  %v3946 = vld [vmem:[%s2179 + $0x1f0] sm:$0x3]
  %v3947 = vld [vmem:[%s2179 + $0x1f8] sm:$0x3]
  %3964 = vst [vmem:[#allocation1] ss:$4 sm:$0xff] %v3932
  %s3965 = scalar_lea.vmem [#allocation1], 1
  %3966 = vst [vmem:[%s3965] ss:$4 sm:$0xff] %v3933
  %s3967 = scalar_lea.vmem [#allocation1], 2
  %3968 = vst [vmem:[%s3967] ss:$4 sm:$0xff] %v3934
  %s3969 = scalar_lea.vmem [#allocation1], 3
  %3970 = vst [vmem:[%s3969] ss:$4 sm:$0xff] %v3935
  %s3971 = scalar_lea.vmem [#allocation1], 32
  %3972 = vst [vmem:[%s3971] ss:$4 sm:$0xff] %v3936
  %s3973 = scalar_lea.vmem [#allocation1], 33
  %3974 = vst [vmem:[%s3973] ss:$4 sm:$0xff] %v3937
  %s3975 = scalar_lea.vmem [#allocation1], 34
  %3976 = vst [vmem:[%s3975] ss:$4 sm:$0xff] %v3938
  %s3977 = scalar_lea.vmem [#allocation1], 35
  %3978 = vst [vmem:[%s3977] ss:$4 sm:$0xff] %v3939
  %v3979 = vld.sshfl [vmem:[#allocation1] sm:$0xff pattern:$0x73625140]
  %v3980 = vld.sshfl [vmem:[#allocation1 + $0x20] sm:$0xff pattern:$0x73625140]
  %3981 = vst [vmem:[#allocation1] ss:$4 sm:$0xff] %v3940
  %3982 = vst [vmem:[%s3965] ss:$4 sm:$0xff] %v3941
  %3983 = vst [vmem:[%s3967] ss:$4 sm:$0xff] %v3942
  %3984 = vst [vmem:[%s3969] ss:$4 sm:$0xff] %v3943
  %3985 = vst [vmem:[%s3971] ss:$4 sm:$0xff] %v3944
  %3986 = vst [vmem:[%s3973] ss:$4 sm:$0xff] %v3945
  %3987 = vst [vmem:[%s3975] ss:$4 sm:$0xff] %v3946
  %3988 = vst [vmem:[%s3977] ss:$4 sm:$0xff] %v3947
  %v3989 = vld.sshfl [vmem:[#allocation1] sm:$0xff pattern:$0x73625140]
  %v3990 = vld.sshfl [vmem:[#allocation1 + $0x20] sm:$0xff pattern:$0x73625140]
  %v3995 = vpack.c.bf16 %v3980, %v3979
  %v3996 = vpack.c.bf16 %v3990, %v3989
  %s3997 = scalar_lea.vmem %s3, 224
  %v3998 = vld [vmem:[%s3997] sm:$0xf]
  %v3999 = vld [vmem:[%s3997 + $0x4] sm:$0xf]
  %v4000 = vld [vmem:[%s3997 + $0x8] sm:$0xf]
  %v4001 = vld [vmem:[%s3997 + $0xc] sm:$0xf]
  %v4006 = vunpack.c.l.b16 %v3998
  %v4007 = vunpack.c.l.b16 %v3999
  %v4008 = vunpack.c.l.b16 %v4000
  %v4009 = vunpack.c.l.b16 %v4001
  %v4010 = vpack.c.b16 %v4007, %v4006
  %v4011 = vpack.c.b16 %v4009, %v4008
  %v4015 = vsel %vm2526, %v3995, 0
  %v4018 = vsel %vm2526, %v3996, 0
  %4020 = vmatpush.bf16.msra.mxu0 0
  %4021 = vmatpush.bf16.msra.mxu0 0
  %4022 = vmatpush.bf16.msra.mxu0 0
  %4023 = vmatpush.bf16.msra.mxu0 0
  %4024 = vmatpush.bf16.msra.mxu0 0
  %4025 = vmatpush.bf16.msra.mxu0 0
  %4026 = vmatpush.bf16.msra.mxu0 %v4011
  %4027 = vmatpush.bf16.msra.mxu0 %v4010
  %4028 = vmatmul.bf16.gmra.mxu0 %v4015
  %v4029 = vpop.f32.mrf.mxu0
  %v4030 = vadd.f32 0.0, %v4029
  %v4031 = vpop.f32.mrf.mxu0
  %v4032 = vadd.f32 0.0, %v4031
  %4033 = vmatmul.bf16.gmra.mxu0 %v4018
  %v4034 = vpop.f32.mrf.mxu0
  %v4035 = vadd.f32 0.0, %v4034
  %v4036 = vpop.f32.mrf.mxu0
  %v4037 = vadd.f32 0.0, %v4036
  %4038 = vdwg.mxu0
  %v4039 = vadd.f32 %v3928, %v4030
  %v4040 = vadd.f32 %v3929, %v4032
  %v4041 = vadd.f32 %v3930, %v4035
  %v4042 = vadd.f32 %v3931, %v4037
  %s4043 = scalar_lea.vmem [#allocation2], 120
  %v4044 = vld [vmem:[%s4043] sm:$0x3]
  %v4045 = vld [vmem:[%s4043 + $0x8] sm:$0x3]
  %v4046 = vld [vmem:[%s4043 + $0x10] sm:$0x3]
  %v4047 = vld [vmem:[%s4043 + $0x18] sm:$0x3]
  %v4048 = vld [vmem:[%s4043 + $0xa0] sm:$0x3]
  %v4049 = vld [vmem:[%s4043 + $0xa8] sm:$0x3]
  %v4050 = vld [vmem:[%s4043 + $0xb0] sm:$0x3]
  %v4051 = vld [vmem:[%s4043 + $0xb8] sm:$0x3]
  %v4052 = vld [vmem:[%s4043 + $0x140] sm:$0x3]
  %v4053 = vld [vmem:[%s4043 + $0x148] sm:$0x3]
  %v4054 = vld [vmem:[%s4043 + $0x150] sm:$0x3]
  %v4055 = vld [vmem:[%s4043 + $0x158] sm:$0x3]
  %v4056 = vld [vmem:[%s4043 + $0x1e0] sm:$0x3]
  %v4057 = vld [vmem:[%s4043 + $0x1e8] sm:$0x3]
  %v4058 = vld [vmem:[%s4043 + $0x1f0] sm:$0x3]
  %v4059 = vld [vmem:[%s4043 + $0x1f8] sm:$0x3]
  %4076 = vst [vmem:[#allocation1] ss:$4 sm:$0xff] %v4044
  %s4077 = scalar_lea.vmem [#allocation1], 1
  %4078 = vst [vmem:[%s4077] ss:$4 sm:$0xff] %v4045
  %s4079 = scalar_lea.vmem [#allocation1], 2
  %4080 = vst [vmem:[%s4079] ss:$4 sm:$0xff] %v4046
  %s4081 = scalar_lea.vmem [#allocation1], 3
  %4082 = vst [vmem:[%s4081] ss:$4 sm:$0xff] %v4047
  %s4083 = scalar_lea.vmem [#allocation1], 32
  %4084 = vst [vmem:[%s4083] ss:$4 sm:$0xff] %v4048
  %s4085 = scalar_lea.vmem [#allocation1], 33
  %4086 = vst [vmem:[%s4085] ss:$4 sm:$0xff] %v4049
  %s4087 = scalar_lea.vmem [#allocation1], 34
  %4088 = vst [vmem:[%s4087] ss:$4 sm:$0xff] %v4050
  %s4089 = scalar_lea.vmem [#allocation1], 35
  %4090 = vst [vmem:[%s4089] ss:$4 sm:$0xff] %v4051
  %v4091 = vld.sshfl [vmem:[#allocation1] sm:$0xff pattern:$0x73625140]
  %v4092 = vld.sshfl [vmem:[#allocation1 + $0x20] sm:$0xff pattern:$0x73625140]
  %4093 = vst [vmem:[#allocation1] ss:$4 sm:$0xff] %v4052
  %4094 = vst [vmem:[%s4077] ss:$4 sm:$0xff] %v4053
  %4095 = vst [vmem:[%s4079] ss:$4 sm:$0xff] %v4054
  %4096 = vst [vmem:[%s4081] ss:$4 sm:$0xff] %v4055
  %4097 = vst [vmem:[%s4083] ss:$4 sm:$0xff] %v4056
  %4098 = vst [vmem:[%s4085] ss:$4 sm:$0xff] %v4057
  %4099 = vst [vmem:[%s4087] ss:$4 sm:$0xff] %v4058
  %4100 = vst [vmem:[%s4089] ss:$4 sm:$0xff] %v4059
  %v4101 = vld.sshfl [vmem:[#allocation1] sm:$0xff pattern:$0x73625140]
  %v4102 = vld.sshfl [vmem:[#allocation1 + $0x20] sm:$0xff pattern:$0x73625140]
  %v4107 = vpack.c.bf16 %v4092, %v4091
  %v4108 = vpack.c.bf16 %v4102, %v4101
  %s4109 = scalar_lea.vmem %s3, 240
  %v4110 = vld [vmem:[%s4109] sm:$0xf]
  %v4111 = vld [vmem:[%s4109 + $0x4] sm:$0xf]
  %v4112 = vld [vmem:[%s4109 + $0x8] sm:$0xf]
  %v4113 = vld [vmem:[%s4109 + $0xc] sm:$0xf]
  %v4118 = vunpack.c.l.b16 %v4110
  %v4119 = vunpack.c.l.b16 %v4111
  %v4120 = vunpack.c.l.b16 %v4112
  %v4121 = vunpack.c.l.b16 %v4113
  %v4122 = vpack.c.b16 %v4119, %v4118
  %v4123 = vpack.c.b16 %v4121, %v4120
  %v4127 = vsel %vm2526, %v4107, 0
  %v4130 = vsel %vm2526, %v4108, 0
  %4132 = vmatpush.bf16.msra.mxu0 0
  %4133 = vmatpush.bf16.msra.mxu0 0
  %4134 = vmatpush.bf16.msra.mxu0 0
  %4135 = vmatpush.bf16.msra.mxu0 0
  %4136 = vmatpush.bf16.msra.mxu0 0
  %4137 = vmatpush.bf16.msra.mxu0 0
  %4138 = vmatpush.bf16.msra.mxu0 %v4123
  %4139 = vmatpush.bf16.msra.mxu0 %v4122
  %4140 = vmatmul.bf16.gmra.mxu0 %v4127
  %v4141 = vpop.f32.mrf.mxu0
  %v4142 = vadd.f32 0.0, %v4141
  %v4143 = vpop.f32.mrf.mxu0
  %v4144 = vadd.f32 0.0, %v4143
  %4145 = vmatmul.bf16.gmra.mxu0 %v4130
  %v4146 = vpop.f32.mrf.mxu0
  %v4147 = vadd.f32 0.0, %v4146
  %v4148 = vpop.f32.mrf.mxu0
  %v4149 = vadd.f32 0.0, %v4148
  %4150 = vdwg.mxu0
  %v4151 = vadd.f32 %v4039, %v4142
  %v4152 = vadd.f32 %v4040, %v4144
  %v4153 = vadd.f32 %v4041, %v4147
  %v4154 = vadd.f32 %v4042, %v4149
  %s4155 = scalar_lea.vmem [#allocation2], 122
  %v4156 = vld [vmem:[%s4155] sm:$0x3]
  %v4157 = vld [vmem:[%s4155 + $0x8] sm:$0x3]
  %v4158 = vld [vmem:[%s4155 + $0x10] sm:$0x3]
  %v4159 = vld [vmem:[%s4155 + $0x18] sm:$0x3]
  %v4160 = vld [vmem:[%s4155 + $0xa0] sm:$0x3]
  %v4161 = vld [vmem:[%s4155 + $0xa8] sm:$0x3]
  %v4162 = vld [vmem:[%s4155 + $0xb0] sm:$0x3]
  %v4163 = vld [vmem:[%s4155 + $0xb8] sm:$0x3]
  %v4164 = vld [vmem:[%s4155 + $0x140] sm:$0x3]
  %v4165 = vld [vmem:[%s4155 + $0x148] sm:$0x3]
  %v4166 = vld [vmem:[%s4155 + $0x150] sm:$0x3]
  %v4167 = vld [vmem:[%s4155 + $0x158] sm:$0x3]
  %v4168 = vld [vmem:[%s4155 + $0x1e0] sm:$0x3]
  %v4169 = vld [vmem:[%s4155 + $0x1e8] sm:$0x3]
  %v4170 = vld [vmem:[%s4155 + $0x1f0] sm:$0x3]
  %v4171 = vld [vmem:[%s4155 + $0x1f8] sm:$0x3]
  %4188 = vst [vmem:[#allocation1] ss:$4 sm:$0xff] %v4156
  %s4189 = scalar_lea.vmem [#allocation1], 1
  %4190 = vst [vmem:[%s4189] ss:$4 sm:$0xff] %v4157
  %s4191 = scalar_lea.vmem [#allocation1], 2
  %4192 = vst [vmem:[%s4191] ss:$4 sm:$0xff] %v4158
  %s4193 = scalar_lea.vmem [#allocation1], 3
  %4194 = vst [vmem:[%s4193] ss:$4 sm:$0xff] %v4159
  %s4195 = scalar_lea.vmem [#allocation1], 32
  %4196 = vst [vmem:[%s4195] ss:$4 sm:$0xff] %v4160
  %s4197 = scalar_lea.vmem [#allocation1], 33
  %4198 = vst [vmem:[%s4197] ss:$4 sm:$0xff] %v4161
  %s4199 = scalar_lea.vmem [#allocation1], 34
  %4200 = vst [vmem:[%s4199] ss:$4 sm:$0xff] %v4162
  %s4201 = scalar_lea.vmem [#allocation1], 35
  %4202 = vst [vmem:[%s4201] ss:$4 sm:$0xff] %v4163
  %v4203 = vld.sshfl [vmem:[#allocation1] sm:$0xff pattern:$0x73625140]
  %v4204 = vld.sshfl [vmem:[#allocation1 + $0x20] sm:$0xff pattern:$0x73625140]
  %4205 = vst [vmem:[#allocation1] ss:$4 sm:$0xff] %v4164
  %4206 = vst [vmem:[%s4189] ss:$4 sm:$0xff] %v4165
  %4207 = vst [vmem:[%s4191] ss:$4 sm:$0xff] %v4166
  %4208 = vst [vmem:[%s4193] ss:$4 sm:$0xff] %v4167
  %4209 = vst [vmem:[%s4195] ss:$4 sm:$0xff] %v4168
  %4210 = vst [vmem:[%s4197] ss:$4 sm:$0xff] %v4169
  %4211 = vst [vmem:[%s4199] ss:$4 sm:$0xff] %v4170
  %4212 = vst [vmem:[%s4201] ss:$4 sm:$0xff] %v4171
  %v4213 = vld.sshfl [vmem:[#allocation1] sm:$0xff pattern:$0x73625140]
  %v4214 = vld.sshfl [vmem:[#allocation1 + $0x20] sm:$0xff pattern:$0x73625140]
  %v4219 = vpack.c.bf16 %v4204, %v4203
  %v4220 = vpack.c.bf16 %v4214, %v4213
  %s4221 = scalar_lea.vmem %s3, 256
  %v4222 = vld [vmem:[%s4221] sm:$0xf]
  %v4223 = vld [vmem:[%s4221 + $0x4] sm:$0xf]
  %v4224 = vld [vmem:[%s4221 + $0x8] sm:$0xf]
  %v4225 = vld [vmem:[%s4221 + $0xc] sm:$0xf]
  %v4230 = vunpack.c.l.b16 %v4222
  %v4231 = vunpack.c.l.b16 %v4223
  %v4232 = vunpack.c.l.b16 %v4224
  %v4233 = vunpack.c.l.b16 %v4225
  %v4234 = vpack.c.b16 %v4231, %v4230
  %v4235 = vpack.c.b16 %v4233, %v4232
  %v4239 = vsel %vm2526, %v4219, 0
  %v4242 = vsel %vm2526, %v4220, 0
  %4244 = vmatpush.bf16.msra.mxu0 0
  %4245 = vmatpush.bf16.msra.mxu0 0
  %4246 = vmatpush.bf16.msra.mxu0 0
  %4247 = vmatpush.bf16.msra.mxu0 0
  %4248 = vmatpush.bf16.msra.mxu0 0
  %4249 = vmatpush.bf16.msra.mxu0 0
  %4250 = vmatpush.bf16.msra.mxu0 %v4235
  %4251 = vmatpush.bf16.msra.mxu0 %v4234
  %4252 = vmatmul.bf16.gmra.mxu0 %v4239
  %v4253 = vpop.f32.mrf.mxu0
  %v4254 = vadd.f32 0.0, %v4253
  %v4255 = vpop.f32.mrf.mxu0
  %v4256 = vadd.f32 0.0, %v4255
  %4257 = vmatmul.bf16.gmra.mxu0 %v4242
  %v4258 = vpop.f32.mrf.mxu0
  %v4259 = vadd.f32 0.0, %v4258
  %v4260 = vpop.f32.mrf.mxu0
  %v4261 = vadd.f32 0.0, %v4260
  %4262 = vdwg.mxu0
  %v4263 = vadd.f32 %v4151, %v4254
  %v4264 = vadd.f32 %v4152, %v4256
  %v4265 = vadd.f32 %v4153, %v4259
  %v4266 = vadd.f32 %v4154, %v4261
  %s4267 = scalar_lea.vmem [#allocation2], 124
  %v4268 = vld [vmem:[%s4267] sm:$0x3]
  %v4269 = vld [vmem:[%s4267 + $0x8] sm:$0x3]
  %v4270 = vld [vmem:[%s4267 + $0x10] sm:$0x3]
  %v4271 = vld [vmem:[%s4267 + $0x18] sm:$0x3]
  %v4272 = vld [vmem:[%s4267 + $0xa0] sm:$0x3]
  %v4273 = vld [vmem:[%s4267 + $0xa8] sm:$0x3]
  %v4274 = vld [vmem:[%s4267 + $0xb0] sm:$0x3]
  %v4275 = vld [vmem:[%s4267 + $0xb8] sm:$0x3]
  %v4276 = vld [vmem:[%s4267 + $0x140] sm:$0x3]
  %v4277 = vld [vmem:[%s4267 + $0x148] sm:$0x3]
  %v4278 = vld [vmem:[%s4267 + $0x150] sm:$0x3]
  %v4279 = vld [vmem:[%s4267 + $0x158] sm:$0x3]
  %v4280 = vld [vmem:[%s4267 + $0x1e0] sm:$0x3]
  %v4281 = vld [vmem:[%s4267 + $0x1e8] sm:$0x3]
  %v4282 = vld [vmem:[%s4267 + $0x1f0] sm:$0x3]
  %v4283 = vld [vmem:[%s4267 + $0x1f8] sm:$0x3]
  %4300 = vst [vmem:[#allocation1] ss:$4 sm:$0xff] %v4268
  %s4301 = scalar_lea.vmem [#allocation1], 1
  %4302 = vst [vmem:[%s4301] ss:$4 sm:$0xff] %v4269
  %s4303 = scalar_lea.vmem [#allocation1], 2
  %4304 = vst [vmem:[%s4303] ss:$4 sm:$0xff] %v4270
  %s4305 = scalar_lea.vmem [#allocation1], 3
  %4306 = vst [vmem:[%s4305] ss:$4 sm:$0xff] %v4271
  %s4307 = scalar_lea.vmem [#allocation1], 32
  %4308 = vst [vmem:[%s4307] ss:$4 sm:$0xff] %v4272
  %s4309 = scalar_lea.vmem [#allocation1], 33
  %4310 = vst [vmem:[%s4309] ss:$4 sm:$0xff] %v4273
  %s4311 = scalar_lea.vmem [#allocation1], 34
  %4312 = vst [vmem:[%s4311] ss:$4 sm:$0xff] %v4274
  %s4313 = scalar_lea.vmem [#allocation1], 35
  %4314 = vst [vmem:[%s4313] ss:$4 sm:$0xff] %v4275
  %v4315 = vld.sshfl [vmem:[#allocation1] sm:$0xff pattern:$0x73625140]
  %v4316 = vld.sshfl [vmem:[#allocation1 + $0x20] sm:$0xff pattern:$0x73625140]
  %4317 = vst [vmem:[#allocation1] ss:$4 sm:$0xff] %v4276
  %4318 = vst [vmem:[%s4301] ss:$4 sm:$0xff] %v4277
  %4319 = vst [vmem:[%s4303] ss:$4 sm:$0xff] %v4278
  %4320 = vst [vmem:[%s4305] ss:$4 sm:$0xff] %v4279
  %4321 = vst [vmem:[%s4307] ss:$4 sm:$0xff] %v4280
  %4322 = vst [vmem:[%s4309] ss:$4 sm:$0xff] %v4281
  %4323 = vst [vmem:[%s4311] ss:$4 sm:$0xff] %v4282
  %4324 = vst [vmem:[%s4313] ss:$4 sm:$0xff] %v4283
  %v4325 = vld.sshfl [vmem:[#allocation1] sm:$0xff pattern:$0x73625140]
  %v4326 = vld.sshfl [vmem:[#allocation1 + $0x20] sm:$0xff pattern:$0x73625140]
  %v4331 = vpack.c.bf16 %v4316, %v4315
  %v4332 = vpack.c.bf16 %v4326, %v4325
  %s4333 = scalar_lea.vmem %s3, 272
  %v4334 = vld [vmem:[%s4333] sm:$0xf]
  %v4335 = vld [vmem:[%s4333 + $0x4] sm:$0xf]
  %v4336 = vld [vmem:[%s4333 + $0x8] sm:$0xf]
  %v4337 = vld [vmem:[%s4333 + $0xc] sm:$0xf]
  %v4342 = vunpack.c.l.b16 %v4334
  %v4343 = vunpack.c.l.b16 %v4335
  %v4344 = vunpack.c.l.b16 %v4336
  %v4345 = vunpack.c.l.b16 %v4337
  %v4346 = vpack.c.b16 %v4343, %v4342
  %v4347 = vpack.c.b16 %v4345, %v4344
  %v4351 = vsel %vm2526, %v4331, 0
  %v4354 = vsel %vm2526, %v4332, 0
  %4356 = vmatpush.bf16.msra.mxu0 0
  %4357 = vmatpush.bf16.msra.mxu0 0
  %4358 = vmatpush.bf16.msra.mxu0 0
  %4359 = vmatpush.bf16.msra.mxu0 0
  %4360 = vmatpush.bf16.msra.mxu0 0
  %4361 = vmatpush.bf16.msra.mxu0 0
  %4362 = vmatpush.bf16.msra.mxu0 %v4347
  %4363 = vmatpush.bf16.msra.mxu0 %v4346
  %4364 = vmatmul.bf16.gmra.mxu0 %v4351
  %v4365 = vpop.f32.mrf.mxu0
  %v4366 = vadd.f32 0.0, %v4365
  %v4367 = vpop.f32.mrf.mxu0
  %v4368 = vadd.f32 0.0, %v4367
  %4369 = vmatmul.bf16.gmra.mxu0 %v4354
  %v4370 = vpop.f32.mrf.mxu0
  %v4371 = vadd.f32 0.0, %v4370
  %v4372 = vpop.f32.mrf.mxu0
  %v4373 = vadd.f32 0.0, %v4372
  %4374 = vdwg.mxu0
  %v4375 = vadd.f32 %v4263, %v4366
  %v4376 = vadd.f32 %v4264, %v4368
  %v4377 = vadd.f32 %v4265, %v4371
  %v4378 = vadd.f32 %v4266, %v4373
  %s4379 = scalar_lea.vmem [#allocation2], 126
  %v4380 = vld [vmem:[%s4379] sm:$0x3]
  %v4381 = vld [vmem:[%s4379 + $0x8] sm:$0x3]
  %v4382 = vld [vmem:[%s4379 + $0x10] sm:$0x3]
  %v4383 = vld [vmem:[%s4379 + $0x18] sm:$0x3]
  %v4384 = vld [vmem:[%s4379 + $0xa0] sm:$0x3]
  %v4385 = vld [vmem:[%s4379 + $0xa8] sm:$0x3]
  %v4386 = vld [vmem:[%s4379 + $0xb0] sm:$0x3]
  %v4387 = vld [vmem:[%s4379 + $0xb8] sm:$0x3]
  %v4388 = vld [vmem:[%s4379 + $0x140] sm:$0x3]
  %v4389 = vld [vmem:[%s4379 + $0x148] sm:$0x3]
  %v4390 = vld [vmem:[%s4379 + $0x150] sm:$0x3]
  %v4391 = vld [vmem:[%s4379 + $0x158] sm:$0x3]
  %v4392 = vld [vmem:[%s4379 + $0x1e0] sm:$0x3]
  %v4393 = vld [vmem:[%s4379 + $0x1e8] sm:$0x3]
  %v4394 = vld [vmem:[%s4379 + $0x1f0] sm:$0x3]
  %v4395 = vld [vmem:[%s4379 + $0x1f8] sm:$0x3]
  %4412 = vst [vmem:[#allocation1] ss:$4 sm:$0xff] %v4380
  %s4413 = scalar_lea.vmem [#allocation1], 1
  %4414 = vst [vmem:[%s4413] ss:$4 sm:$0xff] %v4381
  %s4415 = scalar_lea.vmem [#allocation1], 2
  %4416 = vst [vmem:[%s4415] ss:$4 sm:$0xff] %v4382
  %s4417 = scalar_lea.vmem [#allocation1], 3
  %4418 = vst [vmem:[%s4417] ss:$4 sm:$0xff] %v4383
  %s4419 = scalar_lea.vmem [#allocation1], 32
  %4420 = vst [vmem:[%s4419] ss:$4 sm:$0xff] %v4384
  %s4421 = scalar_lea.vmem [#allocation1], 33
  %4422 = vst [vmem:[%s4421] ss:$4 sm:$0xff] %v4385
  %s4423 = scalar_lea.vmem [#allocation1], 34
  %4424 = vst [vmem:[%s4423] ss:$4 sm:$0xff] %v4386
  %s4425 = scalar_lea.vmem [#allocation1], 35
  %4426 = vst [vmem:[%s4425] ss:$4 sm:$0xff] %v4387
  %v4427 = vld.sshfl [vmem:[#allocation1] sm:$0xff pattern:$0x73625140]
  %v4428 = vld.sshfl [vmem:[#allocation1 + $0x20] sm:$0xff pattern:$0x73625140]
  %4429 = vst [vmem:[#allocation1] ss:$4 sm:$0xff] %v4388
  %4430 = vst [vmem:[%s4413] ss:$4 sm:$0xff] %v4389
  %4431 = vst [vmem:[%s4415] ss:$4 sm:$0xff] %v4390
  %4432 = vst [vmem:[%s4417] ss:$4 sm:$0xff] %v4391
  %4433 = vst [vmem:[%s4419] ss:$4 sm:$0xff] %v4392
  %4434 = vst [vmem:[%s4421] ss:$4 sm:$0xff] %v4393
  %4435 = vst [vmem:[%s4423] ss:$4 sm:$0xff] %v4394
  %4436 = vst [vmem:[%s4425] ss:$4 sm:$0xff] %v4395
  %v4437 = vld.sshfl [vmem:[#allocation1] sm:$0xff pattern:$0x73625140]
  %v4438 = vld.sshfl [vmem:[#allocation1 + $0x20] sm:$0xff pattern:$0x73625140]
  %v4443 = vpack.c.bf16 %v4428, %v4427
  %v4444 = vpack.c.bf16 %v4438, %v4437
  %s4445 = scalar_lea.vmem %s3, 288
  %v4446 = vld [vmem:[%s4445] sm:$0xf]
  %v4447 = vld [vmem:[%s4445 + $0x4] sm:$0xf]
  %v4448 = vld [vmem:[%s4445 + $0x8] sm:$0xf]
  %v4449 = vld [vmem:[%s4445 + $0xc] sm:$0xf]
  %v4454 = vunpack.c.l.b16 %v4446
  %v4455 = vunpack.c.l.b16 %v4447
  %v4456 = vunpack.c.l.b16 %v4448
  %v4457 = vunpack.c.l.b16 %v4449
  %v4458 = vpack.c.b16 %v4455, %v4454
  %v4459 = vpack.c.b16 %v4457, %v4456
  %v4463 = vsel %vm2526, %v4443, 0
  %v4466 = vsel %vm2526, %v4444, 0
  %4468 = vmatpush.bf16.msra.mxu0 0
  %4469 = vmatpush.bf16.msra.mxu0 0
  %4470 = vmatpush.bf16.msra.mxu0 0
  %4471 = vmatpush.bf16.msra.mxu0 0
  %4472 = vmatpush.bf16.msra.mxu0 0
  %4473 = vmatpush.bf16.msra.mxu0 0
  %4474 = vmatpush.bf16.msra.mxu0 %v4459
  %4475 = vmatpush.bf16.msra.mxu0 %v4458
  %4476 = vmatmul.bf16.gmra.mxu0 %v4463
  %v4477 = vpop.f32.mrf.mxu0
  %v4478 = vadd.f32 0.0, %v4477
  %v4479 = vpop.f32.mrf.mxu0
  %v4480 = vadd.f32 0.0, %v4479
  %4481 = vmatmul.bf16.gmra.mxu0 %v4466
  %v4482 = vpop.f32.mrf.mxu0
  %v4483 = vadd.f32 0.0, %v4482
  %v4484 = vpop.f32.mrf.mxu0
  %v4485 = vadd.f32 0.0, %v4484
  %4486 = vdwg.mxu0
  %v4487 = vadd.f32 %v4375, %v4478
  %v4488 = vadd.f32 %v4376, %v4480
  %v4489 = vadd.f32 %v4377, %v4483
  %v4490 = vadd.f32 %v4378, %v4485
  %s4491 = scalar_lea.vmem [#allocation2], 128
  %v4492 = vld [vmem:[%s4491] sm:$0x3]
  %v4493 = vld [vmem:[%s4491 + $0x8] sm:$0x3]
  %v4494 = vld [vmem:[%s4491 + $0x10] sm:$0x3]
  %v4495 = vld [vmem:[%s4491 + $0x18] sm:$0x3]
  %v4496 = vld [vmem:[%s4491 + $0xa0] sm:$0x3]
  %v4497 = vld [vmem:[%s4491 + $0xa8] sm:$0x3]
  %v4498 = vld [vmem:[%s4491 + $0xb0] sm:$0x3]
  %v4499 = vld [vmem:[%s4491 + $0xb8] sm:$0x3]
  %v4500 = vld [vmem:[%s4491 + $0x140] sm:$0x3]
  %v4501 = vld [vmem:[%s4491 + $0x148] sm:$0x3]
  %v4502 = vld [vmem:[%s4491 + $0x150] sm:$0x3]
  %v4503 = vld [vmem:[%s4491 + $0x158] sm:$0x3]
  %v4504 = vld [vmem:[%s4491 + $0x1e0] sm:$0x3]
  %v4505 = vld [vmem:[%s4491 + $0x1e8] sm:$0x3]
  %v4506 = vld [vmem:[%s4491 + $0x1f0] sm:$0x3]
  %v4507 = vld [vmem:[%s4491 + $0x1f8] sm:$0x3]
  %4524 = vst [vmem:[#allocation1] ss:$4 sm:$0xff] %v4492
  %s4525 = scalar_lea.vmem [#allocation1], 1
  %4526 = vst [vmem:[%s4525] ss:$4 sm:$0xff] %v4493
  %s4527 = scalar_lea.vmem [#allocation1], 2
  %4528 = vst [vmem:[%s4527] ss:$4 sm:$0xff] %v4494
  %s4529 = scalar_lea.vmem [#allocation1], 3
  %4530 = vst [vmem:[%s4529] ss:$4 sm:$0xff] %v4495
  %s4531 = scalar_lea.vmem [#allocation1], 32
  %4532 = vst [vmem:[%s4531] ss:$4 sm:$0xff] %v4496
  %s4533 = scalar_lea.vmem [#allocation1], 33
  %4534 = vst [vmem:[%s4533] ss:$4 sm:$0xff] %v4497
  %s4535 = scalar_lea.vmem [#allocation1], 34
  %4536 = vst [vmem:[%s4535] ss:$4 sm:$0xff] %v4498
  %s4537 = scalar_lea.vmem [#allocation1], 35
  %4538 = vst [vmem:[%s4537] ss:$4 sm:$0xff] %v4499
  %v4539 = vld.sshfl [vmem:[#allocation1] sm:$0xff pattern:$0x73625140]
  %v4540 = vld.sshfl [vmem:[#allocation1 + $0x20] sm:$0xff pattern:$0x73625140]
  %4541 = vst [vmem:[#allocation1] ss:$4 sm:$0xff] %v4500
  %4542 = vst [vmem:[%s4525] ss:$4 sm:$0xff] %v4501
  %4543 = vst [vmem:[%s4527] ss:$4 sm:$0xff] %v4502
  %4544 = vst [vmem:[%s4529] ss:$4 sm:$0xff] %v4503
  %4545 = vst [vmem:[%s4531] ss:$4 sm:$0xff] %v4504
  %4546 = vst [vmem:[%s4533] ss:$4 sm:$0xff] %v4505
  %4547 = vst [vmem:[%s4535] ss:$4 sm:$0xff] %v4506
  %4548 = vst [vmem:[%s4537] ss:$4 sm:$0xff] %v4507
  %v4549 = vld.sshfl [vmem:[#allocation1] sm:$0xff pattern:$0x73625140]
  %v4550 = vld.sshfl [vmem:[#allocation1 + $0x20] sm:$0xff pattern:$0x73625140]
  %v4555 = vpack.c.bf16 %v4540, %v4539
  %v4556 = vpack.c.bf16 %v4550, %v4549
  %s4557 = scalar_lea.vmem %s3, 304
  %v4558 = vld [vmem:[%s4557] sm:$0xf]
  %v4559 = vld [vmem:[%s4557 + $0x4] sm:$0xf]
  %v4560 = vld [vmem:[%s4557 + $0x8] sm:$0xf]
  %v4561 = vld [vmem:[%s4557 + $0xc] sm:$0xf]
  %v4566 = vunpack.c.l.b16 %v4558
  %v4567 = vunpack.c.l.b16 %v4559
  %v4568 = vunpack.c.l.b16 %v4560
  %v4569 = vunpack.c.l.b16 %v4561
  %v4570 = vpack.c.b16 %v4567, %v4566
  %v4571 = vpack.c.b16 %v4569, %v4568
  %v4575 = vsel %vm2526, %v4555, 0
  %v4578 = vsel %vm2526, %v4556, 0
  %4580 = vmatpush.bf16.msra.mxu0 0
  %4581 = vmatpush.bf16.msra.mxu0 0
  %4582 = vmatpush.bf16.msra.mxu0 0
  %4583 = vmatpush.bf16.msra.mxu0 0
  %4584 = vmatpush.bf16.msra.mxu0 0
  %4585 = vmatpush.bf16.msra.mxu0 0
  %4586 = vmatpush.bf16.msra.mxu0 %v4571
  %4587 = vmatpush.bf16.msra.mxu0 %v4570
  %4588 = vmatmul.bf16.gmra.mxu0 %v4575
  %v4589 = vpop.f32.mrf.mxu0
  %v4590 = vadd.f32 0.0, %v4589
  %v4591 = vpop.f32.mrf.mxu0
  %v4592 = vadd.f32 0.0, %v4591
  %4593 = vmatmul.bf16.gmra.mxu0 %v4578
  %v4594 = vpop.f32.mrf.mxu0
  %v4595 = vadd.f32 0.0, %v4594
  %v4596 = vpop.f32.mrf.mxu0
  %v4597 = vadd.f32 0.0, %v4596
  %4598 = vdwg.mxu0
  %v4599 = vadd.f32 %v4487, %v4590
  %v4600 = vadd.f32 %v4488, %v4592
  %v4601 = vadd.f32 %v4489, %v4595
  %v4602 = vadd.f32 %v4490, %v4597
  %s4603 = scalar_lea.vmem [#allocation2], 160
  %v4604 = vld [vmem:[%s4603] sm:$0x3]
  %v4605 = vld [vmem:[%s4603 + $0x8] sm:$0x3]
  %v4606 = vld [vmem:[%s4603 + $0x10] sm:$0x3]
  %v4607 = vld [vmem:[%s4603 + $0x18] sm:$0x3]
  %v4608 = vld [vmem:[%s4603 + $0xa0] sm:$0x3]
  %v4609 = vld [vmem:[%s4603 + $0xa8] sm:$0x3]
  %v4610 = vld [vmem:[%s4603 + $0xb0] sm:$0x3]
  %v4611 = vld [vmem:[%s4603 + $0xb8] sm:$0x3]
  %v4612 = vld [vmem:[%s4603 + $0x140] sm:$0x3]
  %v4613 = vld [vmem:[%s4603 + $0x148] sm:$0x3]
  %v4614 = vld [vmem:[%s4603 + $0x150] sm:$0x3]
  %v4615 = vld [vmem:[%s4603 + $0x158] sm:$0x3]
  %v4616 = vld [vmem:[%s4603 + $0x1e0] sm:$0x3]
  %v4617 = vld [vmem:[%s4603 + $0x1e8] sm:$0x3]
  %v4618 = vld [vmem:[%s4603 + $0x1f0] sm:$0x3]
  %v4619 = vld [vmem:[%s4603 + $0x1f8] sm:$0x3]
  %4636 = vst [vmem:[#allocation1] ss:$4 sm:$0xff] %v4604
  %s4637 = scalar_lea.vmem [#allocation1], 1
  %4638 = vst [vmem:[%s4637] ss:$4 sm:$0xff] %v4605
  %s4639 = scalar_lea.vmem [#allocation1], 2
  %4640 = vst [vmem:[%s4639] ss:$4 sm:$0xff] %v4606
  %s4641 = scalar_lea.vmem [#allocation1], 3
  %4642 = vst [vmem:[%s4641] ss:$4 sm:$0xff] %v4607
  %s4643 = scalar_lea.vmem [#allocation1], 32
  %4644 = vst [vmem:[%s4643] ss:$4 sm:$0xff] %v4608
  %s4645 = scalar_lea.vmem [#allocation1], 33
  %4646 = vst [vmem:[%s4645] ss:$4 sm:$0xff] %v4609
  %s4647 = scalar_lea.vmem [#allocation1], 34
  %4648 = vst [vmem:[%s4647] ss:$4 sm:$0xff] %v4610
  %s4649 = scalar_lea.vmem [#allocation1], 35
  %4650 = vst [vmem:[%s4649] ss:$4 sm:$0xff] %v4611
  %v4651 = vld.sshfl [vmem:[#allocation1] sm:$0xff pattern:$0x73625140]
  %v4652 = vld.sshfl [vmem:[#allocation1 + $0x20] sm:$0xff pattern:$0x73625140]
  %4653 = vst [vmem:[#allocation1] ss:$4 sm:$0xff] %v4612
  %4654 = vst [vmem:[%s4637] ss:$4 sm:$0xff] %v4613
  %4655 = vst [vmem:[%s4639] ss:$4 sm:$0xff] %v4614
  %4656 = vst [vmem:[%s4641] ss:$4 sm:$0xff] %v4615
  %4657 = vst [vmem:[%s4643] ss:$4 sm:$0xff] %v4616
  %4658 = vst [vmem:[%s4645] ss:$4 sm:$0xff] %v4617
  %4659 = vst [vmem:[%s4647] ss:$4 sm:$0xff] %v4618
  %4660 = vst [vmem:[%s4649] ss:$4 sm:$0xff] %v4619
  %v4661 = vld.sshfl [vmem:[#allocation1] sm:$0xff pattern:$0x73625140]
  %v4662 = vld.sshfl [vmem:[#allocation1 + $0x20] sm:$0xff pattern:$0x73625140]
  %v4667 = vpack.c.bf16 %v4652, %v4651
  %v4668 = vpack.c.bf16 %v4662, %v4661
  %s4669 = scalar_lea.vmem %s3, 320
  %v4670 = vld [vmem:[%s4669] sm:$0xf]
  %v4671 = vld [vmem:[%s4669 + $0x4] sm:$0xf]
  %v4672 = vld [vmem:[%s4669 + $0x8] sm:$0xf]
  %v4673 = vld [vmem:[%s4669 + $0xc] sm:$0xf]
  %v4678 = vunpack.c.l.b16 %v4670
  %v4679 = vunpack.c.l.b16 %v4671
  %v4680 = vunpack.c.l.b16 %v4672
  %v4681 = vunpack.c.l.b16 %v4673
  %v4682 = vpack.c.b16 %v4679, %v4678
  %v4683 = vpack.c.b16 %v4681, %v4680
  %v4687 = vsel %vm2526, %v4667, 0
  %v4690 = vsel %vm2526, %v4668, 0
  %4692 = vmatpush.bf16.msra.mxu0 0
  %4693 = vmatpush.bf16.msra.mxu0 0
  %4694 = vmatpush.bf16.msra.mxu0 0
  %4695 = vmatpush.bf16.msra.mxu0 0
  %4696 = vmatpush.bf16.msra.mxu0 0
  %4697 = vmatpush.bf16.msra.mxu0 0
  %4698 = vmatpush.bf16.msra.mxu0 %v4683
  %4699 = vmatpush.bf16.msra.mxu0 %v4682
  %4700 = vmatmul.bf16.gmra.mxu0 %v4687
  %v4701 = vpop.f32.mrf.mxu0
  %v4702 = vadd.f32 0.0, %v4701
  %v4703 = vpop.f32.mrf.mxu0
  %v4704 = vadd.f32 0.0, %v4703
  %4705 = vmatmul.bf16.gmra.mxu0 %v4690
  %v4706 = vpop.f32.mrf.mxu0
  %v4707 = vadd.f32 0.0, %v4706
  %v4708 = vpop.f32.mrf.mxu0
  %v4709 = vadd.f32 0.0, %v4708
  %4710 = vdwg.mxu0
  %v4711 = vadd.f32 %v4599, %v4702
  %v4712 = vadd.f32 %v4600, %v4704
  %v4713 = vadd.f32 %v4601, %v4707
  %v4714 = vadd.f32 %v4602, %v4709
  %s4715 = scalar_lea.vmem [#allocation2], 162
  %v4716 = vld [vmem:[%s4715] sm:$0x3]
  %v4717 = vld [vmem:[%s4715 + $0x8] sm:$0x3]
  %v4718 = vld [vmem:[%s4715 + $0x10] sm:$0x3]
  %v4719 = vld [vmem:[%s4715 + $0x18] sm:$0x3]
  %v4720 = vld [vmem:[%s4715 + $0xa0] sm:$0x3]
  %v4721 = vld [vmem:[%s4715 + $0xa8] sm:$0x3]
  %v4722 = vld [vmem:[%s4715 + $0xb0] sm:$0x3]
  %v4723 = vld [vmem:[%s4715 + $0xb8] sm:$0x3]
  %v4724 = vld [vmem:[%s4715 + $0x140] sm:$0x3]
  %v4725 = vld [vmem:[%s4715 + $0x148] sm:$0x3]
  %v4726 = vld [vmem:[%s4715 + $0x150] sm:$0x3]
  %v4727 = vld [vmem:[%s4715 + $0x158] sm:$0x3]
  %v4728 = vld [vmem:[%s4715 + $0x1e0] sm:$0x3]
  %v4729 = vld [vmem:[%s4715 + $0x1e8] sm:$0x3]
  %v4730 = vld [vmem:[%s4715 + $0x1f0] sm:$0x3]
  %v4731 = vld [vmem:[%s4715 + $0x1f8] sm:$0x3]
  %4748 = vst [vmem:[#allocation1] ss:$4 sm:$0xff] %v4716
  %s4749 = scalar_lea.vmem [#allocation1], 1
  %4750 = vst [vmem:[%s4749] ss:$4 sm:$0xff] %v4717
  %s4751 = scalar_lea.vmem [#allocation1], 2
  %4752 = vst [vmem:[%s4751] ss:$4 sm:$0xff] %v4718
  %s4753 = scalar_lea.vmem [#allocation1], 3
  %4754 = vst [vmem:[%s4753] ss:$4 sm:$0xff] %v4719
  %s4755 = scalar_lea.vmem [#allocation1], 32
  %4756 = vst [vmem:[%s4755] ss:$4 sm:$0xff] %v4720
  %s4757 = scalar_lea.vmem [#allocation1], 33
  %4758 = vst [vmem:[%s4757] ss:$4 sm:$0xff] %v4721
  %s4759 = scalar_lea.vmem [#allocation1], 34
  %4760 = vst [vmem:[%s4759] ss:$4 sm:$0xff] %v4722
  %s4761 = scalar_lea.vmem [#allocation1], 35
  %4762 = vst [vmem:[%s4761] ss:$4 sm:$0xff] %v4723
  %v4763 = vld.sshfl [vmem:[#allocation1] sm:$0xff pattern:$0x73625140]
  %v4764 = vld.sshfl [vmem:[#allocation1 + $0x20] sm:$0xff pattern:$0x73625140]
  %4765 = vst [vmem:[#allocation1] ss:$4 sm:$0xff] %v4724
  %4766 = vst [vmem:[%s4749] ss:$4 sm:$0xff] %v4725
  %4767 = vst [vmem:[%s4751] ss:$4 sm:$0xff] %v4726
  %4768 = vst [vmem:[%s4753] ss:$4 sm:$0xff] %v4727
  %4769 = vst [vmem:[%s4755] ss:$4 sm:$0xff] %v4728
  %4770 = vst [vmem:[%s4757] ss:$4 sm:$0xff] %v4729
  %4771 = vst [vmem:[%s4759] ss:$4 sm:$0xff] %v4730
  %4772 = vst [vmem:[%s4761] ss:$4 sm:$0xff] %v4731
  %v4773 = vld.sshfl [vmem:[#allocation1] sm:$0xff pattern:$0x73625140]
  %v4774 = vld.sshfl [vmem:[#allocation1 + $0x20] sm:$0xff pattern:$0x73625140]
  %v4779 = vpack.c.bf16 %v4764, %v4763
  %v4780 = vpack.c.bf16 %v4774, %v4773
  %s4781 = scalar_lea.vmem %s3, 336
  %v4782 = vld [vmem:[%s4781] sm:$0xf]
  %v4783 = vld [vmem:[%s4781 + $0x4] sm:$0xf]
  %v4784 = vld [vmem:[%s4781 + $0x8] sm:$0xf]
  %v4785 = vld [vmem:[%s4781 + $0xc] sm:$0xf]
  %v4790 = vunpack.c.l.b16 %v4782
  %v4791 = vunpack.c.l.b16 %v4783
  %v4792 = vunpack.c.l.b16 %v4784
  %v4793 = vunpack.c.l.b16 %v4785
  %v4794 = vpack.c.b16 %v4791, %v4790
  %v4795 = vpack.c.b16 %v4793, %v4792
  %v4799 = vsel %vm2526, %v4779, 0
  %v4802 = vsel %vm2526, %v4780, 0
  %4804 = vmatpush.bf16.msra.mxu0 0
  %4805 = vmatpush.bf16.msra.mxu0 0
  %4806 = vmatpush.bf16.msra.mxu0 0
  %4807 = vmatpush.bf16.msra.mxu0 0
  %4808 = vmatpush.bf16.msra.mxu0 0
  %4809 = vmatpush.bf16.msra.mxu0 0
  %4810 = vmatpush.bf16.msra.mxu0 %v4795
  %4811 = vmatpush.bf16.msra.mxu0 %v4794
  %4812 = vmatmul.bf16.gmra.mxu0 %v4799
  %v4813 = vpop.f32.mrf.mxu0
  %v4814 = vadd.f32 0.0, %v4813
  %v4815 = vpop.f32.mrf.mxu0
  %v4816 = vadd.f32 0.0, %v4815
  %4817 = vmatmul.bf16.gmra.mxu0 %v4802
  %v4818 = vpop.f32.mrf.mxu0
  %v4819 = vadd.f32 0.0, %v4818
  %v4820 = vpop.f32.mrf.mxu0
  %v4821 = vadd.f32 0.0, %v4820
  %4822 = vdwg.mxu0
  %v4823 = vadd.f32 %v4711, %v4814
  %v4824 = vadd.f32 %v4712, %v4816
  %v4825 = vadd.f32 %v4713, %v4819
  %v4826 = vadd.f32 %v4714, %v4821
  %v4827 = vld [vmem:[%s2244] sm:$0x3]
  %v4828 = vld [vmem:[%s2244 + $0x8] sm:$0x3]
  %v4829 = vld [vmem:[%s2244 + $0x10] sm:$0x3]
  %v4830 = vld [vmem:[%s2244 + $0x18] sm:$0x3]
  %v4831 = vld [vmem:[%s2244 + $0xa0] sm:$0x3]
  %v4832 = vld [vmem:[%s2244 + $0xa8] sm:$0x3]
  %v4833 = vld [vmem:[%s2244 + $0xb0] sm:$0x3]
  %v4834 = vld [vmem:[%s2244 + $0xb8] sm:$0x3]
  %v4835 = vld [vmem:[%s2244 + $0x140] sm:$0x3]
  %v4836 = vld [vmem:[%s2244 + $0x148] sm:$0x3]
  %v4837 = vld [vmem:[%s2244 + $0x150] sm:$0x3]
  %v4838 = vld [vmem:[%s2244 + $0x158] sm:$0x3]
  %v4839 = vld [vmem:[%s2244 + $0x1e0] sm:$0x3]
  %v4840 = vld [vmem:[%s2244 + $0x1e8] sm:$0x3]
  %v4841 = vld [vmem:[%s2244 + $0x1f0] sm:$0x3]
  %v4842 = vld [vmem:[%s2244 + $0x1f8] sm:$0x3]
  %4859 = vst [vmem:[#allocation1] ss:$4 sm:$0xff] %v4827
  %s4860 = scalar_lea.vmem [#allocation1], 1
  %4861 = vst [vmem:[%s4860] ss:$4 sm:$0xff] %v4828
  %s4862 = scalar_lea.vmem [#allocation1], 2
  %4863 = vst [vmem:[%s4862] ss:$4 sm:$0xff] %v4829
  %s4864 = scalar_lea.vmem [#allocation1], 3
  %4865 = vst [vmem:[%s4864] ss:$4 sm:$0xff] %v4830
  %s4866 = scalar_lea.vmem [#allocation1], 32
  %4867 = vst [vmem:[%s4866] ss:$4 sm:$0xff] %v4831
  %s4868 = scalar_lea.vmem [#allocation1], 33
  %4869 = vst [vmem:[%s4868] ss:$4 sm:$0xff] %v4832
  %s4870 = scalar_lea.vmem [#allocation1], 34
  %4871 = vst [vmem:[%s4870] ss:$4 sm:$0xff] %v4833
  %s4872 = scalar_lea.vmem [#allocation1], 35
  %4873 = vst [vmem:[%s4872] ss:$4 sm:$0xff] %v4834
  %v4874 = vld.sshfl [vmem:[#allocation1] sm:$0xff pattern:$0x73625140]
  %v4875 = vld.sshfl [vmem:[#allocation1 + $0x20] sm:$0xff pattern:$0x73625140]
  %4876 = vst [vmem:[#allocation1] ss:$4 sm:$0xff] %v4835
  %4877 = vst [vmem:[%s4860] ss:$4 sm:$0xff] %v4836
  %4878 = vst [vmem:[%s4862] ss:$4 sm:$0xff] %v4837
  %4879 = vst [vmem:[%s4864] ss:$4 sm:$0xff] %v4838
  %4880 = vst [vmem:[%s4866] ss:$4 sm:$0xff] %v4839
  %4881 = vst [vmem:[%s4868] ss:$4 sm:$0xff] %v4840
  %4882 = vst [vmem:[%s4870] ss:$4 sm:$0xff] %v4841
  %4883 = vst [vmem:[%s4872] ss:$4 sm:$0xff] %v4842
  %v4884 = vld.sshfl [vmem:[#allocation1] sm:$0xff pattern:$0x73625140]
  %v4885 = vld.sshfl [vmem:[#allocation1 + $0x20] sm:$0xff pattern:$0x73625140]
  %v4890 = vpack.c.bf16 %v4875, %v4874
  %v4891 = vpack.c.bf16 %v4885, %v4884
  %s4892 = scalar_lea.vmem %s3, 352
  %v4893 = vld [vmem:[%s4892] sm:$0xf]
  %v4894 = vld [vmem:[%s4892 + $0x4] sm:$0xf]
  %v4895 = vld [vmem:[%s4892 + $0x8] sm:$0xf]
  %v4896 = vld [vmem:[%s4892 + $0xc] sm:$0xf]
  %v4901 = vunpack.c.l.b16 %v4893
  %v4902 = vunpack.c.l.b16 %v4894
  %v4903 = vunpack.c.l.b16 %v4895
  %v4904 = vunpack.c.l.b16 %v4896
  %v4905 = vpack.c.b16 %v4902, %v4901
  %v4906 = vpack.c.b16 %v4904, %v4903
  %v4910 = vsel %vm2526, %v4890, 0
  %v4913 = vsel %vm2526, %v4891, 0
  %4915 = vmatpush.bf16.msra.mxu0 0
  %4916 = vmatpush.bf16.msra.mxu0 0
  %4917 = vmatpush.bf16.msra.mxu0 0
  %4918 = vmatpush.bf16.msra.mxu0 0
  %4919 = vmatpush.bf16.msra.mxu0 0
  %4920 = vmatpush.bf16.msra.mxu0 0
  %4921 = vmatpush.bf16.msra.mxu0 %v4906
  %4922 = vmatpush.bf16.msra.mxu0 %v4905
  %4923 = vmatmul.bf16.gmra.mxu0 %v4910
  %v4924 = vpop.f32.mrf.mxu0
  %v4925 = vadd.f32 0.0, %v4924
  %v4926 = vpop.f32.mrf.mxu0
  %v4927 = vadd.f32 0.0, %v4926
  %4928 = vmatmul.bf16.gmra.mxu0 %v4913
  %v4929 = vpop.f32.mrf.mxu0
  %v4930 = vadd.f32 0.0, %v4929
  %v4931 = vpop.f32.mrf.mxu0
  %v4932 = vadd.f32 0.0, %v4931
  %4933 = vdwg.mxu0
  %v4934 = vadd.f32 %v4823, %v4925
  %v4935 = vadd.f32 %v4824, %v4927
  %v4936 = vadd.f32 %v4825, %v4930
  %v4937 = vadd.f32 %v4826, %v4932
  %s4938 = scalar_lea.vmem [#allocation2], 166
  %v4939 = vld [vmem:[%s4938] sm:$0x3]
  %v4940 = vld [vmem:[%s4938 + $0x8] sm:$0x3]
  %v4941 = vld [vmem:[%s4938 + $0x10] sm:$0x3]
  %v4942 = vld [vmem:[%s4938 + $0x18] sm:$0x3]
  %v4943 = vld [vmem:[%s4938 + $0xa0] sm:$0x3]
  %v4944 = vld [vmem:[%s4938 + $0xa8] sm:$0x3]
  %v4945 = vld [vmem:[%s4938 + $0xb0] sm:$0x3]
  %v4946 = vld [vmem:[%s4938 + $0xb8] sm:$0x3]
  %v4947 = vld [vmem:[%s4938 + $0x140] sm:$0x3]
  %v4948 = vld [vmem:[%s4938 + $0x148] sm:$0x3]
  %v4949 = vld [vmem:[%s4938 + $0x150] sm:$0x3]
  %v4950 = vld [vmem:[%s4938 + $0x158] sm:$0x3]
  %v4951 = vld [vmem:[%s4938 + $0x1e0] sm:$0x3]
  %v4952 = vld [vmem:[%s4938 + $0x1e8] sm:$0x3]
  %v4953 = vld [vmem:[%s4938 + $0x1f0] sm:$0x3]
  %v4954 = vld [vmem:[%s4938 + $0x1f8] sm:$0x3]
  %4971 = vst [vmem:[#allocation1] ss:$4 sm:$0xff] %v4939
  %s4972 = scalar_lea.vmem [#allocation1], 1
  %4973 = vst [vmem:[%s4972] ss:$4 sm:$0xff] %v4940
  %s4974 = scalar_lea.vmem [#allocation1], 2
  %4975 = vst [vmem:[%s4974] ss:$4 sm:$0xff] %v4941
  %s4976 = scalar_lea.vmem [#allocation1], 3
  %4977 = vst [vmem:[%s4976] ss:$4 sm:$0xff] %v4942
  %s4978 = scalar_lea.vmem [#allocation1], 32
  %4979 = vst [vmem:[%s4978] ss:$4 sm:$0xff] %v4943
  %s4980 = scalar_lea.vmem [#allocation1], 33
  %4981 = vst [vmem:[%s4980] ss:$4 sm:$0xff] %v4944
  %s4982 = scalar_lea.vmem [#allocation1], 34
  %4983 = vst [vmem:[%s4982] ss:$4 sm:$0xff] %v4945
  %s4984 = scalar_lea.vmem [#allocation1], 35
  %4985 = vst [vmem:[%s4984] ss:$4 sm:$0xff] %v4946
  %v4986 = vld.sshfl [vmem:[#allocation1] sm:$0xff pattern:$0x73625140]
  %v4987 = vld.sshfl [vmem:[#allocation1 + $0x20] sm:$0xff pattern:$0x73625140]
  %4988 = vst [vmem:[#allocation1] ss:$4 sm:$0xff] %v4947
  %4989 = vst [vmem:[%s4972] ss:$4 sm:$0xff] %v4948
  %4990 = vst [vmem:[%s4974] ss:$4 sm:$0xff] %v4949
  %4991 = vst [vmem:[%s4976] ss:$4 sm:$0xff] %v4950
  %4992 = vst [vmem:[%s4978] ss:$4 sm:$0xff] %v4951
  %4993 = vst [vmem:[%s4980] ss:$4 sm:$0xff] %v4952
  %4994 = vst [vmem:[%s4982] ss:$4 sm:$0xff] %v4953
  %4995 = vst [vmem:[%s4984] ss:$4 sm:$0xff] %v4954
  %v4996 = vld.sshfl [vmem:[#allocation1] sm:$0xff pattern:$0x73625140]
  %v4997 = vld.sshfl [vmem:[#allocation1 + $0x20] sm:$0xff pattern:$0x73625140]
  %v5002 = vpack.c.bf16 %v4987, %v4986
  %v5003 = vpack.c.bf16 %v4997, %v4996
  %s5004 = scalar_lea.vmem %s3, 368
  %v5005 = vld [vmem:[%s5004] sm:$0xf]
  %v5006 = vld [vmem:[%s5004 + $0x4] sm:$0xf]
  %v5007 = vld [vmem:[%s5004 + $0x8] sm:$0xf]
  %v5008 = vld [vmem:[%s5004 + $0xc] sm:$0xf]
  %v5013 = vunpack.c.l.b16 %v5005
  %v5014 = vunpack.c.l.b16 %v5006
  %v5015 = vunpack.c.l.b16 %v5007
  %v5016 = vunpack.c.l.b16 %v5008
  %v5017 = vpack.c.b16 %v5014, %v5013
  %v5018 = vpack.c.b16 %v5016, %v5015
  %v5022 = vsel %vm2526, %v5002, 0
  %v5025 = vsel %vm2526, %v5003, 0
  %5027 = vmatpush.bf16.msra.mxu0 0
  %5028 = vmatpush.bf16.msra.mxu0 0
  %5029 = vmatpush.bf16.msra.mxu0 0
  %5030 = vmatpush.bf16.msra.mxu0 0
  %5031 = vmatpush.bf16.msra.mxu0 0
  %5032 = vmatpush.bf16.msra.mxu0 0
  %5033 = vmatpush.bf16.msra.mxu0 %v5018
  %5034 = vmatpush.bf16.msra.mxu0 %v5017
  %5035 = vmatmul.bf16.gmra.mxu0 %v5022
  %v5036 = vpop.f32.mrf.mxu0
  %v5037 = vadd.f32 0.0, %v5036
  %v5038 = vpop.f32.mrf.mxu0
  %v5039 = vadd.f32 0.0, %v5038
  %5040 = vmatmul.bf16.gmra.mxu0 %v5025
  %v5041 = vpop.f32.mrf.mxu0
  %v5042 = vadd.f32 0.0, %v5041
  %v5043 = vpop.f32.mrf.mxu0
  %v5044 = vadd.f32 0.0, %v5043
  %5045 = vdwg.mxu0
  %v5046 = vadd.f32 %v4934, %v5037
  %v5047 = vadd.f32 %v4935, %v5039
  %v5048 = vadd.f32 %v4936, %v5042
  %v5049 = vadd.f32 %v4937, %v5044
  %v5050 = vld [vmem:[%s2309] sm:$0x3]
  %v5051 = vld [vmem:[%s2309 + $0x8] sm:$0x3]
  %v5052 = vld [vmem:[%s2309 + $0x10] sm:$0x3]
  %v5053 = vld [vmem:[%s2309 + $0x18] sm:$0x3]
  %v5054 = vld [vmem:[%s2309 + $0xa0] sm:$0x3]
  %v5055 = vld [vmem:[%s2309 + $0xa8] sm:$0x3]
  %v5056 = vld [vmem:[%s2309 + $0xb0] sm:$0x3]
  %v5057 = vld [vmem:[%s2309 + $0xb8] sm:$0x3]
  %v5058 = vld [vmem:[%s2309 + $0x140] sm:$0x3]
  %v5059 = vld [vmem:[%s2309 + $0x148] sm:$0x3]
  %v5060 = vld [vmem:[%s2309 + $0x150] sm:$0x3]
  %v5061 = vld [vmem:[%s2309 + $0x158] sm:$0x3]
  %v5062 = vld [vmem:[%s2309 + $0x1e0] sm:$0x3]
  %v5063 = vld [vmem:[%s2309 + $0x1e8] sm:$0x3]
  %v5064 = vld [vmem:[%s2309 + $0x1f0] sm:$0x3]
  %v5065 = vld [vmem:[%s2309 + $0x1f8] sm:$0x3]
  %5082 = vst [vmem:[#allocation1] ss:$4 sm:$0xff] %v5050
  %s5083 = scalar_lea.vmem [#allocation1], 1
  %5084 = vst [vmem:[%s5083] ss:$4 sm:$0xff] %v5051
  %s5085 = scalar_lea.vmem [#allocation1], 2
  %5086 = vst [vmem:[%s5085] ss:$4 sm:$0xff] %v5052
  %s5087 = scalar_lea.vmem [#allocation1], 3
  %5088 = vst [vmem:[%s5087] ss:$4 sm:$0xff] %v5053
  %s5089 = scalar_lea.vmem [#allocation1], 32
  %5090 = vst [vmem:[%s5089] ss:$4 sm:$0xff] %v5054
  %s5091 = scalar_lea.vmem [#allocation1], 33
  %5092 = vst [vmem:[%s5091] ss:$4 sm:$0xff] %v5055
  %s5093 = scalar_lea.vmem [#allocation1], 34
  %5094 = vst [vmem:[%s5093] ss:$4 sm:$0xff] %v5056
  %s5095 = scalar_lea.vmem [#allocation1], 35
  %5096 = vst [vmem:[%s5095] ss:$4 sm:$0xff] %v5057
  %v5097 = vld.sshfl [vmem:[#allocation1] sm:$0xff pattern:$0x73625140]
  %v5098 = vld.sshfl [vmem:[#allocation1 + $0x20] sm:$0xff pattern:$0x73625140]
  %5099 = vst [vmem:[#allocation1] ss:$4 sm:$0xff] %v5058
  %5100 = vst [vmem:[%s5083] ss:$4 sm:$0xff] %v5059
  %5101 = vst [vmem:[%s5085] ss:$4 sm:$0xff] %v5060
  %5102 = vst [vmem:[%s5087] ss:$4 sm:$0xff] %v5061
  %5103 = vst [vmem:[%s5089] ss:$4 sm:$0xff] %v5062
  %5104 = vst [vmem:[%s5091] ss:$4 sm:$0xff] %v5063
  %5105 = vst [vmem:[%s5093] ss:$4 sm:$0xff] %v5064
  %5106 = vst [vmem:[%s5095] ss:$4 sm:$0xff] %v5065
  %v5107 = vld.sshfl [vmem:[#allocation1] sm:$0xff pattern:$0x73625140]
  %v5108 = vld.sshfl [vmem:[#allocation1 + $0x20] sm:$0xff pattern:$0x73625140]
  %v5113 = vpack.c.bf16 %v5098, %v5097
  %v5114 = vpack.c.bf16 %v5108, %v5107
  %s5115 = scalar_lea.vmem %s3, 384
  %v5116 = vld [vmem:[%s5115] sm:$0xf]
  %v5117 = vld [vmem:[%s5115 + $0x4] sm:$0xf]
  %v5118 = vld [vmem:[%s5115 + $0x8] sm:$0xf]
  %v5119 = vld [vmem:[%s5115 + $0xc] sm:$0xf]
  %v5124 = vunpack.c.l.b16 %v5116
  %v5125 = vunpack.c.l.b16 %v5117
  %v5126 = vunpack.c.l.b16 %v5118
  %v5127 = vunpack.c.l.b16 %v5119
  %v5128 = vpack.c.b16 %v5125, %v5124
  %v5129 = vpack.c.b16 %v5127, %v5126
  %v5133 = vsel %vm2526, %v5113, 0
  %v5136 = vsel %vm2526, %v5114, 0
  %5138 = vmatpush.bf16.msra.mxu0 0
  %5139 = vmatpush.bf16.msra.mxu0 0
  %5140 = vmatpush.bf16.msra.mxu0 0
  %5141 = vmatpush.bf16.msra.mxu0 0
  %5142 = vmatpush.bf16.msra.mxu0 0
  %5143 = vmatpush.bf16.msra.mxu0 0
  %5144 = vmatpush.bf16.msra.mxu0 %v5129
  %5145 = vmatpush.bf16.msra.mxu0 %v5128
  %5146 = vmatmul.bf16.gmra.mxu0 %v5133
  %v5147 = vpop.f32.mrf.mxu0
  %v5148 = vadd.f32 0.0, %v5147
  %v5149 = vpop.f32.mrf.mxu0
  %v5150 = vadd.f32 0.0, %v5149
  %5151 = vmatmul.bf16.gmra.mxu0 %v5136
  %v5152 = vpop.f32.mrf.mxu0
  %v5153 = vadd.f32 0.0, %v5152
  %v5154 = vpop.f32.mrf.mxu0
  %v5155 = vadd.f32 0.0, %v5154
  %5156 = vdwg.mxu0
  %v5157 = vadd.f32 %v5046, %v5148
  %v5158 = vadd.f32 %v5047, %v5150
  %v5159 = vadd.f32 %v5048, %v5153
  %v5160 = vadd.f32 %v5049, %v5155
  %v5161 = vld [vmem:[%s4] sm:$0x1]
  %v5163 = vperm.slane %v5161, 0
  %v5165 = vadd.f32 %v5157, %v5163
  %v5166 = vadd.f32 %v5158, %v5163
  %v5167 = vadd.f32 %v5159, %v5163
  %v5168 = vadd.f32 %v5160, %v5163
  %v5169 = vmax.f32 %v5165, 0.0
  %v5170 = vmax.f32 %v5166, 0.0
  %v5171 = vmax.f32 %v5167, 0.0
  %v5172 = vmax.f32 %v5168, 0.0
  %v5177 = vrot.slane %v5169, 2
  %v5178 = vrot.slane %v5169, 4
  %v5179 = vrot.slane %v5169, 6
  %v5180 = vrot.slane %v5170, 2
  %v5181 = vrot.slane %v5170, 4
  %v5182 = vrot.slane %v5170, 6
  %v5183 = vrot.slane %v5171, 2
  %v5184 = vrot.slane %v5171, 4
  %v5185 = vrot.slane %v5171, 6
  %v5186 = vrot.slane %v5172, 2
  %v5187 = vrot.slane %v5172, 4
  %v5188 = vrot.slane %v5172, 6
  %v5201 = vld [vmem:[%s5] sm:$0x1]
  %v5202 = vld [vmem:[%s5 + $0x1] sm:$0x1]
  %v5203 = vld [vmem:[%s5 + $0x2] sm:$0x1]
  %v5204 = vld [vmem:[%s5 + $0x3] sm:$0x1]
  %v5205 = vld [vmem:[%s5 + $0x4] sm:$0x1]
  %v5206 = vld [vmem:[%s5 + $0x5] sm:$0x1]
  %v5207 = vld [vmem:[%s5 + $0x6] sm:$0x1]
  %v5208 = vld [vmem:[%s5 + $0x7] sm:$0x1]
  %v5209 = vld [vmem:[%s5 + $0x8] sm:$0x1]
  %v5210 = vld [vmem:[%s5 + $0x9] sm:$0x1]
  %v5211 = vld [vmem:[%s5 + $0xa] sm:$0x1]
  %v5212 = vld [vmem:[%s5 + $0xb] sm:$0x1]
  %v5213 = vld [vmem:[%s5 + $0xc] sm:$0x1]
  %v5214 = vld [vmem:[%s5 + $0xd] sm:$0x1]
  %v5215 = vld [vmem:[%s5 + $0xe] sm:$0x1]
  %v5216 = vld [vmem:[%s5 + $0xf] sm:$0x1]
  %v5233 = vperm.slane %v5201, 0
  %v5234 = vperm.slane %v5202, 0
  %v5235 = vperm.slane %v5203, 0
  %v5236 = vperm.slane %v5204, 0
  %v5237 = vperm.slane %v5205, 0
  %v5238 = vperm.slane %v5206, 0
  %v5239 = vperm.slane %v5207, 0
  %v5240 = vperm.slane %v5208, 0
  %v5241 = vperm.slane %v5209, 0
  %v5242 = vperm.slane %v5210, 0
  %v5243 = vperm.slane %v5211, 0
  %v5244 = vperm.slane %v5212, 0
  %v5245 = vperm.slane %v5213, 0
  %v5246 = vperm.slane %v5214, 0
  %v5247 = vperm.slane %v5215, 0
  %v5248 = vperm.slane %v5216, 0
  %v5265 = vmul.f32 %v5169, %v5233
  %v5266 = vmul.f32 %v5177, %v5234
  %v5267 = vmul.f32 %v5178, %v5235
  %v5268 = vmul.f32 %v5179, %v5236
  %v5269 = vmul.f32 %v5170, %v5237
  %v5270 = vmul.f32 %v5180, %v5238
  %v5271 = vmul.f32 %v5181, %v5239
  %v5272 = vmul.f32 %v5182, %v5240
  %v5273 = vmul.f32 %v5171, %v5241
  %v5274 = vmul.f32 %v5183, %v5242
  %v5275 = vmul.f32 %v5184, %v5243
  %v5276 = vmul.f32 %v5185, %v5244
  %v5277 = vmul.f32 %v5172, %v5245
  %v5278 = vmul.f32 %v5186, %v5246
  %v5279 = vmul.f32 %v5187, %v5247
  %v5280 = vmul.f32 %v5188, %v5248
  %vm5281 = vcmask 517120
  %v5282 = vsel %vm5281, %v5265, 0.0
  %5283 = vadd.xlane.f32.xlu0 %v5282
  %v5284 = vpop.xlane.xlu0 %5283
  %v5285 = vsel %vm5281, %v5266, 0.0
  %5286 = vadd.xlane.f32.xlu0 %v5285
  %v5287 = vpop.xlane.xlu0 %5286
  %v5288 = vsel %vm5281, %v5267, 0.0
  %5289 = vadd.xlane.f32.xlu0 %v5288
  %v5290 = vpop.xlane.xlu0 %5289
  %v5291 = vsel %vm5281, %v5268, 0.0
  %5292 = vadd.xlane.f32.xlu0 %v5291
  %v5293 = vpop.xlane.xlu0 %5292
  %v5294 = vsel %vm5281, %v5269, 0.0
  %5295 = vadd.xlane.f32.xlu0 %v5294
  %v5296 = vpop.xlane.xlu0 %5295
  %v5297 = vsel %vm5281, %v5270, 0.0
  %5298 = vadd.xlane.f32.xlu0 %v5297
  %v5299 = vpop.xlane.xlu0 %5298
  %v5300 = vsel %vm5281, %v5271, 0.0
  %5301 = vadd.xlane.f32.xlu0 %v5300
  %v5302 = vpop.xlane.xlu0 %5301
  %v5303 = vsel %vm5281, %v5272, 0.0
  %5304 = vadd.xlane.f32.xlu0 %v5303
  %v5305 = vpop.xlane.xlu0 %5304
  %v5306 = vsel %vm5281, %v5273, 0.0
  %5307 = vadd.xlane.f32.xlu0 %v5306
  %v5308 = vpop.xlane.xlu0 %5307
  %v5309 = vsel %vm5281, %v5274, 0.0
  %5310 = vadd.xlane.f32.xlu0 %v5309
  %v5311 = vpop.xlane.xlu0 %5310
  %v5312 = vsel %vm5281, %v5275, 0.0
  %5313 = vadd.xlane.f32.xlu0 %v5312
  %v5314 = vpop.xlane.xlu0 %5313
  %v5315 = vsel %vm5281, %v5276, 0.0
  %5316 = vadd.xlane.f32.xlu0 %v5315
  %v5317 = vpop.xlane.xlu0 %5316
  %v5318 = vsel %vm5281, %v5277, 0.0
  %5319 = vadd.xlane.f32.xlu0 %v5318
  %v5320 = vpop.xlane.xlu0 %5319
  %v5321 = vsel %vm5281, %v5278, 0.0
  %5322 = vadd.xlane.f32.xlu0 %v5321
  %v5323 = vpop.xlane.xlu0 %5322
  %v5324 = vsel %vm5281, %v5279, 0.0
  %5325 = vadd.xlane.f32.xlu0 %v5324
  %v5326 = vpop.xlane.xlu0 %5325
  %v5327 = vsel %vm5281, %v5280, 0.0
  %5328 = vadd.xlane.f32.xlu0 %v5327
  %v5329 = vpop.xlane.xlu0 %5328
  %vm5330 = vcmask 1041408
  %v5331 = vsel %vm5330, %v5284, 0.0
  %v5332 = vsel %vm5330, %v5287, 0.0
  %v5333 = vadd.f32 %v5331, %v5332
  %v5334 = vsel %vm5330, %v5290, 0.0
  %v5335 = vadd.f32 %v5333, %v5334
  %v5336 = vsel %vm5330, %v5293, 0.0
  %v5337 = vadd.f32 %v5335, %v5336
  %v5338 = vsel %vm5330, %v5296, 0.0
  %v5339 = vadd.f32 %v5337, %v5338
  %v5340 = vsel %vm5330, %v5299, 0.0
  %v5341 = vadd.f32 %v5339, %v5340
  %v5342 = vsel %vm5330, %v5302, 0.0
  %v5343 = vadd.f32 %v5341, %v5342
  %v5344 = vsel %vm5330, %v5305, 0.0
  %v5345 = vadd.f32 %v5343, %v5344
  %v5346 = vsel %vm5330, %v5308, 0.0
  %v5347 = vadd.f32 %v5345, %v5346
  %v5348 = vsel %vm5330, %v5311, 0.0
  %v5349 = vadd.f32 %v5347, %v5348
  %v5350 = vsel %vm5330, %v5314, 0.0
  %v5351 = vadd.f32 %v5349, %v5350
  %v5352 = vsel %vm5330, %v5317, 0.0
  %v5353 = vadd.f32 %v5351, %v5352
  %v5354 = vsel %vm5330, %v5320, 0.0
  %v5355 = vadd.f32 %v5353, %v5354
  %v5356 = vsel %vm5330, %v5323, 0.0
  %v5357 = vadd.f32 %v5355, %v5356
  %v5358 = vsel %vm5330, %v5326, 0.0
  %v5359 = vadd.f32 %v5357, %v5358
  %v5360 = vsel %vm5330, %v5329, 0.0
  %v5361 = vadd.f32 %v5359, %v5360
  %v5362 = vld [vmem:[#allocation3] sm:$0x1]
  %v5364 = vperm.slane %v5362, 0
  %v5366 = vadd.f32 %v5361, %v5364
  %v5367 = vxor.u32 %v5366, 2147483648
  %v5368 = vmul.f32 %v5367, 1.442695
  %v5369 = vpow.pop %v5368
  %v5370 = vadd.f32 %v5369, 1.0
  %v5371 = vrcp.pop %v5370
  %v5372 = vmul.f32 %v5370, %v5371
  %v5373 = vsub.f32 1.0, %v5372
  %v5374 = vmul.f32 %v5371, %v5373
  %v5375 = vadd.f32 %v5371, %v5374
  %vm5376 = vweird.f32 %v5370
  %vm5377 = vweird.f32 %v5371
  %vm5378 = vmor %vm5376, %vm5377
  %v5379 = vsel %vm5378, %v5371, %v5375
  %v5380 = vand.u32 2147483647, %v5370
  %vm5381 = vcmp.eq.f32.partialorder %v5380, 8.507059e+37
  %v5382 = vand.u32 %v5370, 2147483648
  %v5383 = vor.u32 1.1754944e-38, %v5382
  %v5384 = vsel %vm5381, %v5383, %v5379
  %v5385 = vmul.f32 1.0, %v5384
  %vm5386 = vcmask 1024
  %5387 = vst.msk [vmem:[%s7] sm:$0x3] %vm5386, %v5385
  // Predicated region
  $region30: #{classifier_forward.1} parent=0 // pred_check
    _
  $region31: #{classifier_forward.1} parent=0 // pred_check_branch
    %5389 = sbr.rel (0) target = $region33
  $region32: #{classifier_forward.1} parent=0 // pred_region
    _
  $region33: #{classifier_forward.1} parent=0 // pred_fallthru
    _
  // Predicated region
  $region34: #{classifier_forward.1} parent=0 // pred_check
    _
  $region35: #{classifier_forward.1} parent=0 // pred_check_branch
    %5391 = sbr.rel (0) target = $region37
  $region36: #{classifier_forward.1} parent=0 // pred_region
    _
  $region37: #{classifier_forward.1} parent=0 // pred_fallthru
    _

</llo_original>
